<compile_context>
chip_gen: v5e
topology: v5e:2x2
jax: 0.10.0
libtpu: 0.0.40
codegen_flags: <defaults>
</compile_context>

<pallas_src>
import math
import functools

import jax
import jax.numpy as jnp
from jax.experimental import pallas as pl
from jax.experimental.pallas import tpu as pltpu


def _encoder_layer_kernel(x_ref,
                          wqkv_ref, bqkv_ref, wo_ref, bo_ref,
                          ln1a_ref, ln1b_ref, ln2a_ref, ln2b_ref,
                          w1_ref, b1_ref, w2_ref, b2_ref,
                          out_ref,
                          *, d_model, d_pad, n_heads, d_head_pad, seq, n_batch,
                          eps, compute_dtype):
    d_k = d_model // n_heads              # true head width (50) -> softmax scale
    scale = 1.0 / math.sqrt(d_k)
    hq = n_heads * d_head_pad             # width of each of the Q / K / V column blocks

    x = x_ref[...].astype(jnp.float32)    # (n_batch*seq, d_pad)

    # Hoisted parameter reads (JAX does not CSE broadcast_in_dim -> read each exactly once).
    bqkv = bqkv_ref[...].astype(jnp.float32)
    bo = bo_ref[...].astype(jnp.float32)
    b1 = b1_ref[...].astype(jnp.float32)
    b2 = b2_ref[...].astype(jnp.float32)
    ln1a = ln1a_ref[...]
    ln1b = ln1b_ref[...]
    ln2a = ln2a_ref[...]
    ln2b = ln2b_ref[...]

    # Padded lanes (>= d_model) hold exact zeros in x and in every padded weight/bias column, but
    # (v - mean) is nonzero there, so mask them out of the variance sum.  The mean stays exact
    # because the padded lanes of v are zero and we divide by the true d_model.
    lane = jax.lax.broadcasted_iota(jnp.int32, (1, d_pad), 1)
    feat_mask = (lane < d_model).astype(jnp.float32)

    def layer_norm(v, a, b):
        # Matches the PyTorch reference: torch.std is Bessel-corrected (divide by D-1) and the
        # denominator is (std + eps), NOT sqrt(var + eps).  Divide goes to the EUP (approx recip).
        mean = jnp.sum(v, axis=-1, keepdims=True) * (1.0 / d_model)
        c = (v - mean) * feat_mask
        var = jnp.sum(c * c, axis=-1, keepdims=True) * (1.0 / (d_model - 1))
        inv = pl.reciprocal(jnp.sqrt(var) + eps, approx=True)
        return a * c * inv + b

    def mm(a, w_ref):
        # Projection matmuls: operands in compute_dtype (bf16 -> full-rate MXU, half the operand
        # traffic), f32 accumulation on the MXU.
        return jax.lax.dot_general(
            a.astype(compute_dtype), w_ref[...],
            dimension_numbers=(((1,), (0,)), ((), ())),
            preferred_element_type=jnp.float32)

    # ---- sublayer 0: x + self_attn(norm(x)) ----  (dropout = identity, eval mode)
    xn = layer_norm(x, ln1a, ln1b)

    # Fused, head-padded Q/K/V projection: one (BS, d_pad) @ (d_pad, 3*H*128) matmul.  Every
    # per-head slice below lands on a 128-lane boundary, so slicing and the final concat are free.
    qkv = mm(xn, wqkv_ref) + bqkv                           # (BS, 3*H*128) f32
    qkv_c = qkv.astype(compute_dtype)                       # cast once for the tiny head matmuls

    attn_rows = []
    for b in range(n_batch):                                # static unroll: attention per batch
        r = b * seq                                         # sublane-aligned row offset (seq = 8)
        heads = []
        for h in range(n_heads):                            # static unroll over 6 heads
            c0 = h * d_head_pad
            q = qkv_c[r:r + seq, c0:c0 + d_head_pad]                        # (S, 128)
            k = qkv_c[r:r + seq, hq + c0:hq + c0 + d_head_pad]              # (S, 128)
            v = qkv_c[r:r + seq, 2 * hq + c0:2 * hq + c0 + d_head_pad]      # (S, 128)

            # Contract last dims directly (no k.T relayout).  Padded lanes are zero in both q and
            # k, so they contribute nothing to the scores.
            s = jax.lax.dot_general(q, k, (((1,), (1,)), ((), ())),
                                    preferred_element_type=jnp.float32) * scale   # (S, S)
            s = s - jnp.max(s, axis=-1, keepdims=True)
            p = jnp.exp(s)
            # EUP approximate reciprocal instead of a VALU divide per row.
            p = p * pl.reciprocal(jnp.sum(p, axis=-1, keepdims=True), approx=True)
            heads.append(jax.lax.dot_general(p.astype(compute_dtype), v,
                                             (((1,), (0,)), ((), ())),
                                             preferred_element_type=jnp.float32))  # (S, 128)
        attn_rows.append(jnp.concatenate(heads, axis=-1))   # (S, H*128), lane-dense slab
    heads_all = (attn_rows[0] if n_batch == 1
                 else jnp.concatenate(attn_rows, axis=0))   # (BS, H*128)

    # Single fused output projection on the (already head-padded, contiguous) head slab; padded
    # head lanes are exact zeros and hit zero rows of wo, so the result is exact.
    attn = mm(heads_all, wo_ref) + bo                       # (BS, d_pad)
    x = x + attn

    # ---- sublayer 1: x + feed_forward(norm(x)) ----
    # TODO(synk): feed_forward is assumed to be Linear(D->DFF) + ReLU + Linear(DFF->D) (standard
    # annotated-transformer PositionwiseFeedForward); dropout treated as identity (eval mode).
    xn2 = layer_norm(x, ln2a, ln2b)
    h1 = jnp.maximum(mm(xn2, w1_ref) + b1, 0.0)             # (BS, dff_pad), lane-dense
    ff = mm(h1, w2_ref) + b2                                # (BS, d_pad)

    out_ref[...] = (x + ff).astype(out_ref.dtype)           # lane-dense, unmasked store


def prepare_params(params, *, n_heads=6, compute_dtype=jnp.bfloat16,
                   d_head_pad=128, lane=128):
    """One-time host-side weight fusion + zero padding (hoisted out of the per-call path)."""
    d_model = params["wq"].shape[0]
    dff = params["w1"].shape[1]
    assert d_model % n_heads == 0
    d_k = d_model // n_heads
    d_pad = ((d_model + lane - 1) // lane) * lane           # 300 -> 384
    dff_pad = ((dff + lane - 1) // lane) * lane             # 64  -> 128

    def pad_head_cols(w):        # (d_model, d_model) -> (d_pad, H*d_head_pad)
        blocks = [jnp.pad(w[:, h * d_k:(h + 1) * d_k],
                          ((0, d_pad - d_model), (0, d_head_pad - d_k)))
                  for h in range(n_heads)]
        return jnp.concatenate(blocks, axis=1)

    def pad_head_bias(b):        # (1, d_model) -> (1, H*d_head_pad)
        blocks = [jnp.pad(b[:, h * d_k:(h + 1) * d_k], ((0, 0), (0, d_head_pad - d_k)))
                  for h in range(n_heads)]
        return jnp.concatenate(blocks, axis=1)

    def pad_head_rows(w):        # (H*d_k, d_model) -> (H*d_head_pad, d_pad)
        blocks = [jnp.pad(w[h * d_k:(h + 1) * d_k, :],
                          ((0, d_head_pad - d_k), (0, d_pad - d_model)))
                  for h in range(n_heads)]
        return jnp.concatenate(blocks, axis=0)

    def pad_feat(b):             # (1, d_model) -> (1, d_pad)
        return jnp.pad(b, ((0, 0), (0, d_pad - d_model)))

    wqkv = jnp.concatenate([pad_head_cols(params["wq"]),
                            pad_head_cols(params["wk"]),
                            pad_head_cols(params["wv"])], axis=1)
    bqkv = jnp.concatenate([pad_head_bias(params["bq"]),
                            pad_head_bias(params["bk"]),
                            pad_head_bias(params["bv"])], axis=1)

    return {
        "wqkv": wqkv.astype(compute_dtype), "bqkv": bqkv,
        "wo": pad_head_rows(params["wo"]).astype(compute_dtype), "bo": pad_feat(params["bo"]),
        "ln1_a": pad_feat(params["ln1_a"]), "ln1_b": pad_feat(params["ln1_b"]),
        "ln2_a": pad_feat(params["ln2_a"]), "ln2_b": pad_feat(params["ln2_b"]),
        "w1": jnp.pad(params["w1"], ((0, d_pad - d_model), (0, dff_pad - dff))).astype(compute_dtype),
        "b1": jnp.pad(params["b1"], ((0, 0), (0, dff_pad - dff))),
        "w2": jnp.pad(params["w2"], ((0, dff_pad - dff), (0, d_pad - d_model))).astype(compute_dtype),
        "b2": pad_feat(params["b2"]),
    }


def encoder_layer(x, prepped, *, n_heads=6, eps=1e-6, batch_block=None):
    """x: (B, S, d_model) f32; prepped: output of prepare_params."""
    B, S, D = x.shape
    compute_dtype = prepped["wqkv"].dtype
    d_pad = prepped["wqkv"].shape[0]
    d_head_pad = prepped["wqkv"].shape[1] // (3 * n_heads)
    dff_pad = prepped["w1"].shape[1]

    if batch_block is None:
        # v7x has 2 TensorCores/chip -> keep a parallel batch grid so both cores get work.
        # v5e/v6e are single-TC -> fold the whole batch into one grid step (saves ~0.35us/step of
        # pipeline overhead and doubles matmul M from 8 to 16).
        try:
            kind = jax.devices()[0].device_kind.lower()
        except Exception:  # pragma: no cover
            kind = ""
        batch_block = 1 if (("v7" in kind or "7x" in kind) and B > 1) else B
    assert B % batch_block == 0
    n_steps = B // batch_block
    rows = batch_block * S

    # Pad the feature dim (zeros) and flatten batch into rows: every block is lane-dense and the
    # per-batch attention row blocks are sublane-aligned (S=8).
    xp = jnp.pad(x, ((0, 0), (0, 0), (0, d_pad - D))).reshape(B * S, d_pad)

    kernel = functools.partial(_encoder_layer_kernel,
                               d_model=D, d_pad=d_pad, n_heads=n_heads,
                               d_head_pad=d_head_pad, seq=S, n_batch=batch_block,
                               eps=eps, compute_dtype=compute_dtype)

    def full(shape):
        n = len(shape)
        return pl.BlockSpec(shape, lambda i, _n=n: (0,) * _n)

    in_specs = [
        pl.BlockSpec((rows, d_pad), lambda i: (i, 0)),                 # x
        full(prepped["wqkv"].shape), full(prepped["bqkv"].shape),      # wqkv, bqkv
        full(prepped["wo"].shape), full(prepped["bo"].shape),          # wo, bo
        full(prepped["ln1_a"].shape), full(prepped["ln1_b"].shape),    # ln1 a, b
        full(prepped["ln2_a"].shape), full(prepped["ln2_b"].shape),    # ln2 a, b
        full(prepped["w1"].shape), full(prepped["b1"].shape),          # w1, b1
        full(prepped["w2"].shape), full(prepped["b2"].shape),          # w2, b2
    ]
    out_spec = pl.BlockSpec((rows, d_pad), lambda i: (i, 0))

    H, dkp = n_heads, d_head_pad
    flops = B * (2 * S * d_pad * 3 * H * dkp            # fused QKV projection
                 + H * 4 * S * S * dkp                  # scores + p@v
                 + 2 * S * (H * dkp) * d_pad            # output projection
                 + 2 * S * d_pad * dff_pad              # FF up
                 + 2 * S * dff_pad * d_pad)             # FF down
    transcendentals = B * (H * S * S + S * (H + 4))     # exp + softmax/LN recips + sqrt
    wbytes = sum(int(prepped[k].size) * prepped[k].dtype.itemsize
                 for k in ("wqkv", "wo", "w1", "w2"))
    vbytes = sum(int(prepped[k].size) * prepped[k].dtype.itemsize
                 for k in ("bqkv", "bo", "b1", "b2", "ln1_a", "ln1_b", "ln2_a", "ln2_b"))
    bytes_accessed = 2 * int(xp.size) * xp.dtype.itemsize + wbytes + vbytes
    cost = pl.CostEstimate(flops=int(flops), transcendentals=int(transcendentals),
                           bytes_accessed=int(bytes_accessed))

    out = pl.pallas_call(
        kernel,
        out_shape=jax.ShapeDtypeStruct((B * S, d_pad), x.dtype),
        grid_spec=pltpu.PrefetchScalarGridSpec(
            num_scalar_prefetch=0,
            grid=(n_steps,),
            in_specs=in_specs,
            out_specs=out_spec,
        ),
        compiler_params=pltpu.CompilerParams(dimension_semantics=("parallel",)),
        cost_estimate=cost,
    )(xp, prepped["wqkv"], prepped["bqkv"], prepped["wo"], prepped["bo"],
      prepped["ln1_a"], prepped["ln1_b"], prepped["ln2_a"], prepped["ln2_b"],
      prepped["w1"], prepped["b1"], prepped["w2"], prepped["b2"])

    return out.reshape(B, S, d_pad)[:, :, :D]


def reference(x, params, *, n_heads=6, eps=1e-6):
    """Plain-JAX reproduction of the PyTorch forward (eval mode), for checking."""
    B, S, D = x.shape
    d_k = D // n_heads
    hp = dict(precision=jax.lax.Precision.HIGHEST)

    def ln(v, a, b):
        mean = v.mean(-1, keepdims=True)
        c = v - mean
        std = jnp.sqrt((c * c).sum(-1, keepdims=True) / (D - 1))
        return a * c / (std + eps) + b

    xn = ln(x, params["ln1_a"][0], params["ln1_b"][0])
    q = jnp.matmul(xn, params["wq"], **hp) + params["bq"][0]
    k = jnp.matmul(xn, params["wk"], **hp) + params["bk"][0]
    v = jnp.matmul(xn, params["wv"], **hp) + params["bv"][0]
    qh = q.reshape(B, S, n_heads, d_k).transpose(0, 2, 1, 3)
    kh = k.reshape(B, S, n_heads, d_k).transpose(0, 2, 1, 3)
    vh = v.reshape(B, S, n_heads, d_k).transpose(0, 2, 1, 3)
    s = jnp.einsum("bhqd,bhkd->bhqk", qh, kh, **hp) / math.sqrt(d_k)
    p = jax.nn.softmax(s, axis=-1)
    o = jnp.einsum("bhqk,bhkd->bhqd", p, vh, **hp)
    o = o.transpose(0, 2, 1, 3).reshape(B, S, D)
    o = jnp.matmul(o, params["wo"], **hp) + params["bo"][0]
    x = x + o
    xn2 = ln(x, params["ln2_a"][0], params["ln2_b"][0])
    h1 = jnp.maximum(jnp.matmul(xn2, params["w1"], **hp) + params["b1"][0], 0.0)
    ff = jnp.matmul(h1, params["w2"], **hp) + params["b2"][0]
    return x + ff


def make_params(key, d_model, d_ff):
    ks = jax.random.split(key, 8)
    w = lambda k, shape: (0.05 * jax.random.normal(k, shape)).astype(jnp.float32)
    return {
        "wq": w(ks[0], (d_model, d_model)), "bq": w(ks[1], (1, d_model)),
        "wk": w(ks[2], (d_model, d_model)), "bk": w(ks[3], (1, d_model)),
        "wv": w(ks[4], (d_model, d_model)), "bv": w(ks[5], (1, d_model)),
        "wo": w(ks[6], (d_model, d_model)), "bo": jnp.zeros((1, d_model), jnp.float32),
        "ln1_a": jnp.ones((1, d_model), jnp.float32), "ln1_b": jnp.zeros((1, d_model), jnp.float32),
        "ln2_a": jnp.ones((1, d_model), jnp.float32), "ln2_b": jnp.zeros((1, d_model), jnp.float32),
        "w1": w(ks[7], (d_model, d_ff)), "b1": jnp.zeros((1, d_ff), jnp.float32),
        "w2": w(jax.random.fold_in(key, 99), (d_ff, d_model)), "b2": jnp.zeros((1, d_model), jnp.float32),
    }


if __name__ == "__main__":
    # MultiHeadedAttention(6, 300) is hard-coded in the module -> d_model = 300, 6 heads.
    B, S, D, H, DFF = 2, 8, 300, 6, 64
    key = jax.random.PRNGKey(0)
    kx, kp = jax.random.split(key)

    x = jax.random.normal(kx, (B, S, D), dtype=jnp.float32)
    params = make_params(kp, D, DFF)

    y_ref = reference(x, params, n_heads=H)

    run = jax.jit(functools.partial(encoder_layer, n_heads=H))

    # f32-operand path: tight check of the kernel math (head/D/DFF padding + approx recips).
    prepped32 = prepare_params(params, n_heads=H, compute_dtype=jnp.float32)
    y32 = jax.block_until_ready(run(x, prepped32))
    err32 = float(jnp.max(jnp.abs(y32 - y_ref)))
    if not err32 < 1e-2:
        raise AssertionError(f"f32 kernel/reference mismatch, max abs err = {err32}")

    # bf16-operand fast path (default, full-rate MXU on v6e/v7x); f32 accumulation, looser tol.
    preppedbf = prepare_params(params, n_heads=H, compute_dtype=jnp.bfloat16)
    ybf = jax.block_until_ready(run(x, preppedbf))
    errbf = float(jnp.max(jnp.abs(ybf - y_ref)))
    if not errbf < 1e-1:
        raise AssertionError(f"bf16 kernel/reference mismatch, max abs err = {errbf}")

    # TODO(synk): nn.Dropout is treated as identity (eval/inference semantics).
    print("KERNEL_OK")
</pallas_src>

<mosaic_0001>
module attributes {stable_mosaic.version = 11 : i64} {
  func.func @_encoder_layer_kernel(%arg0: i32, %arg1: memref<16x384xf32, #tpu.memory_space<vmem>>, %arg2: memref<384x2304xf32, #tpu.memory_space<vmem>>, %arg3: memref<1x2304xf32, #tpu.memory_space<vmem>>, %arg4: memref<768x384xf32, #tpu.memory_space<vmem>>, %arg5: memref<1x384xf32, #tpu.memory_space<vmem>>, %arg6: memref<1x384xf32, #tpu.memory_space<vmem>>, %arg7: memref<1x384xf32, #tpu.memory_space<vmem>>, %arg8: memref<1x384xf32, #tpu.memory_space<vmem>>, %arg9: memref<1x384xf32, #tpu.memory_space<vmem>>, %arg10: memref<384x128xf32, #tpu.memory_space<vmem>>, %arg11: memref<1x128xf32, #tpu.memory_space<vmem>>, %arg12: memref<128x384xf32, #tpu.memory_space<vmem>>, %arg13: memref<1x384xf32, #tpu.memory_space<vmem>>, %arg14: memref<16x384xf32, #tpu.memory_space<vmem>>) attributes {dimension_semantics = [#tpu.dimension_semantics<parallel>], iteration_bounds = array<i64: 1>, scalar_prefetch = 0 : i64, scratch_operands = 0 : i64, tpu.core_type = #tpu.core_type<tc>, window_params = [{transform_indices = @transform_0, window_bounds = array<i64: 16, 384>}, {pipeline_mode = #tpu.pipeline_mode<synchronous>, transform_indices = @transform_1, window_bounds = array<i64: 384, 2304>}, {pipeline_mode = #tpu.pipeline_mode<synchronous>, transform_indices = @transform_2, window_bounds = array<i64: 1, 2304>}, {pipeline_mode = #tpu.pipeline_mode<synchronous>, transform_indices = @transform_3, window_bounds = array<i64: 768, 384>}, {pipeline_mode = #tpu.pipeline_mode<synchronous>, transform_indices = @transform_4, window_bounds = array<i64: 1, 384>}, {pipeline_mode = #tpu.pipeline_mode<synchronous>, transform_indices = @transform_5, window_bounds = array<i64: 1, 384>}, {pipeline_mode = #tpu.pipeline_mode<synchronous>, transform_indices = @transform_6, window_bounds = array<i64: 1, 384>}, {pipeline_mode = #tpu.pipeline_mode<synchronous>, transform_indices = @transform_7, window_bounds = array<i64: 1, 384>}, {pipeline_mode = #tpu.pipeline_mode<synchronous>, transform_indices = @transform_8, window_bounds = array<i64: 1, 384>}, {pipeline_mode = #tpu.pipeline_mode<synchronous>, transform_indices = @transform_9, window_bounds = array<i64: 384, 128>}, {pipeline_mode = #tpu.pipeline_mode<synchronous>, transform_indices = @transform_10, window_bounds = array<i64: 1, 128>}, {pipeline_mode = #tpu.pipeline_mode<synchronous>, transform_indices = @transform_11, window_bounds = array<i64: 128, 384>}, {pipeline_mode = #tpu.pipeline_mode<synchronous>, transform_indices = @transform_12, window_bounds = array<i64: 1, 384>}, {transform_indices = @transform_13, window_bounds = array<i64: 16, 384>}]} {
    %c0 = arith.constant 0 : index
    %c0_0 = arith.constant 0 : index
    %0 = vector.load %arg1[%c0, %c0_0] : memref<16x384xf32, #tpu.memory_space<vmem>>, vector<16x384xf32>
    %c0_1 = arith.constant 0 : index
    %c0_2 = arith.constant 0 : index
    %1 = vector.load %arg3[%c0_1, %c0_2] : memref<1x2304xf32, #tpu.memory_space<vmem>>, vector<1x2304xf32>
    %c0_3 = arith.constant 0 : index
    %c0_4 = arith.constant 0 : index
    %2 = vector.load %arg5[%c0_3, %c0_4] : memref<1x384xf32, #tpu.memory_space<vmem>>, vector<1x384xf32>
    %c0_5 = arith.constant 0 : index
    %c0_6 = arith.constant 0 : index
    %3 = vector.load %arg11[%c0_5, %c0_6] : memref<1x128xf32, #tpu.memory_space<vmem>>, vector<1x128xf32>
    %c0_7 = arith.constant 0 : index
    %c0_8 = arith.constant 0 : index
    %4 = vector.load %arg13[%c0_7, %c0_8] : memref<1x384xf32, #tpu.memory_space<vmem>>, vector<1x384xf32>
    %c0_9 = arith.constant 0 : index
    %c0_10 = arith.constant 0 : index
    %5 = vector.load %arg6[%c0_9, %c0_10] : memref<1x384xf32, #tpu.memory_space<vmem>>, vector<1x384xf32>
    %c0_11 = arith.constant 0 : index
    %c0_12 = arith.constant 0 : index
    %6 = vector.load %arg7[%c0_11, %c0_12] : memref<1x384xf32, #tpu.memory_space<vmem>>, vector<1x384xf32>
    %c0_13 = arith.constant 0 : index
    %c0_14 = arith.constant 0 : index
    %7 = vector.load %arg8[%c0_13, %c0_14] : memref<1x384xf32, #tpu.memory_space<vmem>>, vector<1x384xf32>
    %c0_15 = arith.constant 0 : index
    %c0_16 = arith.constant 0 : index
    %8 = vector.load %arg9[%c0_15, %c0_16] : memref<1x384xf32, #tpu.memory_space<vmem>>, vector<1x384xf32>
    %9 = tpu.iota {dimensions = array<i32: 1>} : vector<1x384xi32>
    %c300_i32 = arith.constant 300 : i32
    %10 = vector.broadcast %c300_i32 : i32 to vector<1x384xi32>
    %11 = arith.cmpi slt, %9, %10 : vector<1x384xi32>
    %12 = arith.extui %11 : vector<1x384xi1> to vector<1x384xi32>
    %13 = arith.sitofp %12 : vector<1x384xi32> to vector<1x384xf32>
    %cst = arith.constant dense<0.000000e+00> : vector<16xf32>
    %14 = vector.multi_reduction <add>, %0, %cst [1] : vector<16x384xf32> to vector<16xf32>
    %15 = vector.shape_cast %14 : vector<16xf32> to vector<16x1xf32>
    %cst_17 = arith.constant 0.00333333341 : f32
    %16 = vector.broadcast %cst_17 : f32 to vector<16x1xf32>
    %17 = arith.mulf %15, %16 : vector<16x1xf32>
    %18 = vector.broadcast %17 : vector<16x1xf32> to vector<16x384xf32>
    %19 = arith.subf %0, %18 : vector<16x384xf32>
    %20 = vector.broadcast %13 : vector<1x384xf32> to vector<16x384xf32>
    %21 = arith.mulf %19, %20 : vector<16x384xf32>
    %22 = arith.mulf %21, %21 : vector<16x384xf32>
    %cst_18 = arith.constant dense<0.000000e+00> : vector<16xf32>
    %23 = vector.multi_reduction <add>, %22, %cst_18 [1] : vector<16x384xf32> to vector<16xf32>
    %24 = vector.shape_cast %23 : vector<16xf32> to vector<16x1xf32>
    %cst_19 = arith.constant 0.00334448158 : f32
    %25 = vector.broadcast %cst_19 : f32 to vector<16x1xf32>
    %26 = arith.mulf %24, %25 : vector<16x1xf32>
    %27 = math.sqrt %26 : vector<16x1xf32>
    %cst_20 = arith.constant 9.99999997E-7 : f32
    %28 = vector.broadcast %cst_20 : f32 to vector<16x1xf32>
    %29 = arith.addf %27, %28 : vector<16x1xf32>
    %30 = tpu.reciprocal %29 {approx = true} : vector<16x1xf32> -> vector<16x1xf32>
    %31 = vector.broadcast %5 : vector<1x384xf32> to vector<16x384xf32>
    %32 = arith.mulf %31, %21 : vector<16x384xf32>
    %33 = vector.broadcast %30 : vector<16x1xf32> to vector<16x384xf32>
    %34 = arith.mulf %32, %33 : vector<16x384xf32>
    %35 = vector.broadcast %6 : vector<1x384xf32> to vector<16x384xf32>
    %36 = arith.addf %34, %35 : vector<16x384xf32>
    %c0_21 = arith.constant 0 : index
    %c0_22 = arith.constant 0 : index
    %37 = vector.load %arg2[%c0_21, %c0_22] : memref<384x2304xf32, #tpu.memory_space<vmem>>, vector<384x2304xf32>
    %cst_23 = arith.constant dense<0.000000e+00> : vector<16x2304xf32>
    %38 = tpu.matmul %36, %37, %cst_23 {dimension_numbers = #tpu.dot_dimension_numbers<[1], [0], [0], [1], [0, 0, 1, 1], [], []>} : vector<16x384xf32>, vector<384x2304xf32>, vector<16x2304xf32> -> vector<16x2304xf32>
    %39 = vector.broadcast %1 : vector<1x2304xf32> to vector<16x2304xf32>
    %40 = arith.addf %38, %39 : vector<16x2304xf32>
    %41 = vector.extract_strided_slice %40 {offsets = [0, 0], sizes = [8, 128], strides = [1, 1]} : vector<16x2304xf32> to vector<8x128xf32>
    %42 = vector.extract_strided_slice %40 {offsets = [0, 768], sizes = [8, 128], strides = [1, 1]} : vector<16x2304xf32> to vector<8x128xf32>
    %43 = vector.extract_strided_slice %40 {offsets = [0, 1536], sizes = [8, 128], strides = [1, 1]} : vector<16x2304xf32> to vector<8x128xf32>
    %cst_24 = arith.constant dense<0.000000e+00> : vector<8x8xf32>
    %44 = tpu.matmul %41, %42, %cst_24 {dimension_numbers = #tpu.dot_dimension_numbers<[1], [1], [0], [0], [0, 0, 1, 0], [], []>} : vector<8x128xf32>, vector<8x128xf32>, vector<8x8xf32> -> vector<8x8xf32>
    %cst_25 = arith.constant 0.141421363 : f32
    %45 = vector.broadcast %cst_25 : f32 to vector<8x8xf32>
    %46 = arith.mulf %44, %45 : vector<8x8xf32>
    %cst_26 = arith.constant dense<0xFF800000> : vector<8xf32>
    %47 = vector.multi_reduction <maximumf>, %46, %cst_26 [1] : vector<8x8xf32> to vector<8xf32>
    %48 = vector.shape_cast %47 : vector<8xf32> to vector<8x1xf32>
    %49 = vector.broadcast %48 : vector<8x1xf32> to vector<8x8xf32>
    %50 = arith.subf %46, %49 : vector<8x8xf32>
    %51 = math.exp %50 : vector<8x8xf32>
    %cst_27 = arith.constant dense<0.000000e+00> : vector<8xf32>
    %52 = vector.multi_reduction <add>, %51, %cst_27 [1] : vector<8x8xf32> to vector<8xf32>
    %53 = vector.shape_cast %52 : vector<8xf32> to vector<8x1xf32>
    %54 = tpu.reciprocal %53 {approx = true} : vector<8x1xf32> -> vector<8x1xf32>
    %55 = vector.broadcast %54 : vector<8x1xf32> to vector<8x8xf32>
    %56 = arith.mulf %51, %55 : vector<8x8xf32>
    %cst_28 = arith.constant dense<0.000000e+00> : vector<8x128xf32>
    %57 = tpu.matmul %56, %43, %cst_28 {dimension_numbers = #tpu.dot_dimension_numbers<[1], [0], [0], [1], [0, 0, 1, 1], [], []>} : vector<8x8xf32>, vector<8x128xf32>, vector<8x128xf32> -> vector<8x128xf32>
    %58 = vector.extract_strided_slice %40 {offsets = [0, 128], sizes = [8, 128], strides = [1, 1]} : vector<16x2304xf32> to vector<8x128xf32>
    %59 = vector.extract_strided_slice %40 {offsets = [0, 896], sizes = [8, 128], strides = [1, 1]} : vector<16x2304xf32> to vector<8x128xf32>
    %60 = vector.extract_strided_slice %40 {offsets = [0, 1664], sizes = [8, 128], strides = [1, 1]} : vector<16x2304xf32> to vector<8x128xf32>
    %cst_29 = arith.constant dense<0.000000e+00> : vector<8x8xf32>
    %61 = tpu.matmul %58, %59, %cst_29 {dimension_numbers = #tpu.dot_dimension_numbers<[1], [1], [0], [0], [0, 0, 1, 0], [], []>} : vector<8x128xf32>, vector<8x128xf32>, vector<8x8xf32> -> vector<8x8xf32>
    %cst_30 = arith.constant 0.141421363 : f32
    %62 = vector.broadcast %cst_30 : f32 to vector<8x8xf32>
    %63 = arith.mulf %61, %62 : vector<8x8xf32>
    %cst_31 = arith.constant dense<0xFF800000> : vector<8xf32>
    %64 = vector.multi_reduction <maximumf>, %63, %cst_31 [1] : vector<8x8xf32> to vector<8xf32>
    %65 = vector.shape_cast %64 : vector<8xf32> to vector<8x1xf32>
    %66 = vector.broadcast %65 : vector<8x1xf32> to vector<8x8xf32>
    %67 = arith.subf %63, %66 : vector<8x8xf32>
    %68 = math.exp %67 : vector<8x8xf32>
    %cst_32 = arith.constant dense<0.000000e+00> : vector<8xf32>
    %69 = vector.multi_reduction <add>, %68, %cst_32 [1] : vector<8x8xf32> to vector<8xf32>
    %70 = vector.shape_cast %69 : vector<8xf32> to vector<8x1xf32>
    %71 = tpu.reciprocal %70 {approx = true} : vector<8x1xf32> -> vector<8x1xf32>
    %72 = vector.broadcast %71 : vector<8x1xf32> to vector<8x8xf32>
    %73 = arith.mulf %68, %72 : vector<8x8xf32>
    %cst_33 = arith.constant dense<0.000000e+00> : vector<8x128xf32>
    %74 = tpu.matmul %73, %60, %cst_33 {dimension_numbers = #tpu.dot_dimension_numbers<[1], [0], [0], [1], [0, 0, 1, 1], [], []>} : vector<8x8xf32>, vector<8x128xf32>, vector<8x128xf32> -> vector<8x128xf32>
    %75 = vector.extract_strided_slice %40 {offsets = [0, 256], sizes = [8, 128], strides = [1, 1]} : vector<16x2304xf32> to vector<8x128xf32>
    %76 = vector.extract_strided_slice %40 {offsets = [0, 1024], sizes = [8, 128], strides = [1, 1]} : vector<16x2304xf32> to vector<8x128xf32>
    %77 = vector.extract_strided_slice %40 {offsets = [0, 1792], sizes = [8, 128], strides = [1, 1]} : vector<16x2304xf32> to vector<8x128xf32>
    %cst_34 = arith.constant dense<0.000000e+00> : vector<8x8xf32>
    %78 = tpu.matmul %75, %76, %cst_34 {dimension_numbers = #tpu.dot_dimension_numbers<[1], [1], [0], [0], [0, 0, 1, 0], [], []>} : vector<8x128xf32>, vector<8x128xf32>, vector<8x8xf32> -> vector<8x8xf32>
    %cst_35 = arith.constant 0.141421363 : f32
    %79 = vector.broadcast %cst_35 : f32 to vector<8x8xf32>
    %80 = arith.mulf %78, %79 : vector<8x8xf32>
    %cst_36 = arith.constant dense<0xFF800000> : vector<8xf32>
    %81 = vector.multi_reduction <maximumf>, %80, %cst_36 [1] : vector<8x8xf32> to vector<8xf32>
    %82 = vector.shape_cast %81 : vector<8xf32> to vector<8x1xf32>
    %83 = vector.broadcast %82 : vector<8x1xf32> to vector<8x8xf32>
    %84 = arith.subf %80, %83 : vector<8x8xf32>
    %85 = math.exp %84 : vector<8x8xf32>
    %cst_37 = arith.constant dense<0.000000e+00> : vector<8xf32>
    %86 = vector.multi_reduction <add>, %85, %cst_37 [1] : vector<8x8xf32> to vector<8xf32>
    %87 = vector.shape_cast %86 : vector<8xf32> to vector<8x1xf32>
    %88 = tpu.reciprocal %87 {approx = true} : vector<8x1xf32> -> vector<8x1xf32>
    %89 = vector.broadcast %88 : vector<8x1xf32> to vector<8x8xf32>
    %90 = arith.mulf %85, %89 : vector<8x8xf32>
    %cst_38 = arith.constant dense<0.000000e+00> : vector<8x128xf32>
    %91 = tpu.matmul %90, %77, %cst_38 {dimension_numbers = #tpu.dot_dimension_numbers<[1], [0], [0], [1], [0, 0, 1, 1], [], []>} : vector<8x8xf32>, vector<8x128xf32>, vector<8x128xf32> -> vector<8x128xf32>
    %92 = vector.extract_strided_slice %40 {offsets = [0, 384], sizes = [8, 128], strides = [1, 1]} : vector<16x2304xf32> to vector<8x128xf32>
    %93 = vector.extract_strided_slice %40 {offsets = [0, 1152], sizes = [8, 128], strides = [1, 1]} : vector<16x2304xf32> to vector<8x128xf32>
    %94 = vector.extract_strided_slice %40 {offsets = [0, 1920], sizes = [8, 128], strides = [1, 1]} : vector<16x2304xf32> to vector<8x128xf32>
    %cst_39 = arith.constant dense<0.000000e+00> : vector<8x8xf32>
    %95 = tpu.matmul %92, %93, %cst_39 {dimension_numbers = #tpu.dot_dimension_numbers<[1], [1], [0], [0], [0, 0, 1, 0], [], []>} : vector<8x128xf32>, vector<8x128xf32>, vector<8x8xf32> -> vector<8x8xf32>
    %cst_40 = arith.constant 0.141421363 : f32
    %96 = vector.broadcast %cst_40 : f32 to vector<8x8xf32>
    %97 = arith.mulf %95, %96 : vector<8x8xf32>
    %cst_41 = arith.constant dense<0xFF800000> : vector<8xf32>
    %98 = vector.multi_reduction <maximumf>, %97, %cst_41 [1] : vector<8x8xf32> to vector<8xf32>
    %99 = vector.shape_cast %98 : vector<8xf32> to vector<8x1xf32>
    %100 = vector.broadcast %99 : vector<8x1xf32> to vector<8x8xf32>
    %101 = arith.subf %97, %100 : vector<8x8xf32>
    %102 = math.exp %101 : vector<8x8xf32>
    %cst_42 = arith.constant dense<0.000000e+00> : vector<8xf32>
    %103 = vector.multi_reduction <add>, %102, %cst_42 [1] : vector<8x8xf32> to vector<8xf32>
    %104 = vector.shape_cast %103 : vector<8xf32> to vector<8x1xf32>
    %105 = tpu.reciprocal %104 {approx = true} : vector<8x1xf32> -> vector<8x1xf32>
    %106 = vector.broadcast %105 : vector<8x1xf32> to vector<8x8xf32>
    %107 = arith.mulf %102, %106 : vector<8x8xf32>
    %cst_43 = arith.constant dense<0.000000e+00> : vector<8x128xf32>
    %108 = tpu.matmul %107, %94, %cst_43 {dimension_numbers = #tpu.dot_dimension_numbers<[1], [0], [0], [1], [0, 0, 1, 1], [], []>} : vector<8x8xf32>, vector<8x128xf32>, vector<8x128xf32> -> vector<8x128xf32>
    %109 = vector.extract_strided_slice %40 {offsets = [0, 512], sizes = [8, 128], strides = [1, 1]} : vector<16x2304xf32> to vector<8x128xf32>
    %110 = vector.extract_strided_slice %40 {offsets = [0, 1280], sizes = [8, 128], strides = [1, 1]} : vector<16x2304xf32> to vector<8x128xf32>
    %111 = vector.extract_strided_slice %40 {offsets = [0, 2048], sizes = [8, 128], strides = [1, 1]} : vector<16x2304xf32> to vector<8x128xf32>
    %cst_44 = arith.constant dense<0.000000e+00> : vector<8x8xf32>
    %112 = tpu.matmul %109, %110, %cst_44 {dimension_numbers = #tpu.dot_dimension_numbers<[1], [1], [0], [0], [0, 0, 1, 0], [], []>} : vector<8x128xf32>, vector<8x128xf32>, vector<8x8xf32> -> vector<8x8xf32>
    %cst_45 = arith.constant 0.141421363 : f32
    %113 = vector.broadcast %cst_45 : f32 to vector<8x8xf32>
    %114 = arith.mulf %112, %113 : vector<8x8xf32>
    %cst_46 = arith.constant dense<0xFF800000> : vector<8xf32>
    %115 = vector.multi_reduction <maximumf>, %114, %cst_46 [1] : vector<8x8xf32> to vector<8xf32>
    %116 = vector.shape_cast %115 : vector<8xf32> to vector<8x1xf32>
    %117 = vector.broadcast %116 : vector<8x1xf32> to vector<8x8xf32>
    %118 = arith.subf %114, %117 : vector<8x8xf32>
    %119 = math.exp %118 : vector<8x8xf32>
    %cst_47 = arith.constant dense<0.000000e+00> : vector<8xf32>
    %120 = vector.multi_reduction <add>, %119, %cst_47 [1] : vector<8x8xf32> to vector<8xf32>
    %121 = vector.shape_cast %120 : vector<8xf32> to vector<8x1xf32>
    %122 = tpu.reciprocal %121 {approx = true} : vector<8x1xf32> -> vector<8x1xf32>
    %123 = vector.broadcast %122 : vector<8x1xf32> to vector<8x8xf32>
    %124 = arith.mulf %119, %123 : vector<8x8xf32>
    %cst_48 = arith.constant dense<0.000000e+00> : vector<8x128xf32>
    %125 = tpu.matmul %124, %111, %cst_48 {dimension_numbers = #tpu.dot_dimension_numbers<[1], [0], [0], [1], [0, 0, 1, 1], [], []>} : vector<8x8xf32>, vector<8x128xf32>, vector<8x128xf32> -> vector<8x128xf32>
    %126 = vector.extract_strided_slice %40 {offsets = [0, 640], sizes = [8, 128], strides = [1, 1]} : vector<16x2304xf32> to vector<8x128xf32>
    %127 = vector.extract_strided_slice %40 {offsets = [0, 1408], sizes = [8, 128], strides = [1, 1]} : vector<16x2304xf32> to vector<8x128xf32>
    %128 = vector.extract_strided_slice %40 {offsets = [0, 2176], sizes = [8, 128], strides = [1, 1]} : vector<16x2304xf32> to vector<8x128xf32>
    %cst_49 = arith.constant dense<0.000000e+00> : vector<8x8xf32>
    %129 = tpu.matmul %126, %127, %cst_49 {dimension_numbers = #tpu.dot_dimension_numbers<[1], [1], [0], [0], [0, 0, 1, 0], [], []>} : vector<8x128xf32>, vector<8x128xf32>, vector<8x8xf32> -> vector<8x8xf32>
    %cst_50 = arith.constant 0.141421363 : f32
    %130 = vector.broadcast %cst_50 : f32 to vector<8x8xf32>
    %131 = arith.mulf %129, %130 : vector<8x8xf32>
    %cst_51 = arith.constant dense<0xFF800000> : vector<8xf32>
    %132 = vector.multi_reduction <maximumf>, %131, %cst_51 [1] : vector<8x8xf32> to vector<8xf32>
    %133 = vector.shape_cast %132 : vector<8xf32> to vector<8x1xf32>
    %134 = vector.broadcast %133 : vector<8x1xf32> to vector<8x8xf32>
    %135 = arith.subf %131, %134 : vector<8x8xf32>
    %136 = math.exp %135 : vector<8x8xf32>
    %cst_52 = arith.constant dense<0.000000e+00> : vector<8xf32>
    %137 = vector.multi_reduction <add>, %136, %cst_52 [1] : vector<8x8xf32> to vector<8xf32>
    %138 = vector.shape_cast %137 : vector<8xf32> to vector<8x1xf32>
    %139 = tpu.reciprocal %138 {approx = true} : vector<8x1xf32> -> vector<8x1xf32>
    %140 = vector.broadcast %139 : vector<8x1xf32> to vector<8x8xf32>
    %141 = arith.mulf %136, %140 : vector<8x8xf32>
    %cst_53 = arith.constant dense<0.000000e+00> : vector<8x128xf32>
    %142 = tpu.matmul %141, %128, %cst_53 {dimension_numbers = #tpu.dot_dimension_numbers<[1], [0], [0], [1], [0, 0, 1, 1], [], []>} : vector<8x8xf32>, vector<8x128xf32>, vector<8x128xf32> -> vector<8x128xf32>
    %143 = tpu.concatenate %57, %74, %91, %108, %125, %142 in 1 : vector<8x128xf32>, vector<8x128xf32>, vector<8x128xf32>, vector<8x128xf32>, vector<8x128xf32>, vector<8x128xf32> -> vector<8x768xf32>
    %144 = vector.extract_strided_slice %40 {offsets = [8, 0], sizes = [8, 128], strides = [1, 1]} : vector<16x2304xf32> to vector<8x128xf32>
    %145 = vector.extract_strided_slice %40 {offsets = [8, 768], sizes = [8, 128], strides = [1, 1]} : vector<16x2304xf32> to vector<8x128xf32>
    %146 = vector.extract_strided_slice %40 {offsets = [8, 1536], sizes = [8, 128], strides = [1, 1]} : vector<16x2304xf32> to vector<8x128xf32>
    %cst_54 = arith.constant dense<0.000000e+00> : vector<8x8xf32>
    %147 = tpu.matmul %144, %145, %cst_54 {dimension_numbers = #tpu.dot_dimension_numbers<[1], [1], [0], [0], [0, 0, 1, 0], [], []>} : vector<8x128xf32>, vector<8x128xf32>, vector<8x8xf32> -> vector<8x8xf32>
    %cst_55 = arith.constant 0.141421363 : f32
    %148 = vector.broadcast %cst_55 : f32 to vector<8x8xf32>
    %149 = arith.mulf %147, %148 : vector<8x8xf32>
    %cst_56 = arith.constant dense<0xFF800000> : vector<8xf32>
    %150 = vector.multi_reduction <maximumf>, %149, %cst_56 [1] : vector<8x8xf32> to vector<8xf32>
    %151 = vector.shape_cast %150 : vector<8xf32> to vector<8x1xf32>
    %152 = vector.broadcast %151 : vector<8x1xf32> to vector<8x8xf32>
    %153 = arith.subf %149, %152 : vector<8x8xf32>
    %154 = math.exp %153 : vector<8x8xf32>
    %cst_57 = arith.constant dense<0.000000e+00> : vector<8xf32>
    %155 = vector.multi_reduction <add>, %154, %cst_57 [1] : vector<8x8xf32> to vector<8xf32>
    %156 = vector.shape_cast %155 : vector<8xf32> to vector<8x1xf32>
    %157 = tpu.reciprocal %156 {approx = true} : vector<8x1xf32> -> vector<8x1xf32>
    %158 = vector.broadcast %157 : vector<8x1xf32> to vector<8x8xf32>
    %159 = arith.mulf %154, %158 : vector<8x8xf32>
    %cst_58 = arith.constant dense<0.000000e+00> : vector<8x128xf32>
    %160 = tpu.matmul %159, %146, %cst_58 {dimension_numbers = #tpu.dot_dimension_numbers<[1], [0], [0], [1], [0, 0, 1, 1], [], []>} : vector<8x8xf32>, vector<8x128xf32>, vector<8x128xf32> -> vector<8x128xf32>
    %161 = vector.extract_strided_slice %40 {offsets = [8, 128], sizes = [8, 128], strides = [1, 1]} : vector<16x2304xf32> to vector<8x128xf32>
    %162 = vector.extract_strided_slice %40 {offsets = [8, 896], sizes = [8, 128], strides = [1, 1]} : vector<16x2304xf32> to vector<8x128xf32>
    %163 = vector.extract_strided_slice %40 {offsets = [8, 1664], sizes = [8, 128], strides = [1, 1]} : vector<16x2304xf32> to vector<8x128xf32>
    %cst_59 = arith.constant dense<0.000000e+00> : vector<8x8xf32>
    %164 = tpu.matmul %161, %162, %cst_59 {dimension_numbers = #tpu.dot_dimension_numbers<[1], [1], [0], [0], [0, 0, 1, 0], [], []>} : vector<8x128xf32>, vector<8x128xf32>, vector<8x8xf32> -> vector<8x8xf32>
    %cst_60 = arith.constant 0.141421363 : f32
    %165 = vector.broadcast %cst_60 : f32 to vector<8x8xf32>
    %166 = arith.mulf %164, %165 : vector<8x8xf32>
    %cst_61 = arith.constant dense<0xFF800000> : vector<8xf32>
    %167 = vector.multi_reduction <maximumf>, %166, %cst_61 [1] : vector<8x8xf32> to vector<8xf32>
    %168 = vector.shape_cast %167 : vector<8xf32> to vector<8x1xf32>
    %169 = vector.broadcast %168 : vector<8x1xf32> to vector<8x8xf32>
    %170 = arith.subf %166, %169 : vector<8x8xf32>
    %171 = math.exp %170 : vector<8x8xf32>
    %cst_62 = arith.constant dense<0.000000e+00> : vector<8xf32>
    %172 = vector.multi_reduction <add>, %171, %cst_62 [1] : vector<8x8xf32> to vector<8xf32>
    %173 = vector.shape_cast %172 : vector<8xf32> to vector<8x1xf32>
    %174 = tpu.reciprocal %173 {approx = true} : vector<8x1xf32> -> vector<8x1xf32>
    %175 = vector.broadcast %174 : vector<8x1xf32> to vector<8x8xf32>
    %176 = arith.mulf %171, %175 : vector<8x8xf32>
    %cst_63 = arith.constant dense<0.000000e+00> : vector<8x128xf32>
    %177 = tpu.matmul %176, %163, %cst_63 {dimension_numbers = #tpu.dot_dimension_numbers<[1], [0], [0], [1], [0, 0, 1, 1], [], []>} : vector<8x8xf32>, vector<8x128xf32>, vector<8x128xf32> -> vector<8x128xf32>
    %178 = vector.extract_strided_slice %40 {offsets = [8, 256], sizes = [8, 128], strides = [1, 1]} : vector<16x2304xf32> to vector<8x128xf32>
    %179 = vector.extract_strided_slice %40 {offsets = [8, 1024], sizes = [8, 128], strides = [1, 1]} : vector<16x2304xf32> to vector<8x128xf32>
    %180 = vector.extract_strided_slice %40 {offsets = [8, 1792], sizes = [8, 128], strides = [1, 1]} : vector<16x2304xf32> to vector<8x128xf32>
    %cst_64 = arith.constant dense<0.000000e+00> : vector<8x8xf32>
    %181 = tpu.matmul %178, %179, %cst_64 {dimension_numbers = #tpu.dot_dimension_numbers<[1], [1], [0], [0], [0, 0, 1, 0], [], []>} : vector<8x128xf32>, vector<8x128xf32>, vector<8x8xf32> -> vector<8x8xf32>
    %cst_65 = arith.constant 0.141421363 : f32
    %182 = vector.broadcast %cst_65 : f32 to vector<8x8xf32>
    %183 = arith.mulf %181, %182 : vector<8x8xf32>
    %cst_66 = arith.constant dense<0xFF800000> : vector<8xf32>
    %184 = vector.multi_reduction <maximumf>, %183, %cst_66 [1] : vector<8x8xf32> to vector<8xf32>
    %185 = vector.shape_cast %184 : vector<8xf32> to vector<8x1xf32>
    %186 = vector.broadcast %185 : vector<8x1xf32> to vector<8x8xf32>
    %187 = arith.subf %183, %186 : vector<8x8xf32>
    %188 = math.exp %187 : vector<8x8xf32>
    %cst_67 = arith.constant dense<0.000000e+00> : vector<8xf32>
    %189 = vector.multi_reduction <add>, %188, %cst_67 [1] : vector<8x8xf32> to vector<8xf32>
    %190 = vector.shape_cast %189 : vector<8xf32> to vector<8x1xf32>
    %191 = tpu.reciprocal %190 {approx = true} : vector<8x1xf32> -> vector<8x1xf32>
    %192 = vector.broadcast %191 : vector<8x1xf32> to vector<8x8xf32>
    %193 = arith.mulf %188, %192 : vector<8x8xf32>
    %cst_68 = arith.constant dense<0.000000e+00> : vector<8x128xf32>
    %194 = tpu.matmul %193, %180, %cst_68 {dimension_numbers = #tpu.dot_dimension_numbers<[1], [0], [0], [1], [0, 0, 1, 1], [], []>} : vector<8x8xf32>, vector<8x128xf32>, vector<8x128xf32> -> vector<8x128xf32>
    %195 = vector.extract_strided_slice %40 {offsets = [8, 384], sizes = [8, 128], strides = [1, 1]} : vector<16x2304xf32> to vector<8x128xf32>
    %196 = vector.extract_strided_slice %40 {offsets = [8, 1152], sizes = [8, 128], strides = [1, 1]} : vector<16x2304xf32> to vector<8x128xf32>
    %197 = vector.extract_strided_slice %40 {offsets = [8, 1920], sizes = [8, 128], strides = [1, 1]} : vector<16x2304xf32> to vector<8x128xf32>
    %cst_69 = arith.constant dense<0.000000e+00> : vector<8x8xf32>
    %198 = tpu.matmul %195, %196, %cst_69 {dimension_numbers = #tpu.dot_dimension_numbers<[1], [1], [0], [0], [0, 0, 1, 0], [], []>} : vector<8x128xf32>, vector<8x128xf32>, vector<8x8xf32> -> vector<8x8xf32>
    %cst_70 = arith.constant 0.141421363 : f32
    %199 = vector.broadcast %cst_70 : f32 to vector<8x8xf32>
    %200 = arith.mulf %198, %199 : vector<8x8xf32>
    %cst_71 = arith.constant dense<0xFF800000> : vector<8xf32>
    %201 = vector.multi_reduction <maximumf>, %200, %cst_71 [1] : vector<8x8xf32> to vector<8xf32>
    %202 = vector.shape_cast %201 : vector<8xf32> to vector<8x1xf32>
    %203 = vector.broadcast %202 : vector<8x1xf32> to vector<8x8xf32>
    %204 = arith.subf %200, %203 : vector<8x8xf32>
    %205 = math.exp %204 : vector<8x8xf32>
    %cst_72 = arith.constant dense<0.000000e+00> : vector<8xf32>
    %206 = vector.multi_reduction <add>, %205, %cst_72 [1] : vector<8x8xf32> to vector<8xf32>
    %207 = vector.shape_cast %206 : vector<8xf32> to vector<8x1xf32>
    %208 = tpu.reciprocal %207 {approx = true} : vector<8x1xf32> -> vector<8x1xf32>
    %209 = vector.broadcast %208 : vector<8x1xf32> to vector<8x8xf32>
    %210 = arith.mulf %205, %209 : vector<8x8xf32>
    %cst_73 = arith.constant dense<0.000000e+00> : vector<8x128xf32>
    %211 = tpu.matmul %210, %197, %cst_73 {dimension_numbers = #tpu.dot_dimension_numbers<[1], [0], [0], [1], [0, 0, 1, 1], [], []>} : vector<8x8xf32>, vector<8x128xf32>, vector<8x128xf32> -> vector<8x128xf32>
    %212 = vector.extract_strided_slice %40 {offsets = [8, 512], sizes = [8, 128], strides = [1, 1]} : vector<16x2304xf32> to vector<8x128xf32>
    %213 = vector.extract_strided_slice %40 {offsets = [8, 1280], sizes = [8, 128], strides = [1, 1]} : vector<16x2304xf32> to vector<8x128xf32>
    %214 = vector.extract_strided_slice %40 {offsets = [8, 2048], sizes = [8, 128], strides = [1, 1]} : vector<16x2304xf32> to vector<8x128xf32>
    %cst_74 = arith.constant dense<0.000000e+00> : vector<8x8xf32>
    %215 = tpu.matmul %212, %213, %cst_74 {dimension_numbers = #tpu.dot_dimension_numbers<[1], [1], [0], [0], [0, 0, 1, 0], [], []>} : vector<8x128xf32>, vector<8x128xf32>, vector<8x8xf32> -> vector<8x8xf32>
    %cst_75 = arith.constant 0.141421363 : f32
    %216 = vector.broadcast %cst_75 : f32 to vector<8x8xf32>
    %217 = arith.mulf %215, %216 : vector<8x8xf32>
    %cst_76 = arith.constant dense<0xFF800000> : vector<8xf32>
    %218 = vector.multi_reduction <maximumf>, %217, %cst_76 [1] : vector<8x8xf32> to vector<8xf32>
    %219 = vector.shape_cast %218 : vector<8xf32> to vector<8x1xf32>
    %220 = vector.broadcast %219 : vector<8x1xf32> to vector<8x8xf32>
    %221 = arith.subf %217, %220 : vector<8x8xf32>
    %222 = math.exp %221 : vector<8x8xf32>
    %cst_77 = arith.constant dense<0.000000e+00> : vector<8xf32>
    %223 = vector.multi_reduction <add>, %222, %cst_77 [1] : vector<8x8xf32> to vector<8xf32>
    %224 = vector.shape_cast %223 : vector<8xf32> to vector<8x1xf32>
    %225 = tpu.reciprocal %224 {approx = true} : vector<8x1xf32> -> vector<8x1xf32>
    %226 = vector.broadcast %225 : vector<8x1xf32> to vector<8x8xf32>
    %227 = arith.mulf %222, %226 : vector<8x8xf32>
    %cst_78 = arith.constant dense<0.000000e+00> : vector<8x128xf32>
    %228 = tpu.matmul %227, %214, %cst_78 {dimension_numbers = #tpu.dot_dimension_numbers<[1], [0], [0], [1], [0, 0, 1, 1], [], []>} : vector<8x8xf32>, vector<8x128xf32>, vector<8x128xf32> -> vector<8x128xf32>
    %229 = vector.extract_strided_slice %40 {offsets = [8, 640], sizes = [8, 128], strides = [1, 1]} : vector<16x2304xf32> to vector<8x128xf32>
    %230 = vector.extract_strided_slice %40 {offsets = [8, 1408], sizes = [8, 128], strides = [1, 1]} : vector<16x2304xf32> to vector<8x128xf32>
    %231 = vector.extract_strided_slice %40 {offsets = [8, 2176], sizes = [8, 128], strides = [1, 1]} : vector<16x2304xf32> to vector<8x128xf32>
    %cst_79 = arith.constant dense<0.000000e+00> : vector<8x8xf32>
    %232 = tpu.matmul %229, %230, %cst_79 {dimension_numbers = #tpu.dot_dimension_numbers<[1], [1], [0], [0], [0, 0, 1, 0], [], []>} : vector<8x128xf32>, vector<8x128xf32>, vector<8x8xf32> -> vector<8x8xf32>
    %cst_80 = arith.constant 0.141421363 : f32
    %233 = vector.broadcast %cst_80 : f32 to vector<8x8xf32>
    %234 = arith.mulf %232, %233 : vector<8x8xf32>
    %cst_81 = arith.constant dense<0xFF800000> : vector<8xf32>
    %235 = vector.multi_reduction <maximumf>, %234, %cst_81 [1] : vector<8x8xf32> to vector<8xf32>
    %236 = vector.shape_cast %235 : vector<8xf32> to vector<8x1xf32>
    %237 = vector.broadcast %236 : vector<8x1xf32> to vector<8x8xf32>
    %238 = arith.subf %234, %237 : vector<8x8xf32>
    %239 = math.exp %238 : vector<8x8xf32>
    %cst_82 = arith.constant dense<0.000000e+00> : vector<8xf32>
    %240 = vector.multi_reduction <add>, %239, %cst_82 [1] : vector<8x8xf32> to vector<8xf32>
    %241 = vector.shape_cast %240 : vector<8xf32> to vector<8x1xf32>
    %242 = tpu.reciprocal %241 {approx = true} : vector<8x1xf32> -> vector<8x1xf32>
    %243 = vector.broadcast %242 : vector<8x1xf32> to vector<8x8xf32>
    %244 = arith.mulf %239, %243 : vector<8x8xf32>
    %cst_83 = arith.constant dense<0.000000e+00> : vector<8x128xf32>
    %245 = tpu.matmul %244, %231, %cst_83 {dimension_numbers = #tpu.dot_dimension_numbers<[1], [0], [0], [1], [0, 0, 1, 1], [], []>} : vector<8x8xf32>, vector<8x128xf32>, vector<8x128xf32> -> vector<8x128xf32>
    %246 = tpu.concatenate %160, %177, %194, %211, %228, %245 in 1 : vector<8x128xf32>, vector<8x128xf32>, vector<8x128xf32>, vector<8x128xf32>, vector<8x128xf32>, vector<8x128xf32> -> vector<8x768xf32>
    %247 = tpu.concatenate %143, %246 in 0 : vector<8x768xf32>, vector<8x768xf32> -> vector<16x768xf32>
    %c0_84 = arith.constant 0 : index
    %c0_85 = arith.constant 0 : index
    %248 = vector.load %arg4[%c0_84, %c0_85] : memref<768x384xf32, #tpu.memory_space<vmem>>, vector<768x384xf32>
    %cst_86 = arith.constant dense<0.000000e+00> : vector<16x384xf32>
    %249 = tpu.matmul %247, %248, %cst_86 {dimension_numbers = #tpu.dot_dimension_numbers<[1], [0], [0], [1], [0, 0, 1, 1], [], []>} : vector<16x768xf32>, vector<768x384xf32>, vector<16x384xf32> -> vector<16x384xf32>
    %250 = vector.broadcast %2 : vector<1x384xf32> to vector<16x384xf32>
    %251 = arith.addf %249, %250 : vector<16x384xf32>
    %252 = arith.addf %0, %251 : vector<16x384xf32>
    %cst_87 = arith.constant dense<0.000000e+00> : vector<16xf32>
    %253 = vector.multi_reduction <add>, %252, %cst_87 [1] : vector<16x384xf32> to vector<16xf32>
    %254 = vector.shape_cast %253 : vector<16xf32> to vector<16x1xf32>
    %cst_88 = arith.constant 0.00333333341 : f32
    %255 = vector.broadcast %cst_88 : f32 to vector<16x1xf32>
    %256 = arith.mulf %254, %255 : vector<16x1xf32>
    %257 = vector.broadcast %256 : vector<16x1xf32> to vector<16x384xf32>
    %258 = arith.subf %252, %257 : vector<16x384xf32>
    %259 = vector.broadcast %13 : vector<1x384xf32> to vector<16x384xf32>
    %260 = arith.mulf %258, %259 : vector<16x384xf32>
    %261 = arith.mulf %260, %260 : vector<16x384xf32>
    %cst_89 = arith.constant dense<0.000000e+00> : vector<16xf32>
    %262 = vector.multi_reduction <add>, %261, %cst_89 [1] : vector<16x384xf32> to vector<16xf32>
    %263 = vector.shape_cast %262 : vector<16xf32> to vector<16x1xf32>
    %cst_90 = arith.constant 0.00334448158 : f32
    %264 = vector.broadcast %cst_90 : f32 to vector<16x1xf32>
    %265 = arith.mulf %263, %264 : vector<16x1xf32>
    %266 = math.sqrt %265 : vector<16x1xf32>
    %cst_91 = arith.constant 9.99999997E-7 : f32
    %267 = vector.broadcast %cst_91 : f32 to vector<16x1xf32>
    %268 = arith.addf %266, %267 : vector<16x1xf32>
    %269 = tpu.reciprocal %268 {approx = true} : vector<16x1xf32> -> vector<16x1xf32>
    %270 = vector.broadcast %7 : vector<1x384xf32> to vector<16x384xf32>
    %271 = arith.mulf %270, %260 : vector<16x384xf32>
    %272 = vector.broadcast %269 : vector<16x1xf32> to vector<16x384xf32>
    %273 = arith.mulf %271, %272 : vector<16x384xf32>
    %274 = vector.broadcast %8 : vector<1x384xf32> to vector<16x384xf32>
    %275 = arith.addf %273, %274 : vector<16x384xf32>
    %c0_92 = arith.constant 0 : index
    %c0_93 = arith.constant 0 : index
    %276 = vector.load %arg10[%c0_92, %c0_93] : memref<384x128xf32, #tpu.memory_space<vmem>>, vector<384x128xf32>
    %cst_94 = arith.constant dense<0.000000e+00> : vector<16x128xf32>
    %277 = tpu.matmul %275, %276, %cst_94 {dimension_numbers = #tpu.dot_dimension_numbers<[1], [0], [0], [1], [0, 0, 1, 1], [], []>} : vector<16x384xf32>, vector<384x128xf32>, vector<16x128xf32> -> vector<16x128xf32>
    %278 = vector.broadcast %3 : vector<1x128xf32> to vector<16x128xf32>
    %279 = arith.addf %277, %278 : vector<16x128xf32>
    %cst_95 = arith.constant 0.000000e+00 : f32
    %280 = vector.broadcast %cst_95 : f32 to vector<16x128xf32>
    %281 = arith.maximumf %279, %280 : vector<16x128xf32>
    %c0_96 = arith.constant 0 : index
    %c0_97 = arith.constant 0 : index
    %282 = vector.load %arg12[%c0_96, %c0_97] : memref<128x384xf32, #tpu.memory_space<vmem>>, vector<128x384xf32>
    %cst_98 = arith.constant dense<0.000000e+00> : vector<16x384xf32>
    %283 = tpu.matmul %281, %282, %cst_98 {dimension_numbers = #tpu.dot_dimension_numbers<[1], [0], [0], [1], [0, 0, 1, 1], [], []>} : vector<16x128xf32>, vector<128x384xf32>, vector<16x384xf32> -> vector<16x384xf32>
    %284 = vector.broadcast %4 : vector<1x384xf32> to vector<16x384xf32>
    %285 = arith.addf %283, %284 : vector<16x384xf32>
    %286 = arith.addf %252, %285 : vector<16x384xf32>
    %c0_99 = arith.constant 0 : index
    %c0_100 = arith.constant 0 : index
    %287 = vector.load %arg14[%c0_99, %c0_100] : memref<16x384xf32, #tpu.memory_space<vmem>>, vector<16x384xf32>
    tpu.vector_store %arg14[%c0_99, %c0_100], %286 {strides = array<i32>} : memref<16x384xf32, #tpu.memory_space<vmem>>, vector<16x384xf32>,
    return
  }
  func.func @transform_0(%arg0: i32) -> (i32, i32) {
    %c0_i32 = arith.constant 0 : i32
    %c0_i32_0 = arith.constant 0 : i32
    return %arg0, %c0_i32 : i32, i32
  }
  func.func @transform_1(%arg0: i32) -> (i32, i32) {
    %c0_i32 = arith.constant 0 : i32
    %c0_i32_0 = arith.constant 0 : i32
    %c0_i32_1 = arith.constant 0 : i32
    return %c0_i32, %c0_i32_0 : i32, i32
  }
  func.func @transform_2(%arg0: i32) -> (i32, i32) {
    %c0_i32 = arith.constant 0 : i32
    %c0_i32_0 = arith.constant 0 : i32
    %c0_i32_1 = arith.constant 0 : i32
    return %c0_i32, %c0_i32_0 : i32, i32
  }
  func.func @transform_3(%arg0: i32) -> (i32, i32) {
    %c0_i32 = arith.constant 0 : i32
    %c0_i32_0 = arith.constant 0 : i32
    %c0_i32_1 = arith.constant 0 : i32
    return %c0_i32, %c0_i32_0 : i32, i32
  }
  func.func @transform_4(%arg0: i32) -> (i32, i32) {
    %c0_i32 = arith.constant 0 : i32
    %c0_i32_0 = arith.constant 0 : i32
    %c0_i32_1 = arith.constant 0 : i32
    return %c0_i32, %c0_i32_0 : i32, i32
  }
  func.func @transform_5(%arg0: i32) -> (i32, i32) {
    %c0_i32 = arith.constant 0 : i32
    %c0_i32_0 = arith.constant 0 : i32
    %c0_i32_1 = arith.constant 0 : i32
    return %c0_i32, %c0_i32_0 : i32, i32
  }
  func.func @transform_6(%arg0: i32) -> (i32, i32) {
    %c0_i32 = arith.constant 0 : i32
    %c0_i32_0 = arith.constant 0 : i32
    %c0_i32_1 = arith.constant 0 : i32
    return %c0_i32, %c0_i32_0 : i32, i32
  }
  func.func @transform_7(%arg0: i32) -> (i32, i32) {
    %c0_i32 = arith.constant 0 : i32
    %c0_i32_0 = arith.constant 0 : i32
    %c0_i32_1 = arith.constant 0 : i32
    return %c0_i32, %c0_i32_0 : i32, i32
  }
  func.func @transform_8(%arg0: i32) -> (i32, i32) {
    %c0_i32 = arith.constant 0 : i32
    %c0_i32_0 = arith.constant 0 : i32
    %c0_i32_1 = arith.constant 0 : i32
    return %c0_i32, %c0_i32_0 : i32, i32
  }
  func.func @transform_9(%arg0: i32) -> (i32, i32) {
    %c0_i32 = arith.constant 0 : i32
    %c0_i32_0 = arith.constant 0 : i32
    %c0_i32_1 = arith.constant 0 : i32
    return %c0_i32, %c0_i32_0 : i32, i32
  }
  func.func @transform_10(%arg0: i32) -> (i32, i32) {
    %c0_i32 = arith.constant 0 : i32
    %c0_i32_0 = arith.constant 0 : i32
    %c0_i32_1 = arith.constant 0 : i32
    return %c0_i32, %c0_i32_0 : i32, i32
  }
  func.func @transform_11(%arg0: i32) -> (i32, i32) {
    %c0_i32 = arith.constant 0 : i32
    %c0_i32_0 = arith.constant 0 : i32
    %c0_i32_1 = arith.constant 0 : i32
    return %c0_i32, %c0_i32_0 : i32, i32
  }
  func.func @transform_12(%arg0: i32) -> (i32, i32) {
    %c0_i32 = arith.constant 0 : i32
    %c0_i32_0 = arith.constant 0 : i32
    %c0_i32_1 = arith.constant 0 : i32
    return %c0_i32, %c0_i32_0 : i32, i32
  }
  func.func @transform_13(%arg0: i32) -> (i32, i32) {
    %c0_i32 = arith.constant 0 : i32
    %c0_i32_0 = arith.constant 0 : i32
    return %arg0, %c0_i32 : i32, i32
  }
}

</mosaic_0001>

<llo_original>
// kernel: encoder_layer.1
$region0: #{encoder_layer.1}
  #allocation0 [shape = 'u32[]', space=smem, size = 0x4, offset = 0x4, fixed_abs, tag = 'smem constant byte address 0x4 - core index']
  #allocation1 [shape = 'u32[72,128]{1,0:T(1,128)}', space=vmem, size = 0x9000, scoped, tag = 'internal scratch']
  %s0 = inlined_call_operand.vmem [shape: f32[16,384], index: 0, kind: input, shape index: {}]
  %s1 = inlined_call_operand.hbm [shape: f32[384,2304], index: 1, kind: input, shape index: {}]
  %s2 = inlined_call_operand.hbm [shape: f32[1,2304], index: 2, kind: input, shape index: {}]
  %s3 = inlined_call_operand.hbm [shape: f32[768,384], index: 3, kind: input, shape index: {}]
  %s4 = inlined_call_operand.hbm [shape: f32[1,384], index: 4, kind: input, shape index: {}]
  %s5 = inlined_call_operand.hbm [shape: f32[1,384], index: 5, kind: input, shape index: {}]
  %s6 = inlined_call_operand.hbm [shape: f32[1,384], index: 6, kind: input, shape index: {}]
  %s7 = inlined_call_operand.hbm [shape: f32[1,384], index: 7, kind: input, shape index: {}]
  %s8 = inlined_call_operand.hbm [shape: f32[1,384], index: 8, kind: input, shape index: {}]
  %s9 = inlined_call_operand.hbm [shape: f32[384,128], index: 9, kind: input, shape index: {}]
  %s10 = inlined_call_operand.hbm [shape: f32[1,128], index: 10, kind: input, shape index: {}]
  %s11 = inlined_call_operand.hbm [shape: f32[128,384], index: 11, kind: input, shape index: {}]
  %s12 = inlined_call_operand.hbm [shape: f32[1,384], index: 12, kind: input, shape index: {}]
  %s13 = inlined_call_operand.hbm [shape: f32[16,384], index: 13, kind: output, shape index: {}]
  %s14 = sld [smem:[#allocation0]]
  $region110: #{encoder_layer.1} parent=0
    _
  %s16 = ssub.s32 1, %s14
  %s17 = scalar_select 0, %s16, %s14
  $region1: #{encoder_layer.1} parent=0
    #allocation2 [shape = 'u8[3538944]{0}', space=vmem, size = 0x360000, scoped, tag = 'input window, operand 1, single buffered']
    #allocation3 [shape = 's32[1]{0}', space=sflag, size = 0x4, scoped, tag = 'scoped memory for encoder_layer.1']
    #allocation4 [shape = 's32[1]{0}', space=sflag, size = 0x4, scoped, tag = 'scoped memory for encoder_layer.1']
    #allocation5 [shape = 'u8[9216]{0}', space=vmem, size = 0x2400, scoped, tag = 'input window, operand 2, single buffered']
    #allocation6 [shape = 's32[1]{0}', space=sflag, size = 0x4, scoped, tag = 'scoped memory for encoder_layer.1']
    #allocation7 [shape = 'u8[1179648]{0}', space=vmem, size = 0x120000, scoped, tag = 'input window, operand 3, single buffered']
    #allocation8 [shape = 'u8[1536]{0}', space=vmem, size = 0x800, scoped, tag = 'input window, operand 4, single buffered']
    #allocation9 [shape = 's32[1]{0}', space=sflag, size = 0x4, scoped, tag = 'scoped memory for encoder_layer.1']
    #allocation10 [shape = 'u8[1536]{0}', space=vmem, size = 0x800, scoped, tag = 'input window, operand 5, single buffered']
    #allocation11 [shape = 'u8[1536]{0}', space=vmem, size = 0x800, scoped, tag = 'input window, operand 6, single buffered']
    #allocation12 [shape = 's32[1]{0}', space=sflag, size = 0x4, scoped, tag = 'scoped memory for encoder_layer.1']
    #allocation13 [shape = 'u8[1536]{0}', space=vmem, size = 0x800, scoped, tag = 'input window, operand 7, single buffered']
    #allocation14 [shape = 'u8[1536]{0}', space=vmem, size = 0x800, scoped, tag = 'input window, operand 8, single buffered']
    #allocation15 [shape = 's32[1]{0}', space=sflag, size = 0x4, scoped, tag = 'scoped memory for encoder_layer.1']
    #allocation16 [shape = 'u8[196608]{0}', space=vmem, size = 0x30000, scoped, tag = 'input window, operand 9, single buffered']
    #allocation17 [shape = 'u8[512]{0}', space=vmem, size = 0x400, scoped, tag = 'input window, operand 10, single buffered']
    #allocation18 [shape = 's32[1]{0}', space=sflag, size = 0x4, scoped, tag = 'scoped memory for encoder_layer.1']
    #allocation19 [shape = 'u8[196608]{0}', space=vmem, size = 0x30000, scoped, tag = 'input window, operand 11, single buffered']
    #allocation20 [shape = 'u8[1536]{0}', space=vmem, size = 0x800, scoped, tag = 'input window, operand 12, single buffered']
    #allocation21 [shape = 's32[1]{0}', space=sflag, size = 0x4, scoped, tag = 'scoped memory for encoder_layer.1']
    #allocation22 [shape = 'u8[24576]{0}', space=vmem, size = 0x6000, scoped, tag = 'output window, operand 0, single buffered']
    %18 = vsyncpa [#allocation3], 0
    %19 = vsyncpa [#allocation6], 0
    %20 = vsyncpa [#allocation9], 0
    %21 = vsyncpa [#allocation12], 0
    %22 = vsyncpa [#allocation15], 0
    %23 = vsyncpa [#allocation18], 0
    %24 = vsyncpa [#allocation21], 0
    %25 = vsyncpa [#allocation4], 0
    // Predicated region
    $region2: #{encoder_layer.1} parent=1 // pred_check
      _
    $region3: #{encoder_layer.1} parent=1 // pred_check_branch
      %27 = sbr.rel (0) target = $region5
    $region4: #{encoder_layer.1} parent=1 // pred_region
      _
    $region5: #{encoder_layer.1} parent=1 // pred_fallthru
      _
    // Predicated region
    $region6: #{encoder_layer.1} parent=1 // pred_check
      _
    $region7: #{encoder_layer.1} parent=1 // pred_check_branch
      %29 = sbr.rel (0) target = $region9
    $region8: #{encoder_layer.1} parent=1 // pred_region
      %31 = vsyncadd [#allocation3], 0
      %s32 = sshll.u32 %s1, 4
      %s33 = int_to_ptr.hbm [resolvable:$true] %s32
      %s34 = sshll.u32 [#allocation2], 4
      %s35 = int_to_ptr.vmem [resolvable:$true] %s34
      %40 = dma.hbm_to_vmem [thread:$0]  %s33, 110592, %s35, [#allocation3], 2304, 2304, 144
    $region9: #{encoder_layer.1} parent=1 // pred_fallthru
      _
    // Predicated region
    $region10: #{encoder_layer.1} parent=1 // pred_check
      _
    $region11: #{encoder_layer.1} parent=1 // pred_check_branch
      %42 = sbr.rel (0) target = $region13
    $region12: #{encoder_layer.1} parent=1 // pred_region
      %44 = vsyncadd [#allocation6], 0
      %s46 = sshll.u32 %s2, 4
      %s47 = int_to_ptr.hbm [resolvable:$true] %s46
      %s48 = sshll.u32 [#allocation5], 4
      %s49 = int_to_ptr.vmem [resolvable:$true] %s48
      %51 = dma.hbm_to_vmem [thread:$0]  %s47, 288, %s49, [#allocation6]
    $region13: #{encoder_layer.1} parent=1 // pred_fallthru
      _
    // Predicated region
    $region14: #{encoder_layer.1} parent=1 // pred_check
      _
    $region15: #{encoder_layer.1} parent=1 // pred_check_branch
      %53 = sbr.rel (0) target = $region17
    $region16: #{encoder_layer.1} parent=1 // pred_region
      %55 = vsyncadd [#allocation6], 0
      %s56 = sshll.u32 %s3, 4
      %s57 = int_to_ptr.hbm [resolvable:$true] %s56
      %s58 = sshll.u32 [#allocation7], 4
      %s59 = int_to_ptr.vmem [resolvable:$true] %s58
      %64 = dma.hbm_to_vmem [thread:$0]  %s57, 36864, %s59, [#allocation6], 384, 384, 24
    $region17: #{encoder_layer.1} parent=1 // pred_fallthru
      _
    // Predicated region
    $region18: #{encoder_layer.1} parent=1 // pred_check
      _
    $region19: #{encoder_layer.1} parent=1 // pred_check_branch
      %66 = sbr.rel (0) target = $region21
    $region20: #{encoder_layer.1} parent=1 // pred_region
      %68 = vsyncadd [#allocation9], 0
      %s70 = sshll.u32 %s4, 4
      %s71 = int_to_ptr.hbm [resolvable:$true] %s70
      %s72 = sshll.u32 [#allocation8], 4
      %s73 = int_to_ptr.vmem [resolvable:$true] %s72
      %75 = dma.hbm_to_vmem [thread:$0]  %s71, 48, %s73, [#allocation9]
    $region21: #{encoder_layer.1} parent=1 // pred_fallthru
      _
    // Predicated region
    $region22: #{encoder_layer.1} parent=1 // pred_check
      _
    $region23: #{encoder_layer.1} parent=1 // pred_check_branch
      %77 = sbr.rel (0) target = $region25
    $region24: #{encoder_layer.1} parent=1 // pred_region
      %79 = vsyncadd [#allocation9], 0
      %s81 = sshll.u32 %s5, 4
      %s82 = int_to_ptr.hbm [resolvable:$true] %s81
      %s83 = sshll.u32 [#allocation10], 4
      %s84 = int_to_ptr.vmem [resolvable:$true] %s83
      %86 = dma.hbm_to_vmem [thread:$0]  %s82, 48, %s84, [#allocation9]
    $region25: #{encoder_layer.1} parent=1 // pred_fallthru
      _
    // Predicated region
    $region26: #{encoder_layer.1} parent=1 // pred_check
      _
    $region27: #{encoder_layer.1} parent=1 // pred_check_branch
      %88 = sbr.rel (0) target = $region29
    $region28: #{encoder_layer.1} parent=1 // pred_region
      %90 = vsyncadd [#allocation12], 0
      %s92 = sshll.u32 %s6, 4
      %s93 = int_to_ptr.hbm [resolvable:$true] %s92
      %s94 = sshll.u32 [#allocation11], 4
      %s95 = int_to_ptr.vmem [resolvable:$true] %s94
      %97 = dma.hbm_to_vmem [thread:$0]  %s93, 48, %s95, [#allocation12]
    $region29: #{encoder_layer.1} parent=1 // pred_fallthru
      _
    // Predicated region
    $region30: #{encoder_layer.1} parent=1 // pred_check
      _
    $region31: #{encoder_layer.1} parent=1 // pred_check_branch
      %99 = sbr.rel (0) target = $region33
    $region32: #{encoder_layer.1} parent=1 // pred_region
      %101 = vsyncadd [#allocation12], 0
      %s103 = sshll.u32 %s7, 4
      %s104 = int_to_ptr.hbm [resolvable:$true] %s103
      %s105 = sshll.u32 [#allocation13], 4
      %s106 = int_to_ptr.vmem [resolvable:$true] %s105
      %108 = dma.hbm_to_vmem [thread:$0]  %s104, 48, %s106, [#allocation12]
    $region33: #{encoder_layer.1} parent=1 // pred_fallthru
      _
    // Predicated region
    $region34: #{encoder_layer.1} parent=1 // pred_check
      _
    $region35: #{encoder_layer.1} parent=1 // pred_check_branch
      %110 = sbr.rel (0) target = $region37
    $region36: #{encoder_layer.1} parent=1 // pred_region
      %112 = vsyncadd [#allocation15], 0
      %s114 = sshll.u32 %s8, 4
      %s115 = int_to_ptr.hbm [resolvable:$true] %s114
      %s116 = sshll.u32 [#allocation14], 4
      %s117 = int_to_ptr.vmem [resolvable:$true] %s116
      %119 = dma.hbm_to_vmem [thread:$0]  %s115, 48, %s117, [#allocation15]
    $region37: #{encoder_layer.1} parent=1 // pred_fallthru
      _
    // Predicated region
    $region38: #{encoder_layer.1} parent=1 // pred_check
      _
    $region39: #{encoder_layer.1} parent=1 // pred_check_branch
      %121 = sbr.rel (0) target = $region41
    $region40: #{encoder_layer.1} parent=1 // pred_region
      %123 = vsyncadd [#allocation15], 0
      %s124 = sshll.u32 %s9, 4
      %s125 = int_to_ptr.hbm [resolvable:$true] %s124
      %s126 = sshll.u32 [#allocation16], 4
      %s127 = int_to_ptr.vmem [resolvable:$true] %s126
      %132 = dma.hbm_to_vmem [thread:$0]  %s125, 6144, %s127, [#allocation15], 128, 128, 8
    $region41: #{encoder_layer.1} parent=1 // pred_fallthru
      _
    // Predicated region
    $region42: #{encoder_layer.1} parent=1 // pred_check
      _
    $region43: #{encoder_layer.1} parent=1 // pred_check_branch
      %134 = sbr.rel (0) target = $region45
    $region44: #{encoder_layer.1} parent=1 // pred_region
      %136 = vsyncadd [#allocation18], 0
      %s138 = sshll.u32 %s10, 4
      %s139 = int_to_ptr.hbm [resolvable:$true] %s138
      %s140 = sshll.u32 [#allocation17], 4
      %s141 = int_to_ptr.vmem [resolvable:$true] %s140
      %143 = dma.hbm_to_vmem [thread:$0]  %s139, 16, %s141, [#allocation18]
    $region45: #{encoder_layer.1} parent=1 // pred_fallthru
      _
    // Predicated region
    $region46: #{encoder_layer.1} parent=1 // pred_check
      _
    $region47: #{encoder_layer.1} parent=1 // pred_check_branch
      %145 = sbr.rel (0) target = $region49
    $region48: #{encoder_layer.1} parent=1 // pred_region
      %147 = vsyncadd [#allocation18], 0
      %s148 = sshll.u32 %s11, 4
      %s149 = int_to_ptr.hbm [resolvable:$true] %s148
      %s150 = sshll.u32 [#allocation19], 4
      %s151 = int_to_ptr.vmem [resolvable:$true] %s150
      %156 = dma.hbm_to_vmem [thread:$0]  %s149, 6144, %s151, [#allocation18], 384, 384, 24
    $region49: #{encoder_layer.1} parent=1 // pred_fallthru
      _
    // Predicated region
    $region50: #{encoder_layer.1} parent=1 // pred_check
      _
    $region51: #{encoder_layer.1} parent=1 // pred_check_branch
      %158 = sbr.rel (0) target = $region53
    $region52: #{encoder_layer.1} parent=1 // pred_region
      %160 = vsyncadd [#allocation21], 0
      %s162 = sshll.u32 %s12, 4
      %s163 = int_to_ptr.hbm [resolvable:$true] %s162
      %s164 = sshll.u32 [#allocation20], 4
      %s165 = int_to_ptr.vmem [resolvable:$true] %s164
      %167 = dma.hbm_to_vmem [thread:$0]  %s163, 48, %s165, [#allocation21]
    $region53: #{encoder_layer.1} parent=1 // pred_fallthru
      _
    // Predicated region
    $region54: #{encoder_layer.1} parent=1 // pred_check
      _
    $region55: #{encoder_layer.1} parent=1 // pred_check_branch
      %169 = sbr.rel (0) target = $region57
    $region56: #{encoder_layer.1} parent=1 // pred_region
      %171 = dma.done [#allocation3], 110592
    $region57: #{encoder_layer.1} parent=1 // pred_fallthru
      _
    // Predicated region
    $region58: #{encoder_layer.1} parent=1 // pred_check
      _
    $region59: #{encoder_layer.1} parent=1 // pred_check_branch
      %173 = sbr.rel (0) target = $region61
    $region60: #{encoder_layer.1} parent=1 // pred_region
      %175 = dma.done [#allocation6], 288
    $region61: #{encoder_layer.1} parent=1 // pred_fallthru
      _
    // Predicated region
    $region62: #{encoder_layer.1} parent=1 // pred_check
      _
    $region63: #{encoder_layer.1} parent=1 // pred_check_branch
      %177 = sbr.rel (0) target = $region65
    $region64: #{encoder_layer.1} parent=1 // pred_region
      %179 = dma.done [#allocation6], 36864
    $region65: #{encoder_layer.1} parent=1 // pred_fallthru
      _
    // Predicated region
    $region66: #{encoder_layer.1} parent=1 // pred_check
      _
    $region67: #{encoder_layer.1} parent=1 // pred_check_branch
      %181 = sbr.rel (0) target = $region69
    $region68: #{encoder_layer.1} parent=1 // pred_region
      %183 = dma.done [#allocation9], 48
    $region69: #{encoder_layer.1} parent=1 // pred_fallthru
      _
    // Predicated region
    $region70: #{encoder_layer.1} parent=1 // pred_check
      _
    $region71: #{encoder_layer.1} parent=1 // pred_check_branch
      %185 = sbr.rel (0) target = $region73
    $region72: #{encoder_layer.1} parent=1 // pred_region
      %187 = dma.done [#allocation9], 48
    $region73: #{encoder_layer.1} parent=1 // pred_fallthru
      _
    // Predicated region
    $region74: #{encoder_layer.1} parent=1 // pred_check
      _
    $region75: #{encoder_layer.1} parent=1 // pred_check_branch
      %189 = sbr.rel (0) target = $region77
    $region76: #{encoder_layer.1} parent=1 // pred_region
      %191 = dma.done [#allocation12], 48
    $region77: #{encoder_layer.1} parent=1 // pred_fallthru
      _
    // Predicated region
    $region78: #{encoder_layer.1} parent=1 // pred_check
      _
    $region79: #{encoder_layer.1} parent=1 // pred_check_branch
      %193 = sbr.rel (0) target = $region81
    $region80: #{encoder_layer.1} parent=1 // pred_region
      %195 = dma.done [#allocation12], 48
    $region81: #{encoder_layer.1} parent=1 // pred_fallthru
      _
    // Predicated region
    $region82: #{encoder_layer.1} parent=1 // pred_check
      _
    $region83: #{encoder_layer.1} parent=1 // pred_check_branch
      %197 = sbr.rel (0) target = $region85
    $region84: #{encoder_layer.1} parent=1 // pred_region
      %199 = dma.done [#allocation15], 48
    $region85: #{encoder_layer.1} parent=1 // pred_fallthru
      _
    // Predicated region
    $region86: #{encoder_layer.1} parent=1 // pred_check
      _
    $region87: #{encoder_layer.1} parent=1 // pred_check_branch
      %201 = sbr.rel (0) target = $region89
    $region88: #{encoder_layer.1} parent=1 // pred_region
      %203 = dma.done [#allocation15], 6144
    $region89: #{encoder_layer.1} parent=1 // pred_fallthru
      _
    // Predicated region
    $region90: #{encoder_layer.1} parent=1 // pred_check
      _
    $region91: #{encoder_layer.1} parent=1 // pred_check_branch
      %205 = sbr.rel (0) target = $region93
    $region92: #{encoder_layer.1} parent=1 // pred_region
      %207 = dma.done [#allocation18], 16
    $region93: #{encoder_layer.1} parent=1 // pred_fallthru
      _
    // Predicated region
    $region94: #{encoder_layer.1} parent=1 // pred_check
      _
    $region95: #{encoder_layer.1} parent=1 // pred_check_branch
      %209 = sbr.rel (0) target = $region97
    $region96: #{encoder_layer.1} parent=1 // pred_region
      %211 = dma.done [#allocation18], 6144
    $region97: #{encoder_layer.1} parent=1 // pred_fallthru
      _
    // Predicated region
    $region98: #{encoder_layer.1} parent=1 // pred_check
      _
    $region99: #{encoder_layer.1} parent=1 // pred_check_branch
      %213 = sbr.rel (0) target = $region101
    $region100: #{encoder_layer.1} parent=1 // pred_region
      %215 = dma.done [#allocation21], 48
    $region101: #{encoder_layer.1} parent=1 // pred_fallthru
      _
    %v216 = vld [vmem:[%s0] sm:$0xff]
    %v217 = vld [vmem:[%s0 + $0x8] sm:$0xff]
    %v218 = vld [vmem:[%s0 + $0x10] sm:$0xff]
    %v219 = vld [vmem:[%s0 + $0x18] sm:$0xff]
    %v220 = vld [vmem:[%s0 + $0x20] sm:$0xff]
    %v221 = vld [vmem:[%s0 + $0x28] sm:$0xff]
    %v222 = vld [vmem:[#allocation5] sm:$0xff]
    %v223 = vld [vmem:[#allocation5 + $0x8] sm:$0xff]
    %v224 = vld [vmem:[#allocation5 + $0x10] sm:$0x3]
    %v225 = vld [vmem:[#allocation8] sm:$0x7]
    %v226 = vld [vmem:[#allocation17] sm:$0x1]
    %v227 = vld [vmem:[#allocation20] sm:$0x7]
    %v228 = vld [vmem:[#allocation10] sm:$0x7]
    %v229 = vld [vmem:[#allocation11] sm:$0x7]
    %v230 = vld [vmem:[#allocation13] sm:$0x7]
    %v231 = vld [vmem:[#allocation14] sm:$0x7]
    %v232 = vlaneseq
    %v233 = vand.u32 %v232, 127
    %v234 = vadd.s32 %v233, 128
    %v235 = vadd.s32 %v233, 256
    %vm236 = vcmp.lt.s32.totalorder %v233, 300
    %vm237 = vcmp.lt.s32.totalorder %v234, 300
    %vm238 = vcmp.lt.s32.totalorder %v235, 300
    %v239 = vsel %vm236, 1, 0
    %v240 = vsel %vm237, 1, 0
    %v241 = vsel %vm238, 1, 0
    %v242 = vcvt.s32.f32 %v239
    %v243 = vcvt.s32.f32 %v240
    %v244 = vcvt.s32.f32 %v241
    %v245 = vadd.f32 %v216, %v217
    %v246 = vadd.f32 %v245, %v218
    %247 = vadd.xlane.f32.xlu0 %v246
    %v248 = vpop.xlane.xlu0 %247
    %v249 = vadd.f32 %v219, %v220
    %v250 = vadd.f32 %v249, %v221
    %251 = vadd.xlane.f32.xlu0 %v250
    %v252 = vpop.xlane.xlu0 %251
    %v253 = vmul.f32 %v248, 0.0033333334
    %v254 = vmul.f32 %v252, 0.0033333334
    %v255 = vsub.f32 %v216, %v253
    %v256 = vsub.f32 %v217, %v253
    %v257 = vsub.f32 %v218, %v253
    %v258 = vsub.f32 %v219, %v254
    %v259 = vsub.f32 %v220, %v254
    %v260 = vsub.f32 %v221, %v254
    %v261 = vmul.f32 %v255, %v242
    %v262 = vmul.f32 %v256, %v243
    %v263 = vmul.f32 %v257, %v244
    %v264 = vmul.f32 %v258, %v242
    %v265 = vmul.f32 %v259, %v243
    %v266 = vmul.f32 %v260, %v244
    %v267 = vmul.f32 %v261, %v261
    %v268 = vmul.f32 %v262, %v262
    %v269 = vmul.f32 %v263, %v263
    %v270 = vmul.f32 %v264, %v264
    %v271 = vmul.f32 %v265, %v265
    %v272 = vmul.f32 %v266, %v266
    %v273 = vadd.f32 %v267, %v268
    %v274 = vadd.f32 %v273, %v269
    %275 = vadd.xlane.f32.xlu0 %v274
    %v276 = vpop.xlane.xlu0 %275
    %v277 = vadd.f32 %v270, %v271
    %v278 = vadd.f32 %v277, %v272
    %279 = vadd.xlane.f32.xlu0 %v278
    %v280 = vpop.xlane.xlu0 %279
    %v281 = vmul.f32 %v276, 0.0033444816
    %v282 = vmul.f32 %v280, 0.0033444816
    %v283 = vrsqrt.pop %v281
    %v284 = vmul.f32 %v283, %v281
    %v285 = vmul.f32 %v284, %v283
    %v286 = vmul.f32 0.5, %v285
    %v287 = vsub.f32 1.5, %v286
    %v288 = vmul.f32 %v283, %v287
    %v289 = vmul.f32 %v281, %v288
    %vm290 = vcmp.eq.f32.partialorder %v281, inf
    %v291 = vsel %vm290, %v281, %v289
    %vm292 = vcmp.eq.f32.partialorder %v281, 0.0
    %v293 = vand.u32 %v281, 2147483648
    %v294 = vsel %vm292, %v293, %v291
    %v295 = vrsqrt.pop %v282
    %v296 = vmul.f32 %v295, %v282
    %v297 = vmul.f32 %v296, %v295
    %v298 = vmul.f32 0.5, %v297
    %v299 = vsub.f32 1.5, %v298
    %v300 = vmul.f32 %v295, %v299
    %v301 = vmul.f32 %v282, %v300
    %vm302 = vcmp.eq.f32.partialorder %v282, inf
    %v303 = vsel %vm302, %v282, %v301
    %vm304 = vcmp.eq.f32.partialorder %v282, 0.0
    %v305 = vand.u32 %v282, 2147483648
    %v306 = vsel %vm304, %v305, %v303
    %v307 = vadd.f32 %v294, 1e-06
    %v308 = vadd.f32 %v306, 1e-06
    %v309 = vrcp.pop %v307
    %v310 = vrcp.pop %v308
    %v312 = vperm.slane %v228, 0
    %v313 = vperm.slane %v228, 1
    %v314 = vperm.slane %v228, 2
    %v318 = vmul.f32 %v312, %v261
    %v319 = vmul.f32 %v313, %v262
    %v320 = vmul.f32 %v314, %v263
    %v321 = vmul.f32 %v312, %v264
    %v322 = vmul.f32 %v313, %v265
    %v323 = vmul.f32 %v314, %v266
    %v324 = vmul.f32 %v318, %v309
    %v325 = vmul.f32 %v319, %v309
    %v326 = vmul.f32 %v320, %v309
    %v327 = vmul.f32 %v321, %v310
    %v328 = vmul.f32 %v322, %v310
    %v329 = vmul.f32 %v323, %v310
    %v331 = vperm.slane %v229, 0
    %v332 = vperm.slane %v229, 1
    %v333 = vperm.slane %v229, 2
    %v337 = vadd.f32 %v324, %v331
    %v338 = vadd.f32 %v325, %v332
    %v339 = vadd.f32 %v326, %v333
    %v340 = vadd.f32 %v327, %v331
    %v341 = vadd.f32 %v328, %v332
    %v342 = vadd.f32 %v329, %v333
    %v343 = vld [vmem:[#allocation2] sm:$0xff]
    %v344 = vld [vmem:[#allocation2 + $0x8] sm:$0xff]
    %v345 = vld [vmem:[#allocation2 + $0x10] sm:$0xff]
    %v346 = vld [vmem:[#allocation2 + $0x18] sm:$0xff]
    %v347 = vld [vmem:[#allocation2 + $0x20] sm:$0xff]
    %v348 = vld [vmem:[#allocation2 + $0x28] sm:$0xff]
    %v349 = vld [vmem:[#allocation2 + $0x30] sm:$0xff]
    %v350 = vld [vmem:[#allocation2 + $0x38] sm:$0xff]
    %v351 = vld [vmem:[#allocation2 + $0x40] sm:$0xff]
    %v352 = vld [vmem:[#allocation2 + $0x48] sm:$0xff]
    %v353 = vld [vmem:[#allocation2 + $0x50] sm:$0xff]
    %v354 = vld [vmem:[#allocation2 + $0x58] sm:$0xff]
    %v355 = vld [vmem:[#allocation2 + $0x60] sm:$0xff]
    %v356 = vld [vmem:[#allocation2 + $0x68] sm:$0xff]
    %v357 = vld [vmem:[#allocation2 + $0x70] sm:$0xff]
    %v358 = vld [vmem:[#allocation2 + $0x78] sm:$0xff]
    %v359 = vld [vmem:[#allocation2 + $0x80] sm:$0xff]
    %v360 = vld [vmem:[#allocation2 + $0x88] sm:$0xff]
    %v361 = vld [vmem:[#allocation2 + $0x90] sm:$0xff]
    %v362 = vld [vmem:[#allocation2 + $0x98] sm:$0xff]
    %v363 = vld [vmem:[#allocation2 + $0xa0] sm:$0xff]
    %v364 = vld [vmem:[#allocation2 + $0xa8] sm:$0xff]
    %v365 = vld [vmem:[#allocation2 + $0xb0] sm:$0xff]
    %v366 = vld [vmem:[#allocation2 + $0xb8] sm:$0xff]
    %v367 = vld [vmem:[#allocation2 + $0xc0] sm:$0xff]
    %v368 = vld [vmem:[#allocation2 + $0xc8] sm:$0xff]
    %v369 = vld [vmem:[#allocation2 + $0xd0] sm:$0xff]
    %v370 = vld [vmem:[#allocation2 + $0xd8] sm:$0xff]
    %v371 = vld [vmem:[#allocation2 + $0xe0] sm:$0xff]
    %v372 = vld [vmem:[#allocation2 + $0xe8] sm:$0xff]
    %v373 = vld [vmem:[#allocation2 + $0xf0] sm:$0xff]
    %v374 = vld [vmem:[#allocation2 + $0xf8] sm:$0xff]
    %v375 = vld [vmem:[#allocation2 + $0x100] sm:$0xff]
    %v376 = vld [vmem:[#allocation2 + $0x108] sm:$0xff]
    %v377 = vld [vmem:[#allocation2 + $0x110] sm:$0xff]
    %v378 = vld [vmem:[#allocation2 + $0x118] sm:$0xff]
    %v379 = vld [vmem:[#allocation2 + $0x120] sm:$0xff]
    %v380 = vld [vmem:[#allocation2 + $0x128] sm:$0xff]
    %v381 = vld [vmem:[#allocation2 + $0x130] sm:$0xff]
    %v382 = vld [vmem:[#allocation2 + $0x138] sm:$0xff]
    %v383 = vld [vmem:[#allocation2 + $0x140] sm:$0xff]
    %v384 = vld [vmem:[#allocation2 + $0x148] sm:$0xff]
    %v385 = vld [vmem:[#allocation2 + $0x150] sm:$0xff]
    %v386 = vld [vmem:[#allocation2 + $0x158] sm:$0xff]
    %v387 = vld [vmem:[#allocation2 + $0x160] sm:$0xff]
    %v388 = vld [vmem:[#allocation2 + $0x168] sm:$0xff]
    %v389 = vld [vmem:[#allocation2 + $0x170] sm:$0xff]
    %v390 = vld [vmem:[#allocation2 + $0x178] sm:$0xff]
    %v391 = vld [vmem:[#allocation2 + $0x180] sm:$0xff]
    %v392 = vld [vmem:[#allocation2 + $0x188] sm:$0xff]
    %v393 = vld [vmem:[#allocation2 + $0x190] sm:$0xff]
    %v394 = vld [vmem:[#allocation2 + $0x198] sm:$0xff]
    %v395 = vld [vmem:[#allocation2 + $0x1a0] sm:$0xff]
    %v396 = vld [vmem:[#allocation2 + $0x1a8] sm:$0xff]
    %v397 = vld [vmem:[#allocation2 + $0x1b0] sm:$0xff]
    %v398 = vld [vmem:[#allocation2 + $0x1b8] sm:$0xff]
    %v399 = vld [vmem:[#allocation2 + $0x1c0] sm:$0xff]
    %v400 = vld [vmem:[#allocation2 + $0x1c8] sm:$0xff]
    %v401 = vld [vmem:[#allocation2 + $0x1d0] sm:$0xff]
    %v402 = vld [vmem:[#allocation2 + $0x1d8] sm:$0xff]
    %v403 = vld [vmem:[#allocation2 + $0x1e0] sm:$0xff]
    %v404 = vld [vmem:[#allocation2 + $0x1e8] sm:$0xff]
    %v405 = vld [vmem:[#allocation2 + $0x1f0] sm:$0xff]
    %v406 = vld [vmem:[#allocation2 + $0x1f8] sm:$0xff]
    %v407 = vld [vmem:[#allocation2 + $0x200] sm:$0xff]
    %v408 = vld [vmem:[#allocation2 + $0x208] sm:$0xff]
    %v409 = vld [vmem:[#allocation2 + $0x210] sm:$0xff]
    %v410 = vld [vmem:[#allocation2 + $0x218] sm:$0xff]
    %v411 = vld [vmem:[#allocation2 + $0x220] sm:$0xff]
    %v412 = vld [vmem:[#allocation2 + $0x228] sm:$0xff]
    %v413 = vld [vmem:[#allocation2 + $0x230] sm:$0xff]
    %v414 = vld [vmem:[#allocation2 + $0x238] sm:$0xff]
    %v415 = vld [vmem:[#allocation2 + $0x240] sm:$0xff]
    %v416 = vld [vmem:[#allocation2 + $0x248] sm:$0xff]
    %v417 = vld [vmem:[#allocation2 + $0x250] sm:$0xff]
    %v418 = vld [vmem:[#allocation2 + $0x258] sm:$0xff]
    %v419 = vld [vmem:[#allocation2 + $0x260] sm:$0xff]
    %v420 = vld [vmem:[#allocation2 + $0x268] sm:$0xff]
    %v421 = vld [vmem:[#allocation2 + $0x270] sm:$0xff]
    %v422 = vld [vmem:[#allocation2 + $0x278] sm:$0xff]
    %v423 = vld [vmem:[#allocation2 + $0x280] sm:$0xff]
    %v424 = vld [vmem:[#allocation2 + $0x288] sm:$0xff]
    %v425 = vld [vmem:[#allocation2 + $0x290] sm:$0xff]
    %v426 = vld [vmem:[#allocation2 + $0x298] sm:$0xff]
    %v427 = vld [vmem:[#allocation2 + $0x2a0] sm:$0xff]
    %v428 = vld [vmem:[#allocation2 + $0x2a8] sm:$0xff]
    %v429 = vld [vmem:[#allocation2 + $0x2b0] sm:$0xff]
    %v430 = vld [vmem:[#allocation2 + $0x2b8] sm:$0xff]
    %v431 = vld [vmem:[#allocation2 + $0x2c0] sm:$0xff]
    %v432 = vld [vmem:[#allocation2 + $0x2c8] sm:$0xff]
    %v433 = vld [vmem:[#allocation2 + $0x2d0] sm:$0xff]
    %v434 = vld [vmem:[#allocation2 + $0x2d8] sm:$0xff]
    %v435 = vld [vmem:[#allocation2 + $0x2e0] sm:$0xff]
    %v436 = vld [vmem:[#allocation2 + $0x2e8] sm:$0xff]
    %v437 = vld [vmem:[#allocation2 + $0x2f0] sm:$0xff]
    %v438 = vld [vmem:[#allocation2 + $0x2f8] sm:$0xff]
    %v439 = vld [vmem:[#allocation2 + $0x300] sm:$0xff]
    %v440 = vld [vmem:[#allocation2 + $0x308] sm:$0xff]
    %v441 = vld [vmem:[#allocation2 + $0x310] sm:$0xff]
    %v442 = vld [vmem:[#allocation2 + $0x318] sm:$0xff]
    %v443 = vld [vmem:[#allocation2 + $0x320] sm:$0xff]
    %v444 = vld [vmem:[#allocation2 + $0x328] sm:$0xff]
    %v445 = vld [vmem:[#allocation2 + $0x330] sm:$0xff]
    %v446 = vld [vmem:[#allocation2 + $0x338] sm:$0xff]
    %v447 = vld [vmem:[#allocation2 + $0x340] sm:$0xff]
    %v448 = vld [vmem:[#allocation2 + $0x348] sm:$0xff]
    %v449 = vld [vmem:[#allocation2 + $0x350] sm:$0xff]
    %v450 = vld [vmem:[#allocation2 + $0x358] sm:$0xff]
    %v451 = vld [vmem:[#allocation2 + $0x360] sm:$0xff]
    %v452 = vld [vmem:[#allocation2 + $0x368] sm:$0xff]
    %v453 = vld [vmem:[#allocation2 + $0x370] sm:$0xff]
    %v454 = vld [vmem:[#allocation2 + $0x378] sm:$0xff]
    %v455 = vld [vmem:[#allocation2 + $0x380] sm:$0xff]
    %v456 = vld [vmem:[#allocation2 + $0x388] sm:$0xff]
    %v457 = vld [vmem:[#allocation2 + $0x390] sm:$0xff]
    %v458 = vld [vmem:[#allocation2 + $0x398] sm:$0xff]
    %v459 = vld [vmem:[#allocation2 + $0x3a0] sm:$0xff]
    %v460 = vld [vmem:[#allocation2 + $0x3a8] sm:$0xff]
    %v461 = vld [vmem:[#allocation2 + $0x3b0] sm:$0xff]
    %v462 = vld [vmem:[#allocation2 + $0x3b8] sm:$0xff]
    %v463 = vld [vmem:[#allocation2 + $0x3c0] sm:$0xff]
    %v464 = vld [vmem:[#allocation2 + $0x3c8] sm:$0xff]
    %v465 = vld [vmem:[#allocation2 + $0x3d0] sm:$0xff]
    %v466 = vld [vmem:[#allocation2 + $0x3d8] sm:$0xff]
    %v467 = vld [vmem:[#allocation2 + $0x3e0] sm:$0xff]
    %v468 = vld [vmem:[#allocation2 + $0x3e8] sm:$0xff]
    %v469 = vld [vmem:[#allocation2 + $0x3f0] sm:$0xff]
    %v470 = vld [vmem:[#allocation2 + $0x3f8] sm:$0xff]
    %v471 = vld [vmem:[#allocation2 + $0x400] sm:$0xff]
    %v472 = vld [vmem:[#allocation2 + $0x408] sm:$0xff]
    %v473 = vld [vmem:[#allocation2 + $0x410] sm:$0xff]
    %v474 = vld [vmem:[#allocation2 + $0x418] sm:$0xff]
    %v475 = vld [vmem:[#allocation2 + $0x420] sm:$0xff]
    %v476 = vld [vmem:[#allocation2 + $0x428] sm:$0xff]
    %v477 = vld [vmem:[#allocation2 + $0x430] sm:$0xff]
    %v478 = vld [vmem:[#allocation2 + $0x438] sm:$0xff]
    %v479 = vld [vmem:[#allocation2 + $0x440] sm:$0xff]
    %v480 = vld [vmem:[#allocation2 + $0x448] sm:$0xff]
    %v481 = vld [vmem:[#allocation2 + $0x450] sm:$0xff]
    %v482 = vld [vmem:[#allocation2 + $0x458] sm:$0xff]
    %v483 = vld [vmem:[#allocation2 + $0x460] sm:$0xff]
    %v484 = vld [vmem:[#allocation2 + $0x468] sm:$0xff]
    %v485 = vld [vmem:[#allocation2 + $0x470] sm:$0xff]
    %v486 = vld [vmem:[#allocation2 + $0x478] sm:$0xff]
    %v487 = vld [vmem:[#allocation2 + $0x480] sm:$0xff]
    %v488 = vld [vmem:[#allocation2 + $0x488] sm:$0xff]
    %v489 = vld [vmem:[#allocation2 + $0x490] sm:$0xff]
    %v490 = vld [vmem:[#allocation2 + $0x498] sm:$0xff]
    %v491 = vld [vmem:[#allocation2 + $0x4a0] sm:$0xff]
    %v492 = vld [vmem:[#allocation2 + $0x4a8] sm:$0xff]
    %v493 = vld [vmem:[#allocation2 + $0x4b0] sm:$0xff]
    %v494 = vld [vmem:[#allocation2 + $0x4b8] sm:$0xff]
    %v495 = vld [vmem:[#allocation2 + $0x4c0] sm:$0xff]
    %v496 = vld [vmem:[#allocation2 + $0x4c8] sm:$0xff]
    %v497 = vld [vmem:[#allocation2 + $0x4d0] sm:$0xff]
    %v498 = vld [vmem:[#allocation2 + $0x4d8] sm:$0xff]
    %v499 = vld [vmem:[#allocation2 + $0x4e0] sm:$0xff]
    %v500 = vld [vmem:[#allocation2 + $0x4e8] sm:$0xff]
    %v501 = vld [vmem:[#allocation2 + $0x4f0] sm:$0xff]
    %v502 = vld [vmem:[#allocation2 + $0x4f8] sm:$0xff]
    %v503 = vld [vmem:[#allocation2 + $0x500] sm:$0xff]
    %v504 = vld [vmem:[#allocation2 + $0x508] sm:$0xff]
    %v505 = vld [vmem:[#allocation2 + $0x510] sm:$0xff]
    %v506 = vld [vmem:[#allocation2 + $0x518] sm:$0xff]
    %v507 = vld [vmem:[#allocation2 + $0x520] sm:$0xff]
    %v508 = vld [vmem:[#allocation2 + $0x528] sm:$0xff]
    %v509 = vld [vmem:[#allocation2 + $0x530] sm:$0xff]
    %v510 = vld [vmem:[#allocation2 + $0x538] sm:$0xff]
    %v511 = vld [vmem:[#allocation2 + $0x540] sm:$0xff]
    %v512 = vld [vmem:[#allocation2 + $0x548] sm:$0xff]
    %v513 = vld [vmem:[#allocation2 + $0x550] sm:$0xff]
    %v514 = vld [vmem:[#allocation2 + $0x558] sm:$0xff]
    %v515 = vld [vmem:[#allocation2 + $0x560] sm:$0xff]
    %v516 = vld [vmem:[#allocation2 + $0x568] sm:$0xff]
    %v517 = vld [vmem:[#allocation2 + $0x570] sm:$0xff]
    %v518 = vld [vmem:[#allocation2 + $0x578] sm:$0xff]
    %v519 = vld [vmem:[#allocation2 + $0x580] sm:$0xff]
    %v520 = vld [vmem:[#allocation2 + $0x588] sm:$0xff]
    %v521 = vld [vmem:[#allocation2 + $0x590] sm:$0xff]
    %v522 = vld [vmem:[#allocation2 + $0x598] sm:$0xff]
    %v523 = vld [vmem:[#allocation2 + $0x5a0] sm:$0xff]
    %v524 = vld [vmem:[#allocation2 + $0x5a8] sm:$0xff]
    %v525 = vld [vmem:[#allocation2 + $0x5b0] sm:$0xff]
    %v526 = vld [vmem:[#allocation2 + $0x5b8] sm:$0xff]
    %v527 = vld [vmem:[#allocation2 + $0x5c0] sm:$0xff]
    %v528 = vld [vmem:[#allocation2 + $0x5c8] sm:$0xff]
    %v529 = vld [vmem:[#allocation2 + $0x5d0] sm:$0xff]
    %v530 = vld [vmem:[#allocation2 + $0x5d8] sm:$0xff]
    %v531 = vld [vmem:[#allocation2 + $0x5e0] sm:$0xff]
    %v532 = vld [vmem:[#allocation2 + $0x5e8] sm:$0xff]
    %v533 = vld [vmem:[#allocation2 + $0x5f0] sm:$0xff]
    %v534 = vld [vmem:[#allocation2 + $0x5f8] sm:$0xff]
    %v535 = vld [vmem:[#allocation2 + $0x600] sm:$0xff]
    %v536 = vld [vmem:[#allocation2 + $0x608] sm:$0xff]
    %v537 = vld [vmem:[#allocation2 + $0x610] sm:$0xff]
    %v538 = vld [vmem:[#allocation2 + $0x618] sm:$0xff]
    %v539 = vld [vmem:[#allocation2 + $0x620] sm:$0xff]
    %v540 = vld [vmem:[#allocation2 + $0x628] sm:$0xff]
    %v541 = vld [vmem:[#allocation2 + $0x630] sm:$0xff]
    %v542 = vld [vmem:[#allocation2 + $0x638] sm:$0xff]
    %v543 = vld [vmem:[#allocation2 + $0x640] sm:$0xff]
    %v544 = vld [vmem:[#allocation2 + $0x648] sm:$0xff]
    %v545 = vld [vmem:[#allocation2 + $0x650] sm:$0xff]
    %v546 = vld [vmem:[#allocation2 + $0x658] sm:$0xff]
    %v547 = vld [vmem:[#allocation2 + $0x660] sm:$0xff]
    %v548 = vld [vmem:[#allocation2 + $0x668] sm:$0xff]
    %v549 = vld [vmem:[#allocation2 + $0x670] sm:$0xff]
    %v550 = vld [vmem:[#allocation2 + $0x678] sm:$0xff]
    %v551 = vld [vmem:[#allocation2 + $0x680] sm:$0xff]
    %v552 = vld [vmem:[#allocation2 + $0x688] sm:$0xff]
    %v553 = vld [vmem:[#allocation2 + $0x690] sm:$0xff]
    %v554 = vld [vmem:[#allocation2 + $0x698] sm:$0xff]
    %v555 = vld [vmem:[#allocation2 + $0x6a0] sm:$0xff]
    %v556 = vld [vmem:[#allocation2 + $0x6a8] sm:$0xff]
    %v557 = vld [vmem:[#allocation2 + $0x6b0] sm:$0xff]
    %v558 = vld [vmem:[#allocation2 + $0x6b8] sm:$0xff]
    %v559 = vld [vmem:[#allocation2 + $0x6c0] sm:$0xff]
    %v560 = vld [vmem:[#allocation2 + $0x6c8] sm:$0xff]
    %v561 = vld [vmem:[#allocation2 + $0x6d0] sm:$0xff]
    %v562 = vld [vmem:[#allocation2 + $0x6d8] sm:$0xff]
    %v563 = vld [vmem:[#allocation2 + $0x6e0] sm:$0xff]
    %v564 = vld [vmem:[#allocation2 + $0x6e8] sm:$0xff]
    %v565 = vld [vmem:[#allocation2 + $0x6f0] sm:$0xff]
    %v566 = vld [vmem:[#allocation2 + $0x6f8] sm:$0xff]
    %v567 = vld [vmem:[#allocation2 + $0x700] sm:$0xff]
    %v568 = vld [vmem:[#allocation2 + $0x708] sm:$0xff]
    %v569 = vld [vmem:[#allocation2 + $0x710] sm:$0xff]
    %v570 = vld [vmem:[#allocation2 + $0x718] sm:$0xff]
    %v571 = vld [vmem:[#allocation2 + $0x720] sm:$0xff]
    %v572 = vld [vmem:[#allocation2 + $0x728] sm:$0xff]
    %v573 = vld [vmem:[#allocation2 + $0x730] sm:$0xff]
    %v574 = vld [vmem:[#allocation2 + $0x738] sm:$0xff]
    %v575 = vld [vmem:[#allocation2 + $0x740] sm:$0xff]
    %v576 = vld [vmem:[#allocation2 + $0x748] sm:$0xff]
    %v577 = vld [vmem:[#allocation2 + $0x750] sm:$0xff]
    %v578 = vld [vmem:[#allocation2 + $0x758] sm:$0xff]
    %v579 = vld [vmem:[#allocation2 + $0x760] sm:$0xff]
    %v580 = vld [vmem:[#allocation2 + $0x768] sm:$0xff]
    %v581 = vld [vmem:[#allocation2 + $0x770] sm:$0xff]
    %v582 = vld [vmem:[#allocation2 + $0x778] sm:$0xff]
    %v583 = vld [vmem:[#allocation2 + $0x780] sm:$0xff]
    %v584 = vld [vmem:[#allocation2 + $0x788] sm:$0xff]
    %v585 = vld [vmem:[#allocation2 + $0x790] sm:$0xff]
    %v586 = vld [vmem:[#allocation2 + $0x798] sm:$0xff]
    %v587 = vld [vmem:[#allocation2 + $0x7a0] sm:$0xff]
    %v588 = vld [vmem:[#allocation2 + $0x7a8] sm:$0xff]
    %v589 = vld [vmem:[#allocation2 + $0x7b0] sm:$0xff]
    %v590 = vld [vmem:[#allocation2 + $0x7b8] sm:$0xff]
    %v591 = vld [vmem:[#allocation2 + $0x7c0] sm:$0xff]
    %v592 = vld [vmem:[#allocation2 + $0x7c8] sm:$0xff]
    %v593 = vld [vmem:[#allocation2 + $0x7d0] sm:$0xff]
    %v594 = vld [vmem:[#allocation2 + $0x7d8] sm:$0xff]
    %v595 = vld [vmem:[#allocation2 + $0x7e0] sm:$0xff]
    %v596 = vld [vmem:[#allocation2 + $0x7e8] sm:$0xff]
    %v597 = vld [vmem:[#allocation2 + $0x7f0] sm:$0xff]
    %v598 = vld [vmem:[#allocation2 + $0x7f8] sm:$0xff]
    %v599 = vld [vmem:[#allocation2 + $0x800] sm:$0xff]
    %v600 = vld [vmem:[#allocation2 + $0x808] sm:$0xff]
    %v601 = vld [vmem:[#allocation2 + $0x810] sm:$0xff]
    %v602 = vld [vmem:[#allocation2 + $0x818] sm:$0xff]
    %v603 = vld [vmem:[#allocation2 + $0x820] sm:$0xff]
    %v604 = vld [vmem:[#allocation2 + $0x828] sm:$0xff]
    %v605 = vld [vmem:[#allocation2 + $0x830] sm:$0xff]
    %v606 = vld [vmem:[#allocation2 + $0x838] sm:$0xff]
    %v607 = vld [vmem:[#allocation2 + $0x840] sm:$0xff]
    %v608 = vld [vmem:[#allocation2 + $0x848] sm:$0xff]
    %v609 = vld [vmem:[#allocation2 + $0x850] sm:$0xff]
    %v610 = vld [vmem:[#allocation2 + $0x858] sm:$0xff]
    %v611 = vld [vmem:[#allocation2 + $0x860] sm:$0xff]
    %v612 = vld [vmem:[#allocation2 + $0x868] sm:$0xff]
    %v613 = vld [vmem:[#allocation2 + $0x870] sm:$0xff]
    %v614 = vld [vmem:[#allocation2 + $0x878] sm:$0xff]
    %v615 = vld [vmem:[#allocation2 + $0x880] sm:$0xff]
    %v616 = vld [vmem:[#allocation2 + $0x888] sm:$0xff]
    %v617 = vld [vmem:[#allocation2 + $0x890] sm:$0xff]
    %v618 = vld [vmem:[#allocation2 + $0x898] sm:$0xff]
    %v619 = vld [vmem:[#allocation2 + $0x8a0] sm:$0xff]
    %v620 = vld [vmem:[#allocation2 + $0x8a8] sm:$0xff]
    %v621 = vld [vmem:[#allocation2 + $0x8b0] sm:$0xff]
    %v622 = vld [vmem:[#allocation2 + $0x8b8] sm:$0xff]
    %v623 = vld [vmem:[#allocation2 + $0x8c0] sm:$0xff]
    %v624 = vld [vmem:[#allocation2 + $0x8c8] sm:$0xff]
    %v625 = vld [vmem:[#allocation2 + $0x8d0] sm:$0xff]
    %v626 = vld [vmem:[#allocation2 + $0x8d8] sm:$0xff]
    %v627 = vld [vmem:[#allocation2 + $0x8e0] sm:$0xff]
    %v628 = vld [vmem:[#allocation2 + $0x8e8] sm:$0xff]
    %v629 = vld [vmem:[#allocation2 + $0x8f0] sm:$0xff]
    %v630 = vld [vmem:[#allocation2 + $0x8f8] sm:$0xff]
    %v631 = vld [vmem:[#allocation2 + $0x900] sm:$0xff]
    %v632 = vld [vmem:[#allocation2 + $0x908] sm:$0xff]
    %v633 = vld [vmem:[#allocation2 + $0x910] sm:$0xff]
    %v634 = vld [vmem:[#allocation2 + $0x918] sm:$0xff]
    %v635 = vld [vmem:[#allocation2 + $0x920] sm:$0xff]
    %v636 = vld [vmem:[#allocation2 + $0x928] sm:$0xff]
    %v637 = vld [vmem:[#allocation2 + $0x930] sm:$0xff]
    %v638 = vld [vmem:[#allocation2 + $0x938] sm:$0xff]
    %v639 = vld [vmem:[#allocation2 + $0x940] sm:$0xff]
    %v640 = vld [vmem:[#allocation2 + $0x948] sm:$0xff]
    %v641 = vld [vmem:[#allocation2 + $0x950] sm:$0xff]
    %v642 = vld [vmem:[#allocation2 + $0x958] sm:$0xff]
    %v643 = vld [vmem:[#allocation2 + $0x960] sm:$0xff]
    %v644 = vld [vmem:[#allocation2 + $0x968] sm:$0xff]
    %v645 = vld [vmem:[#allocation2 + $0x970] sm:$0xff]
    %v646 = vld [vmem:[#allocation2 + $0x978] sm:$0xff]
    %v647 = vld [vmem:[#allocation2 + $0x980] sm:$0xff]
    %v648 = vld [vmem:[#allocation2 + $0x988] sm:$0xff]
    %v649 = vld [vmem:[#allocation2 + $0x990] sm:$0xff]
    %v650 = vld [vmem:[#allocation2 + $0x998] sm:$0xff]
    %v651 = vld [vmem:[#allocation2 + $0x9a0] sm:$0xff]
    %v652 = vld [vmem:[#allocation2 + $0x9a8] sm:$0xff]
    %v653 = vld [vmem:[#allocation2 + $0x9b0] sm:$0xff]
    %v654 = vld [vmem:[#allocation2 + $0x9b8] sm:$0xff]
    %v655 = vld [vmem:[#allocation2 + $0x9c0] sm:$0xff]
    %v656 = vld [vmem:[#allocation2 + $0x9c8] sm:$0xff]
    %v657 = vld [vmem:[#allocation2 + $0x9d0] sm:$0xff]
    %v658 = vld [vmem:[#allocation2 + $0x9d8] sm:$0xff]
    %v659 = vld [vmem:[#allocation2 + $0x9e0] sm:$0xff]
    %v660 = vld [vmem:[#allocation2 + $0x9e8] sm:$0xff]
    %v661 = vld [vmem:[#allocation2 + $0x9f0] sm:$0xff]
    %v662 = vld [vmem:[#allocation2 + $0x9f8] sm:$0xff]
    %v663 = vld [vmem:[#allocation2 + $0xa00] sm:$0xff]
    %v664 = vld [vmem:[#allocation2 + $0xa08] sm:$0xff]
    %v665 = vld [vmem:[#allocation2 + $0xa10] sm:$0xff]
    %v666 = vld [vmem:[#allocation2 + $0xa18] sm:$0xff]
    %v667 = vld [vmem:[#allocation2 + $0xa20] sm:$0xff]
    %v668 = vld [vmem:[#allocation2 + $0xa28] sm:$0xff]
    %v669 = vld [vmem:[#allocation2 + $0xa30] sm:$0xff]
    %v670 = vld [vmem:[#allocation2 + $0xa38] sm:$0xff]
    %v671 = vld [vmem:[#allocation2 + $0xa40] sm:$0xff]
    %v672 = vld [vmem:[#allocation2 + $0xa48] sm:$0xff]
    %v673 = vld [vmem:[#allocation2 + $0xa50] sm:$0xff]
    %v674 = vld [vmem:[#allocation2 + $0xa58] sm:$0xff]
    %v675 = vld [vmem:[#allocation2 + $0xa60] sm:$0xff]
    %v676 = vld [vmem:[#allocation2 + $0xa68] sm:$0xff]
    %v677 = vld [vmem:[#allocation2 + $0xa70] sm:$0xff]
    %v678 = vld [vmem:[#allocation2 + $0xa78] sm:$0xff]
    %v679 = vld [vmem:[#allocation2 + $0xa80] sm:$0xff]
    %v680 = vld [vmem:[#allocation2 + $0xa88] sm:$0xff]
    %v681 = vld [vmem:[#allocation2 + $0xa90] sm:$0xff]
    %v682 = vld [vmem:[#allocation2 + $0xa98] sm:$0xff]
    %v683 = vld [vmem:[#allocation2 + $0xaa0] sm:$0xff]
    %v684 = vld [vmem:[#allocation2 + $0xaa8] sm:$0xff]
    %v685 = vld [vmem:[#allocation2 + $0xab0] sm:$0xff]
    %v686 = vld [vmem:[#allocation2 + $0xab8] sm:$0xff]
    %v687 = vld [vmem:[#allocation2 + $0xac0] sm:$0xff]
    %v688 = vld [vmem:[#allocation2 + $0xac8] sm:$0xff]
    %v689 = vld [vmem:[#allocation2 + $0xad0] sm:$0xff]
    %v690 = vld [vmem:[#allocation2 + $0xad8] sm:$0xff]
    %v691 = vld [vmem:[#allocation2 + $0xae0] sm:$0xff]
    %v692 = vld [vmem:[#allocation2 + $0xae8] sm:$0xff]
    %v693 = vld [vmem:[#allocation2 + $0xaf0] sm:$0xff]
    %v694 = vld [vmem:[#allocation2 + $0xaf8] sm:$0xff]
    %v695 = vld [vmem:[#allocation2 + $0xb00] sm:$0xff]
    %v696 = vld [vmem:[#allocation2 + $0xb08] sm:$0xff]
    %v697 = vld [vmem:[#allocation2 + $0xb10] sm:$0xff]
    %v698 = vld [vmem:[#allocation2 + $0xb18] sm:$0xff]
    %v699 = vld [vmem:[#allocation2 + $0xb20] sm:$0xff]
    %v700 = vld [vmem:[#allocation2 + $0xb28] sm:$0xff]
    %v701 = vld [vmem:[#allocation2 + $0xb30] sm:$0xff]
    %v702 = vld [vmem:[#allocation2 + $0xb38] sm:$0xff]
    %v703 = vld [vmem:[#allocation2 + $0xb40] sm:$0xff]
    %v704 = vld [vmem:[#allocation2 + $0xb48] sm:$0xff]
    %v705 = vld [vmem:[#allocation2 + $0xb50] sm:$0xff]
    %v706 = vld [vmem:[#allocation2 + $0xb58] sm:$0xff]
    %v707 = vld [vmem:[#allocation2 + $0xb60] sm:$0xff]
    %v708 = vld [vmem:[#allocation2 + $0xb68] sm:$0xff]
    %v709 = vld [vmem:[#allocation2 + $0xb70] sm:$0xff]
    %v710 = vld [vmem:[#allocation2 + $0xb78] sm:$0xff]
    %v711 = vld [vmem:[#allocation2 + $0xb80] sm:$0xff]
    %v712 = vld [vmem:[#allocation2 + $0xb88] sm:$0xff]
    %v713 = vld [vmem:[#allocation2 + $0xb90] sm:$0xff]
    %v714 = vld [vmem:[#allocation2 + $0xb98] sm:$0xff]
    %v715 = vld [vmem:[#allocation2 + $0xba0] sm:$0xff]
    %v716 = vld [vmem:[#allocation2 + $0xba8] sm:$0xff]
    %v717 = vld [vmem:[#allocation2 + $0xbb0] sm:$0xff]
    %v718 = vld [vmem:[#allocation2 + $0xbb8] sm:$0xff]
    %v719 = vld [vmem:[#allocation2 + $0xbc0] sm:$0xff]
    %v720 = vld [vmem:[#allocation2 + $0xbc8] sm:$0xff]
    %v721 = vld [vmem:[#allocation2 + $0xbd0] sm:$0xff]
    %v722 = vld [vmem:[#allocation2 + $0xbd8] sm:$0xff]
    %v723 = vld [vmem:[#allocation2 + $0xbe0] sm:$0xff]
    %v724 = vld [vmem:[#allocation2 + $0xbe8] sm:$0xff]
    %v725 = vld [vmem:[#allocation2 + $0xbf0] sm:$0xff]
    %v726 = vld [vmem:[#allocation2 + $0xbf8] sm:$0xff]
    %v727 = vld [vmem:[#allocation2 + $0xc00] sm:$0xff]
    %v728 = vld [vmem:[#allocation2 + $0xc08] sm:$0xff]
    %v729 = vld [vmem:[#allocation2 + $0xc10] sm:$0xff]
    %v730 = vld [vmem:[#allocation2 + $0xc18] sm:$0xff]
    %v731 = vld [vmem:[#allocation2 + $0xc20] sm:$0xff]
    %v732 = vld [vmem:[#allocation2 + $0xc28] sm:$0xff]
    %v733 = vld [vmem:[#allocation2 + $0xc30] sm:$0xff]
    %v734 = vld [vmem:[#allocation2 + $0xc38] sm:$0xff]
    %v735 = vld [vmem:[#allocation2 + $0xc40] sm:$0xff]
    %v736 = vld [vmem:[#allocation2 + $0xc48] sm:$0xff]
    %v737 = vld [vmem:[#allocation2 + $0xc50] sm:$0xff]
    %v738 = vld [vmem:[#allocation2 + $0xc58] sm:$0xff]
    %v739 = vld [vmem:[#allocation2 + $0xc60] sm:$0xff]
    %v740 = vld [vmem:[#allocation2 + $0xc68] sm:$0xff]
    %v741 = vld [vmem:[#allocation2 + $0xc70] sm:$0xff]
    %v742 = vld [vmem:[#allocation2 + $0xc78] sm:$0xff]
    %v743 = vld [vmem:[#allocation2 + $0xc80] sm:$0xff]
    %v744 = vld [vmem:[#allocation2 + $0xc88] sm:$0xff]
    %v745 = vld [vmem:[#allocation2 + $0xc90] sm:$0xff]
    %v746 = vld [vmem:[#allocation2 + $0xc98] sm:$0xff]
    %v747 = vld [vmem:[#allocation2 + $0xca0] sm:$0xff]
    %v748 = vld [vmem:[#allocation2 + $0xca8] sm:$0xff]
    %v749 = vld [vmem:[#allocation2 + $0xcb0] sm:$0xff]
    %v750 = vld [vmem:[#allocation2 + $0xcb8] sm:$0xff]
    %v751 = vld [vmem:[#allocation2 + $0xcc0] sm:$0xff]
    %v752 = vld [vmem:[#allocation2 + $0xcc8] sm:$0xff]
    %v753 = vld [vmem:[#allocation2 + $0xcd0] sm:$0xff]
    %v754 = vld [vmem:[#allocation2 + $0xcd8] sm:$0xff]
    %v755 = vld [vmem:[#allocation2 + $0xce0] sm:$0xff]
    %v756 = vld [vmem:[#allocation2 + $0xce8] sm:$0xff]
    %v757 = vld [vmem:[#allocation2 + $0xcf0] sm:$0xff]
    %v758 = vld [vmem:[#allocation2 + $0xcf8] sm:$0xff]
    %v759 = vld [vmem:[#allocation2 + $0xd00] sm:$0xff]
    %v760 = vld [vmem:[#allocation2 + $0xd08] sm:$0xff]
    %v761 = vld [vmem:[#allocation2 + $0xd10] sm:$0xff]
    %v762 = vld [vmem:[#allocation2 + $0xd18] sm:$0xff]
    %v763 = vld [vmem:[#allocation2 + $0xd20] sm:$0xff]
    %v764 = vld [vmem:[#allocation2 + $0xd28] sm:$0xff]
    %v765 = vld [vmem:[#allocation2 + $0xd30] sm:$0xff]
    %v766 = vld [vmem:[#allocation2 + $0xd38] sm:$0xff]
    %v767 = vld [vmem:[#allocation2 + $0xd40] sm:$0xff]
    %v768 = vld [vmem:[#allocation2 + $0xd48] sm:$0xff]
    %v769 = vld [vmem:[#allocation2 + $0xd50] sm:$0xff]
    %v770 = vld [vmem:[#allocation2 + $0xd58] sm:$0xff]
    %v771 = vld [vmem:[#allocation2 + $0xd60] sm:$0xff]
    %v772 = vld [vmem:[#allocation2 + $0xd68] sm:$0xff]
    %v773 = vld [vmem:[#allocation2 + $0xd70] sm:$0xff]
    %v774 = vld [vmem:[#allocation2 + $0xd78] sm:$0xff]
    %v775 = vld [vmem:[#allocation2 + $0xd80] sm:$0xff]
    %v776 = vld [vmem:[#allocation2 + $0xd88] sm:$0xff]
    %v777 = vld [vmem:[#allocation2 + $0xd90] sm:$0xff]
    %v778 = vld [vmem:[#allocation2 + $0xd98] sm:$0xff]
    %v779 = vld [vmem:[#allocation2 + $0xda0] sm:$0xff]
    %v780 = vld [vmem:[#allocation2 + $0xda8] sm:$0xff]
    %v781 = vld [vmem:[#allocation2 + $0xdb0] sm:$0xff]
    %v782 = vld [vmem:[#allocation2 + $0xdb8] sm:$0xff]
    %v783 = vld [vmem:[#allocation2 + $0xdc0] sm:$0xff]
    %v784 = vld [vmem:[#allocation2 + $0xdc8] sm:$0xff]
    %v785 = vld [vmem:[#allocation2 + $0xdd0] sm:$0xff]
    %v786 = vld [vmem:[#allocation2 + $0xdd8] sm:$0xff]
    %v787 = vld [vmem:[#allocation2 + $0xde0] sm:$0xff]
    %v788 = vld [vmem:[#allocation2 + $0xde8] sm:$0xff]
    %v789 = vld [vmem:[#allocation2 + $0xdf0] sm:$0xff]
    %v790 = vld [vmem:[#allocation2 + $0xdf8] sm:$0xff]
    %v791 = vld [vmem:[#allocation2 + $0xe00] sm:$0xff]
    %v792 = vld [vmem:[#allocation2 + $0xe08] sm:$0xff]
    %v793 = vld [vmem:[#allocation2 + $0xe10] sm:$0xff]
    %v794 = vld [vmem:[#allocation2 + $0xe18] sm:$0xff]
    %v795 = vld [vmem:[#allocation2 + $0xe20] sm:$0xff]
    %v796 = vld [vmem:[#allocation2 + $0xe28] sm:$0xff]
    %v797 = vld [vmem:[#allocation2 + $0xe30] sm:$0xff]
    %v798 = vld [vmem:[#allocation2 + $0xe38] sm:$0xff]
    %v799 = vld [vmem:[#allocation2 + $0xe40] sm:$0xff]
    %v800 = vld [vmem:[#allocation2 + $0xe48] sm:$0xff]
    %v801 = vld [vmem:[#allocation2 + $0xe50] sm:$0xff]
    %v802 = vld [vmem:[#allocation2 + $0xe58] sm:$0xff]
    %v803 = vld [vmem:[#allocation2 + $0xe60] sm:$0xff]
    %v804 = vld [vmem:[#allocation2 + $0xe68] sm:$0xff]
    %v805 = vld [vmem:[#allocation2 + $0xe70] sm:$0xff]
    %v806 = vld [vmem:[#allocation2 + $0xe78] sm:$0xff]
    %v807 = vld [vmem:[#allocation2 + $0xe80] sm:$0xff]
    %v808 = vld [vmem:[#allocation2 + $0xe88] sm:$0xff]
    %v809 = vld [vmem:[#allocation2 + $0xe90] sm:$0xff]
    %v810 = vld [vmem:[#allocation2 + $0xe98] sm:$0xff]
    %v811 = vld [vmem:[#allocation2 + $0xea0] sm:$0xff]
    %v812 = vld [vmem:[#allocation2 + $0xea8] sm:$0xff]
    %v813 = vld [vmem:[#allocation2 + $0xeb0] sm:$0xff]
    %v814 = vld [vmem:[#allocation2 + $0xeb8] sm:$0xff]
    %v815 = vld [vmem:[#allocation2 + $0xec0] sm:$0xff]
    %v816 = vld [vmem:[#allocation2 + $0xec8] sm:$0xff]
    %v817 = vld [vmem:[#allocation2 + $0xed0] sm:$0xff]
    %v818 = vld [vmem:[#allocation2 + $0xed8] sm:$0xff]
    %v819 = vld [vmem:[#allocation2 + $0xee0] sm:$0xff]
    %v820 = vld [vmem:[#allocation2 + $0xee8] sm:$0xff]
    %v821 = vld [vmem:[#allocation2 + $0xef0] sm:$0xff]
    %v822 = vld [vmem:[#allocation2 + $0xef8] sm:$0xff]
    %v823 = vld [vmem:[#allocation2 + $0xf00] sm:$0xff]
    %v824 = vld [vmem:[#allocation2 + $0xf08] sm:$0xff]
    %v825 = vld [vmem:[#allocation2 + $0xf10] sm:$0xff]
    %v826 = vld [vmem:[#allocation2 + $0xf18] sm:$0xff]
    %v827 = vld [vmem:[#allocation2 + $0xf20] sm:$0xff]
    %v828 = vld [vmem:[#allocation2 + $0xf28] sm:$0xff]
    %v829 = vld [vmem:[#allocation2 + $0xf30] sm:$0xff]
    %v830 = vld [vmem:[#allocation2 + $0xf38] sm:$0xff]
    %v831 = vld [vmem:[#allocation2 + $0xf40] sm:$0xff]
    %v832 = vld [vmem:[#allocation2 + $0xf48] sm:$0xff]
    %v833 = vld [vmem:[#allocation2 + $0xf50] sm:$0xff]
    %v834 = vld [vmem:[#allocation2 + $0xf58] sm:$0xff]
    %v835 = vld [vmem:[#allocation2 + $0xf60] sm:$0xff]
    %v836 = vld [vmem:[#allocation2 + $0xf68] sm:$0xff]
    %v837 = vld [vmem:[#allocation2 + $0xf70] sm:$0xff]
    %v838 = vld [vmem:[#allocation2 + $0xf78] sm:$0xff]
    %v839 = vld [vmem:[#allocation2 + $0xf80] sm:$0xff]
    %v840 = vld [vmem:[#allocation2 + $0xf88] sm:$0xff]
    %v841 = vld [vmem:[#allocation2 + $0xf90] sm:$0xff]
    %v842 = vld [vmem:[#allocation2 + $0xf98] sm:$0xff]
    %v843 = vld [vmem:[#allocation2 + $0xfa0] sm:$0xff]
    %v844 = vld [vmem:[#allocation2 + $0xfa8] sm:$0xff]
    %v845 = vld [vmem:[#allocation2 + $0xfb0] sm:$0xff]
    %v846 = vld [vmem:[#allocation2 + $0xfb8] sm:$0xff]
    %v847 = vld [vmem:[#allocation2 + $0xfc0] sm:$0xff]
    %v848 = vld [vmem:[#allocation2 + $0xfc8] sm:$0xff]
    %v849 = vld [vmem:[#allocation2 + $0xfd0] sm:$0xff]
    %v850 = vld [vmem:[#allocation2 + $0xfd8] sm:$0xff]
    %v851 = vld [vmem:[#allocation2 + $0xfe0] sm:$0xff]
    %v852 = vld [vmem:[#allocation2 + $0xfe8] sm:$0xff]
    %v853 = vld [vmem:[#allocation2 + $0xff0] sm:$0xff]
    %v854 = vld [vmem:[#allocation2 + $0xff8] sm:$0xff]
    %v855 = vld [vmem:[#allocation2 + $0x1000] sm:$0xff]
    %v856 = vld [vmem:[#allocation2 + $0x1008] sm:$0xff]
    %v857 = vld [vmem:[#allocation2 + $0x1010] sm:$0xff]
    %v858 = vld [vmem:[#allocation2 + $0x1018] sm:$0xff]
    %v859 = vld [vmem:[#allocation2 + $0x1020] sm:$0xff]
    %v860 = vld [vmem:[#allocation2 + $0x1028] sm:$0xff]
    %v861 = vld [vmem:[#allocation2 + $0x1030] sm:$0xff]
    %v862 = vld [vmem:[#allocation2 + $0x1038] sm:$0xff]
    %v863 = vld [vmem:[#allocation2 + $0x1040] sm:$0xff]
    %v864 = vld [vmem:[#allocation2 + $0x1048] sm:$0xff]
    %v865 = vld [vmem:[#allocation2 + $0x1050] sm:$0xff]
    %v866 = vld [vmem:[#allocation2 + $0x1058] sm:$0xff]
    %v867 = vld [vmem:[#allocation2 + $0x1060] sm:$0xff]
    %v868 = vld [vmem:[#allocation2 + $0x1068] sm:$0xff]
    %v869 = vld [vmem:[#allocation2 + $0x1070] sm:$0xff]
    %v870 = vld [vmem:[#allocation2 + $0x1078] sm:$0xff]
    %v871 = vld [vmem:[#allocation2 + $0x1080] sm:$0xff]
    %v872 = vld [vmem:[#allocation2 + $0x1088] sm:$0xff]
    %v873 = vld [vmem:[#allocation2 + $0x1090] sm:$0xff]
    %v874 = vld [vmem:[#allocation2 + $0x1098] sm:$0xff]
    %v875 = vld [vmem:[#allocation2 + $0x10a0] sm:$0xff]
    %v876 = vld [vmem:[#allocation2 + $0x10a8] sm:$0xff]
    %v877 = vld [vmem:[#allocation2 + $0x10b0] sm:$0xff]
    %v878 = vld [vmem:[#allocation2 + $0x10b8] sm:$0xff]
    %v879 = vld [vmem:[#allocation2 + $0x10c0] sm:$0xff]
    %v880 = vld [vmem:[#allocation2 + $0x10c8] sm:$0xff]
    %v881 = vld [vmem:[#allocation2 + $0x10d0] sm:$0xff]
    %v882 = vld [vmem:[#allocation2 + $0x10d8] sm:$0xff]
    %v883 = vld [vmem:[#allocation2 + $0x10e0] sm:$0xff]
    %v884 = vld [vmem:[#allocation2 + $0x10e8] sm:$0xff]
    %v885 = vld [vmem:[#allocation2 + $0x10f0] sm:$0xff]
    %v886 = vld [vmem:[#allocation2 + $0x10f8] sm:$0xff]
    %v887 = vld [vmem:[#allocation2 + $0x1100] sm:$0xff]
    %v888 = vld [vmem:[#allocation2 + $0x1108] sm:$0xff]
    %v889 = vld [vmem:[#allocation2 + $0x1110] sm:$0xff]
    %v890 = vld [vmem:[#allocation2 + $0x1118] sm:$0xff]
    %v891 = vld [vmem:[#allocation2 + $0x1120] sm:$0xff]
    %v892 = vld [vmem:[#allocation2 + $0x1128] sm:$0xff]
    %v893 = vld [vmem:[#allocation2 + $0x1130] sm:$0xff]
    %v894 = vld [vmem:[#allocation2 + $0x1138] sm:$0xff]
    %v895 = vld [vmem:[#allocation2 + $0x1140] sm:$0xff]
    %v896 = vld [vmem:[#allocation2 + $0x1148] sm:$0xff]
    %v897 = vld [vmem:[#allocation2 + $0x1150] sm:$0xff]
    %v898 = vld [vmem:[#allocation2 + $0x1158] sm:$0xff]
    %v899 = vld [vmem:[#allocation2 + $0x1160] sm:$0xff]
    %v900 = vld [vmem:[#allocation2 + $0x1168] sm:$0xff]
    %v901 = vld [vmem:[#allocation2 + $0x1170] sm:$0xff]
    %v902 = vld [vmem:[#allocation2 + $0x1178] sm:$0xff]
    %v903 = vld [vmem:[#allocation2 + $0x1180] sm:$0xff]
    %v904 = vld [vmem:[#allocation2 + $0x1188] sm:$0xff]
    %v905 = vld [vmem:[#allocation2 + $0x1190] sm:$0xff]
    %v906 = vld [vmem:[#allocation2 + $0x1198] sm:$0xff]
    %v907 = vld [vmem:[#allocation2 + $0x11a0] sm:$0xff]
    %v908 = vld [vmem:[#allocation2 + $0x11a8] sm:$0xff]
    %v909 = vld [vmem:[#allocation2 + $0x11b0] sm:$0xff]
    %v910 = vld [vmem:[#allocation2 + $0x11b8] sm:$0xff]
    %v911 = vld [vmem:[#allocation2 + $0x11c0] sm:$0xff]
    %v912 = vld [vmem:[#allocation2 + $0x11c8] sm:$0xff]
    %v913 = vld [vmem:[#allocation2 + $0x11d0] sm:$0xff]
    %v914 = vld [vmem:[#allocation2 + $0x11d8] sm:$0xff]
    %v915 = vld [vmem:[#allocation2 + $0x11e0] sm:$0xff]
    %v916 = vld [vmem:[#allocation2 + $0x11e8] sm:$0xff]
    %v917 = vld [vmem:[#allocation2 + $0x11f0] sm:$0xff]
    %v918 = vld [vmem:[#allocation2 + $0x11f8] sm:$0xff]
    %v919 = vld [vmem:[#allocation2 + $0x1200] sm:$0xff]
    %v920 = vld [vmem:[#allocation2 + $0x1208] sm:$0xff]
    %v921 = vld [vmem:[#allocation2 + $0x1210] sm:$0xff]
    %v922 = vld [vmem:[#allocation2 + $0x1218] sm:$0xff]
    %v923 = vld [vmem:[#allocation2 + $0x1220] sm:$0xff]
    %v924 = vld [vmem:[#allocation2 + $0x1228] sm:$0xff]
    %v925 = vld [vmem:[#allocation2 + $0x1230] sm:$0xff]
    %v926 = vld [vmem:[#allocation2 + $0x1238] sm:$0xff]
    %v927 = vld [vmem:[#allocation2 + $0x1240] sm:$0xff]
    %v928 = vld [vmem:[#allocation2 + $0x1248] sm:$0xff]
    %v929 = vld [vmem:[#allocation2 + $0x1250] sm:$0xff]
    %v930 = vld [vmem:[#allocation2 + $0x1258] sm:$0xff]
    %v931 = vld [vmem:[#allocation2 + $0x1260] sm:$0xff]
    %v932 = vld [vmem:[#allocation2 + $0x1268] sm:$0xff]
    %v933 = vld [vmem:[#allocation2 + $0x1270] sm:$0xff]
    %v934 = vld [vmem:[#allocation2 + $0x1278] sm:$0xff]
    %v935 = vld [vmem:[#allocation2 + $0x1280] sm:$0xff]
    %v936 = vld [vmem:[#allocation2 + $0x1288] sm:$0xff]
    %v937 = vld [vmem:[#allocation2 + $0x1290] sm:$0xff]
    %v938 = vld [vmem:[#allocation2 + $0x1298] sm:$0xff]
    %v939 = vld [vmem:[#allocation2 + $0x12a0] sm:$0xff]
    %v940 = vld [vmem:[#allocation2 + $0x12a8] sm:$0xff]
    %v941 = vld [vmem:[#allocation2 + $0x12b0] sm:$0xff]
    %v942 = vld [vmem:[#allocation2 + $0x12b8] sm:$0xff]
    %v943 = vld [vmem:[#allocation2 + $0x12c0] sm:$0xff]
    %v944 = vld [vmem:[#allocation2 + $0x12c8] sm:$0xff]
    %v945 = vld [vmem:[#allocation2 + $0x12d0] sm:$0xff]
    %v946 = vld [vmem:[#allocation2 + $0x12d8] sm:$0xff]
    %v947 = vld [vmem:[#allocation2 + $0x12e0] sm:$0xff]
    %v948 = vld [vmem:[#allocation2 + $0x12e8] sm:$0xff]
    %v949 = vld [vmem:[#allocation2 + $0x12f0] sm:$0xff]
    %v950 = vld [vmem:[#allocation2 + $0x12f8] sm:$0xff]
    %v951 = vld [vmem:[#allocation2 + $0x1300] sm:$0xff]
    %v952 = vld [vmem:[#allocation2 + $0x1308] sm:$0xff]
    %v953 = vld [vmem:[#allocation2 + $0x1310] sm:$0xff]
    %v954 = vld [vmem:[#allocation2 + $0x1318] sm:$0xff]
    %v955 = vld [vmem:[#allocation2 + $0x1320] sm:$0xff]
    %v956 = vld [vmem:[#allocation2 + $0x1328] sm:$0xff]
    %v957 = vld [vmem:[#allocation2 + $0x1330] sm:$0xff]
    %v958 = vld [vmem:[#allocation2 + $0x1338] sm:$0xff]
    %v959 = vld [vmem:[#allocation2 + $0x1340] sm:$0xff]
    %v960 = vld [vmem:[#allocation2 + $0x1348] sm:$0xff]
    %v961 = vld [vmem:[#allocation2 + $0x1350] sm:$0xff]
    %v962 = vld [vmem:[#allocation2 + $0x1358] sm:$0xff]
    %v963 = vld [vmem:[#allocation2 + $0x1360] sm:$0xff]
    %v964 = vld [vmem:[#allocation2 + $0x1368] sm:$0xff]
    %v965 = vld [vmem:[#allocation2 + $0x1370] sm:$0xff]
    %v966 = vld [vmem:[#allocation2 + $0x1378] sm:$0xff]
    %v967 = vld [vmem:[#allocation2 + $0x1380] sm:$0xff]
    %v968 = vld [vmem:[#allocation2 + $0x1388] sm:$0xff]
    %v969 = vld [vmem:[#allocation2 + $0x1390] sm:$0xff]
    %v970 = vld [vmem:[#allocation2 + $0x1398] sm:$0xff]
    %v971 = vld [vmem:[#allocation2 + $0x13a0] sm:$0xff]
    %v972 = vld [vmem:[#allocation2 + $0x13a8] sm:$0xff]
    %v973 = vld [vmem:[#allocation2 + $0x13b0] sm:$0xff]
    %v974 = vld [vmem:[#allocation2 + $0x13b8] sm:$0xff]
    %v975 = vld [vmem:[#allocation2 + $0x13c0] sm:$0xff]
    %v976 = vld [vmem:[#allocation2 + $0x13c8] sm:$0xff]
    %v977 = vld [vmem:[#allocation2 + $0x13d0] sm:$0xff]
    %v978 = vld [vmem:[#allocation2 + $0x13d8] sm:$0xff]
    %v979 = vld [vmem:[#allocation2 + $0x13e0] sm:$0xff]
    %v980 = vld [vmem:[#allocation2 + $0x13e8] sm:$0xff]
    %v981 = vld [vmem:[#allocation2 + $0x13f0] sm:$0xff]
    %v982 = vld [vmem:[#allocation2 + $0x13f8] sm:$0xff]
    %v983 = vld [vmem:[#allocation2 + $0x1400] sm:$0xff]
    %v984 = vld [vmem:[#allocation2 + $0x1408] sm:$0xff]
    %v985 = vld [vmem:[#allocation2 + $0x1410] sm:$0xff]
    %v986 = vld [vmem:[#allocation2 + $0x1418] sm:$0xff]
    %v987 = vld [vmem:[#allocation2 + $0x1420] sm:$0xff]
    %v988 = vld [vmem:[#allocation2 + $0x1428] sm:$0xff]
    %v989 = vld [vmem:[#allocation2 + $0x1430] sm:$0xff]
    %v990 = vld [vmem:[#allocation2 + $0x1438] sm:$0xff]
    %v991 = vld [vmem:[#allocation2 + $0x1440] sm:$0xff]
    %v992 = vld [vmem:[#allocation2 + $0x1448] sm:$0xff]
    %v993 = vld [vmem:[#allocation2 + $0x1450] sm:$0xff]
    %v994 = vld [vmem:[#allocation2 + $0x1458] sm:$0xff]
    %v995 = vld [vmem:[#allocation2 + $0x1460] sm:$0xff]
    %v996 = vld [vmem:[#allocation2 + $0x1468] sm:$0xff]
    %v997 = vld [vmem:[#allocation2 + $0x1470] sm:$0xff]
    %v998 = vld [vmem:[#allocation2 + $0x1478] sm:$0xff]
    %v999 = vld [vmem:[#allocation2 + $0x1480] sm:$0xff]
    %v1000 = vld [vmem:[#allocation2 + $0x1488] sm:$0xff]
    %v1001 = vld [vmem:[#allocation2 + $0x1490] sm:$0xff]
    %v1002 = vld [vmem:[#allocation2 + $0x1498] sm:$0xff]
    %v1003 = vld [vmem:[#allocation2 + $0x14a0] sm:$0xff]
    %v1004 = vld [vmem:[#allocation2 + $0x14a8] sm:$0xff]
    %v1005 = vld [vmem:[#allocation2 + $0x14b0] sm:$0xff]
    %v1006 = vld [vmem:[#allocation2 + $0x14b8] sm:$0xff]
    %v1007 = vld [vmem:[#allocation2 + $0x14c0] sm:$0xff]
    %v1008 = vld [vmem:[#allocation2 + $0x14c8] sm:$0xff]
    %v1009 = vld [vmem:[#allocation2 + $0x14d0] sm:$0xff]
    %v1010 = vld [vmem:[#allocation2 + $0x14d8] sm:$0xff]
    %v1011 = vld [vmem:[#allocation2 + $0x14e0] sm:$0xff]
    %v1012 = vld [vmem:[#allocation2 + $0x14e8] sm:$0xff]
    %v1013 = vld [vmem:[#allocation2 + $0x14f0] sm:$0xff]
    %v1014 = vld [vmem:[#allocation2 + $0x14f8] sm:$0xff]
    %v1015 = vld [vmem:[#allocation2 + $0x1500] sm:$0xff]
    %v1016 = vld [vmem:[#allocation2 + $0x1508] sm:$0xff]
    %v1017 = vld [vmem:[#allocation2 + $0x1510] sm:$0xff]
    %v1018 = vld [vmem:[#allocation2 + $0x1518] sm:$0xff]
    %v1019 = vld [vmem:[#allocation2 + $0x1520] sm:$0xff]
    %v1020 = vld [vmem:[#allocation2 + $0x1528] sm:$0xff]
    %v1021 = vld [vmem:[#allocation2 + $0x1530] sm:$0xff]
    %v1022 = vld [vmem:[#allocation2 + $0x1538] sm:$0xff]
    %v1023 = vld [vmem:[#allocation2 + $0x1540] sm:$0xff]
    %v1024 = vld [vmem:[#allocation2 + $0x1548] sm:$0xff]
    %v1025 = vld [vmem:[#allocation2 + $0x1550] sm:$0xff]
    %v1026 = vld [vmem:[#allocation2 + $0x1558] sm:$0xff]
    %v1027 = vld [vmem:[#allocation2 + $0x1560] sm:$0xff]
    %v1028 = vld [vmem:[#allocation2 + $0x1568] sm:$0xff]
    %v1029 = vld [vmem:[#allocation2 + $0x1570] sm:$0xff]
    %v1030 = vld [vmem:[#allocation2 + $0x1578] sm:$0xff]
    %v1031 = vld [vmem:[#allocation2 + $0x1580] sm:$0xff]
    %v1032 = vld [vmem:[#allocation2 + $0x1588] sm:$0xff]
    %v1033 = vld [vmem:[#allocation2 + $0x1590] sm:$0xff]
    %v1034 = vld [vmem:[#allocation2 + $0x1598] sm:$0xff]
    %v1035 = vld [vmem:[#allocation2 + $0x15a0] sm:$0xff]
    %v1036 = vld [vmem:[#allocation2 + $0x15a8] sm:$0xff]
    %v1037 = vld [vmem:[#allocation2 + $0x15b0] sm:$0xff]
    %v1038 = vld [vmem:[#allocation2 + $0x15b8] sm:$0xff]
    %v1039 = vld [vmem:[#allocation2 + $0x15c0] sm:$0xff]
    %v1040 = vld [vmem:[#allocation2 + $0x15c8] sm:$0xff]
    %v1041 = vld [vmem:[#allocation2 + $0x15d0] sm:$0xff]
    %v1042 = vld [vmem:[#allocation2 + $0x15d8] sm:$0xff]
    %v1043 = vld [vmem:[#allocation2 + $0x15e0] sm:$0xff]
    %v1044 = vld [vmem:[#allocation2 + $0x15e8] sm:$0xff]
    %v1045 = vld [vmem:[#allocation2 + $0x15f0] sm:$0xff]
    %v1046 = vld [vmem:[#allocation2 + $0x15f8] sm:$0xff]
    %v1047 = vld [vmem:[#allocation2 + $0x1600] sm:$0xff]
    %v1048 = vld [vmem:[#allocation2 + $0x1608] sm:$0xff]
    %v1049 = vld [vmem:[#allocation2 + $0x1610] sm:$0xff]
    %v1050 = vld [vmem:[#allocation2 + $0x1618] sm:$0xff]
    %v1051 = vld [vmem:[#allocation2 + $0x1620] sm:$0xff]
    %v1052 = vld [vmem:[#allocation2 + $0x1628] sm:$0xff]
    %v1053 = vld [vmem:[#allocation2 + $0x1630] sm:$0xff]
    %v1054 = vld [vmem:[#allocation2 + $0x1638] sm:$0xff]
    %v1055 = vld [vmem:[#allocation2 + $0x1640] sm:$0xff]
    %v1056 = vld [vmem:[#allocation2 + $0x1648] sm:$0xff]
    %v1057 = vld [vmem:[#allocation2 + $0x1650] sm:$0xff]
    %v1058 = vld [vmem:[#allocation2 + $0x1658] sm:$0xff]
    %v1059 = vld [vmem:[#allocation2 + $0x1660] sm:$0xff]
    %v1060 = vld [vmem:[#allocation2 + $0x1668] sm:$0xff]
    %v1061 = vld [vmem:[#allocation2 + $0x1670] sm:$0xff]
    %v1062 = vld [vmem:[#allocation2 + $0x1678] sm:$0xff]
    %v1063 = vld [vmem:[#allocation2 + $0x1680] sm:$0xff]
    %v1064 = vld [vmem:[#allocation2 + $0x1688] sm:$0xff]
    %v1065 = vld [vmem:[#allocation2 + $0x1690] sm:$0xff]
    %v1066 = vld [vmem:[#allocation2 + $0x1698] sm:$0xff]
    %v1067 = vld [vmem:[#allocation2 + $0x16a0] sm:$0xff]
    %v1068 = vld [vmem:[#allocation2 + $0x16a8] sm:$0xff]
    %v1069 = vld [vmem:[#allocation2 + $0x16b0] sm:$0xff]
    %v1070 = vld [vmem:[#allocation2 + $0x16b8] sm:$0xff]
    %v1071 = vld [vmem:[#allocation2 + $0x16c0] sm:$0xff]
    %v1072 = vld [vmem:[#allocation2 + $0x16c8] sm:$0xff]
    %v1073 = vld [vmem:[#allocation2 + $0x16d0] sm:$0xff]
    %v1074 = vld [vmem:[#allocation2 + $0x16d8] sm:$0xff]
    %v1075 = vld [vmem:[#allocation2 + $0x16e0] sm:$0xff]
    %v1076 = vld [vmem:[#allocation2 + $0x16e8] sm:$0xff]
    %v1077 = vld [vmem:[#allocation2 + $0x16f0] sm:$0xff]
    %v1078 = vld [vmem:[#allocation2 + $0x16f8] sm:$0xff]
    %v1079 = vld [vmem:[#allocation2 + $0x1700] sm:$0xff]
    %v1080 = vld [vmem:[#allocation2 + $0x1708] sm:$0xff]
    %v1081 = vld [vmem:[#allocation2 + $0x1710] sm:$0xff]
    %v1082 = vld [vmem:[#allocation2 + $0x1718] sm:$0xff]
    %v1083 = vld [vmem:[#allocation2 + $0x1720] sm:$0xff]
    %v1084 = vld [vmem:[#allocation2 + $0x1728] sm:$0xff]
    %v1085 = vld [vmem:[#allocation2 + $0x1730] sm:$0xff]
    %v1086 = vld [vmem:[#allocation2 + $0x1738] sm:$0xff]
    %v1087 = vld [vmem:[#allocation2 + $0x1740] sm:$0xff]
    %v1088 = vld [vmem:[#allocation2 + $0x1748] sm:$0xff]
    %v1089 = vld [vmem:[#allocation2 + $0x1750] sm:$0xff]
    %v1090 = vld [vmem:[#allocation2 + $0x1758] sm:$0xff]
    %v1091 = vld [vmem:[#allocation2 + $0x1760] sm:$0xff]
    %v1092 = vld [vmem:[#allocation2 + $0x1768] sm:$0xff]
    %v1093 = vld [vmem:[#allocation2 + $0x1770] sm:$0xff]
    %v1094 = vld [vmem:[#allocation2 + $0x1778] sm:$0xff]
    %v1095 = vld [vmem:[#allocation2 + $0x1780] sm:$0xff]
    %v1096 = vld [vmem:[#allocation2 + $0x1788] sm:$0xff]
    %v1097 = vld [vmem:[#allocation2 + $0x1790] sm:$0xff]
    %v1098 = vld [vmem:[#allocation2 + $0x1798] sm:$0xff]
    %v1099 = vld [vmem:[#allocation2 + $0x17a0] sm:$0xff]
    %v1100 = vld [vmem:[#allocation2 + $0x17a8] sm:$0xff]
    %v1101 = vld [vmem:[#allocation2 + $0x17b0] sm:$0xff]
    %v1102 = vld [vmem:[#allocation2 + $0x17b8] sm:$0xff]
    %v1103 = vld [vmem:[#allocation2 + $0x17c0] sm:$0xff]
    %v1104 = vld [vmem:[#allocation2 + $0x17c8] sm:$0xff]
    %v1105 = vld [vmem:[#allocation2 + $0x17d0] sm:$0xff]
    %v1106 = vld [vmem:[#allocation2 + $0x17d8] sm:$0xff]
    %v1107 = vld [vmem:[#allocation2 + $0x17e0] sm:$0xff]
    %v1108 = vld [vmem:[#allocation2 + $0x17e8] sm:$0xff]
    %v1109 = vld [vmem:[#allocation2 + $0x17f0] sm:$0xff]
    %v1110 = vld [vmem:[#allocation2 + $0x17f8] sm:$0xff]
    %v1111 = vld [vmem:[#allocation2 + $0x1800] sm:$0xff]
    %v1112 = vld [vmem:[#allocation2 + $0x1808] sm:$0xff]
    %v1113 = vld [vmem:[#allocation2 + $0x1810] sm:$0xff]
    %v1114 = vld [vmem:[#allocation2 + $0x1818] sm:$0xff]
    %v1115 = vld [vmem:[#allocation2 + $0x1820] sm:$0xff]
    %v1116 = vld [vmem:[#allocation2 + $0x1828] sm:$0xff]
    %v1117 = vld [vmem:[#allocation2 + $0x1830] sm:$0xff]
    %v1118 = vld [vmem:[#allocation2 + $0x1838] sm:$0xff]
    %v1119 = vld [vmem:[#allocation2 + $0x1840] sm:$0xff]
    %v1120 = vld [vmem:[#allocation2 + $0x1848] sm:$0xff]
    %v1121 = vld [vmem:[#allocation2 + $0x1850] sm:$0xff]
    %v1122 = vld [vmem:[#allocation2 + $0x1858] sm:$0xff]
    %v1123 = vld [vmem:[#allocation2 + $0x1860] sm:$0xff]
    %v1124 = vld [vmem:[#allocation2 + $0x1868] sm:$0xff]
    %v1125 = vld [vmem:[#allocation2 + $0x1870] sm:$0xff]
    %v1126 = vld [vmem:[#allocation2 + $0x1878] sm:$0xff]
    %v1127 = vld [vmem:[#allocation2 + $0x1880] sm:$0xff]
    %v1128 = vld [vmem:[#allocation2 + $0x1888] sm:$0xff]
    %v1129 = vld [vmem:[#allocation2 + $0x1890] sm:$0xff]
    %v1130 = vld [vmem:[#allocation2 + $0x1898] sm:$0xff]
    %v1131 = vld [vmem:[#allocation2 + $0x18a0] sm:$0xff]
    %v1132 = vld [vmem:[#allocation2 + $0x18a8] sm:$0xff]
    %v1133 = vld [vmem:[#allocation2 + $0x18b0] sm:$0xff]
    %v1134 = vld [vmem:[#allocation2 + $0x18b8] sm:$0xff]
    %v1135 = vld [vmem:[#allocation2 + $0x18c0] sm:$0xff]
    %v1136 = vld [vmem:[#allocation2 + $0x18c8] sm:$0xff]
    %v1137 = vld [vmem:[#allocation2 + $0x18d0] sm:$0xff]
    %v1138 = vld [vmem:[#allocation2 + $0x18d8] sm:$0xff]
    %v1139 = vld [vmem:[#allocation2 + $0x18e0] sm:$0xff]
    %v1140 = vld [vmem:[#allocation2 + $0x18e8] sm:$0xff]
    %v1141 = vld [vmem:[#allocation2 + $0x18f0] sm:$0xff]
    %v1142 = vld [vmem:[#allocation2 + $0x18f8] sm:$0xff]
    %v1143 = vld [vmem:[#allocation2 + $0x1900] sm:$0xff]
    %v1144 = vld [vmem:[#allocation2 + $0x1908] sm:$0xff]
    %v1145 = vld [vmem:[#allocation2 + $0x1910] sm:$0xff]
    %v1146 = vld [vmem:[#allocation2 + $0x1918] sm:$0xff]
    %v1147 = vld [vmem:[#allocation2 + $0x1920] sm:$0xff]
    %v1148 = vld [vmem:[#allocation2 + $0x1928] sm:$0xff]
    %v1149 = vld [vmem:[#allocation2 + $0x1930] sm:$0xff]
    %v1150 = vld [vmem:[#allocation2 + $0x1938] sm:$0xff]
    %v1151 = vld [vmem:[#allocation2 + $0x1940] sm:$0xff]
    %v1152 = vld [vmem:[#allocation2 + $0x1948] sm:$0xff]
    %v1153 = vld [vmem:[#allocation2 + $0x1950] sm:$0xff]
    %v1154 = vld [vmem:[#allocation2 + $0x1958] sm:$0xff]
    %v1155 = vld [vmem:[#allocation2 + $0x1960] sm:$0xff]
    %v1156 = vld [vmem:[#allocation2 + $0x1968] sm:$0xff]
    %v1157 = vld [vmem:[#allocation2 + $0x1970] sm:$0xff]
    %v1158 = vld [vmem:[#allocation2 + $0x1978] sm:$0xff]
    %v1159 = vld [vmem:[#allocation2 + $0x1980] sm:$0xff]
    %v1160 = vld [vmem:[#allocation2 + $0x1988] sm:$0xff]
    %v1161 = vld [vmem:[#allocation2 + $0x1990] sm:$0xff]
    %v1162 = vld [vmem:[#allocation2 + $0x1998] sm:$0xff]
    %v1163 = vld [vmem:[#allocation2 + $0x19a0] sm:$0xff]
    %v1164 = vld [vmem:[#allocation2 + $0x19a8] sm:$0xff]
    %v1165 = vld [vmem:[#allocation2 + $0x19b0] sm:$0xff]
    %v1166 = vld [vmem:[#allocation2 + $0x19b8] sm:$0xff]
    %v1167 = vld [vmem:[#allocation2 + $0x19c0] sm:$0xff]
    %v1168 = vld [vmem:[#allocation2 + $0x19c8] sm:$0xff]
    %v1169 = vld [vmem:[#allocation2 + $0x19d0] sm:$0xff]
    %v1170 = vld [vmem:[#allocation2 + $0x19d8] sm:$0xff]
    %v1171 = vld [vmem:[#allocation2 + $0x19e0] sm:$0xff]
    %v1172 = vld [vmem:[#allocation2 + $0x19e8] sm:$0xff]
    %v1173 = vld [vmem:[#allocation2 + $0x19f0] sm:$0xff]
    %v1174 = vld [vmem:[#allocation2 + $0x19f8] sm:$0xff]
    %v1175 = vld [vmem:[#allocation2 + $0x1a00] sm:$0xff]
    %v1176 = vld [vmem:[#allocation2 + $0x1a08] sm:$0xff]
    %v1177 = vld [vmem:[#allocation2 + $0x1a10] sm:$0xff]
    %v1178 = vld [vmem:[#allocation2 + $0x1a18] sm:$0xff]
    %v1179 = vld [vmem:[#allocation2 + $0x1a20] sm:$0xff]
    %v1180 = vld [vmem:[#allocation2 + $0x1a28] sm:$0xff]
    %v1181 = vld [vmem:[#allocation2 + $0x1a30] sm:$0xff]
    %v1182 = vld [vmem:[#allocation2 + $0x1a38] sm:$0xff]
    %v1183 = vld [vmem:[#allocation2 + $0x1a40] sm:$0xff]
    %v1184 = vld [vmem:[#allocation2 + $0x1a48] sm:$0xff]
    %v1185 = vld [vmem:[#allocation2 + $0x1a50] sm:$0xff]
    %v1186 = vld [vmem:[#allocation2 + $0x1a58] sm:$0xff]
    %v1187 = vld [vmem:[#allocation2 + $0x1a60] sm:$0xff]
    %v1188 = vld [vmem:[#allocation2 + $0x1a68] sm:$0xff]
    %v1189 = vld [vmem:[#allocation2 + $0x1a70] sm:$0xff]
    %v1190 = vld [vmem:[#allocation2 + $0x1a78] sm:$0xff]
    %v1191 = vld [vmem:[#allocation2 + $0x1a80] sm:$0xff]
    %v1192 = vld [vmem:[#allocation2 + $0x1a88] sm:$0xff]
    %v1193 = vld [vmem:[#allocation2 + $0x1a90] sm:$0xff]
    %v1194 = vld [vmem:[#allocation2 + $0x1a98] sm:$0xff]
    %v1195 = vld [vmem:[#allocation2 + $0x1aa0] sm:$0xff]
    %v1196 = vld [vmem:[#allocation2 + $0x1aa8] sm:$0xff]
    %v1197 = vld [vmem:[#allocation2 + $0x1ab0] sm:$0xff]
    %v1198 = vld [vmem:[#allocation2 + $0x1ab8] sm:$0xff]
    %v1199 = vld [vmem:[#allocation2 + $0x1ac0] sm:$0xff]
    %v1200 = vld [vmem:[#allocation2 + $0x1ac8] sm:$0xff]
    %v1201 = vld [vmem:[#allocation2 + $0x1ad0] sm:$0xff]
    %v1202 = vld [vmem:[#allocation2 + $0x1ad8] sm:$0xff]
    %v1203 = vld [vmem:[#allocation2 + $0x1ae0] sm:$0xff]
    %v1204 = vld [vmem:[#allocation2 + $0x1ae8] sm:$0xff]
    %v1205 = vld [vmem:[#allocation2 + $0x1af0] sm:$0xff]
    %v1206 = vld [vmem:[#allocation2 + $0x1af8] sm:$0xff]
    %v1210 = vperm.slane %v222, 0
    %v1211 = vperm.slane %v222, 1
    %v1212 = vperm.slane %v222, 2
    %v1213 = vperm.slane %v222, 3
    %v1214 = vperm.slane %v222, 4
    %v1215 = vperm.slane %v222, 5
    %v1216 = vperm.slane %v222, 6
    %v1217 = vperm.slane %v222, 7
    %v1218 = vperm.slane %v223, 0
    %v1219 = vperm.slane %v223, 1
    %v1220 = vperm.slane %v223, 2
    %v1221 = vperm.slane %v223, 3
    %v1222 = vperm.slane %v223, 4
    %v1223 = vperm.slane %v223, 5
    %v1224 = vperm.slane %v223, 6
    %v1225 = vperm.slane %v223, 7
    %v1226 = vperm.slane %v224, 0
    %v1227 = vperm.slane %v224, 1
    %1246 = vmatpush.msra.mxu0 %v613
    %1247 = vmatpush.msra.mxu0 %v595
    %1248 = vmatpush.msra.mxu0 %v577
    %1249 = vmatpush.msra.mxu0 %v559
    %1250 = vmatpush.msra.mxu0 %v541
    %1251 = vmatpush.msra.mxu0 %v523
    %1252 = vmatpush.msra.mxu0 %v505
    %1253 = vmatpush.msra.mxu0 %v487
    %1254 = vmatpush.msra.mxu0 %v469
    %1255 = vmatpush.msra.mxu0 %v451
    %1256 = vmatpush.msra.mxu0 %v433
    %1257 = vmatpush.msra.mxu0 %v415
    %1258 = vmatpush.msra.mxu0 %v397
    %1259 = vmatpush.msra.mxu0 %v379
    %1260 = vmatpush.msra.mxu0 %v361
    %1261 = vmatpush.msra.mxu0 %v343
    %1262 = vmatmul.f32.gmra.mxu0 %v337
    %v1263 = vpop.f32.mrf.mxu0
    %v1264 = vadd.f32 %v1210, %v1263
    %1265 = vmatmul.f32.gmra.mxu0 %v340
    %v1266 = vpop.f32.mrf.mxu0
    %v1267 = vadd.f32 %v1210, %v1266
    %1268 = vdwg.mxu0
    %1269 = vmatpush.msra.mxu0 %v901
    %1270 = vmatpush.msra.mxu0 %v883
    %1271 = vmatpush.msra.mxu0 %v865
    %1272 = vmatpush.msra.mxu0 %v847
    %1273 = vmatpush.msra.mxu0 %v829
    %1274 = vmatpush.msra.mxu0 %v811
    %1275 = vmatpush.msra.mxu0 %v793
    %1276 = vmatpush.msra.mxu0 %v775
    %1277 = vmatpush.msra.mxu0 %v757
    %1278 = vmatpush.msra.mxu0 %v739
    %1279 = vmatpush.msra.mxu0 %v721
    %1280 = vmatpush.msra.mxu0 %v703
    %1281 = vmatpush.msra.mxu0 %v685
    %1282 = vmatpush.msra.mxu0 %v667
    %1283 = vmatpush.msra.mxu0 %v649
    %1284 = vmatpush.msra.mxu0 %v631
    %1285 = vmatmul.f32.gmra.mxu0 %v338
    %v1286 = vpop.f32.mrf.mxu0
    %v1287 = vadd.f32 %v1264, %v1286
    %1288 = vmatmul.f32.gmra.mxu0 %v341
    %v1289 = vpop.f32.mrf.mxu0
    %v1290 = vadd.f32 %v1267, %v1289
    %1291 = vdwg.mxu0
    %1292 = vmatpush.msra.mxu0 %v1189
    %1293 = vmatpush.msra.mxu0 %v1171
    %1294 = vmatpush.msra.mxu0 %v1153
    %1295 = vmatpush.msra.mxu0 %v1135
    %1296 = vmatpush.msra.mxu0 %v1117
    %1297 = vmatpush.msra.mxu0 %v1099
    %1298 = vmatpush.msra.mxu0 %v1081
    %1299 = vmatpush.msra.mxu0 %v1063
    %1300 = vmatpush.msra.mxu0 %v1045
    %1301 = vmatpush.msra.mxu0 %v1027
    %1302 = vmatpush.msra.mxu0 %v1009
    %1303 = vmatpush.msra.mxu0 %v991
    %1304 = vmatpush.msra.mxu0 %v973
    %1305 = vmatpush.msra.mxu0 %v955
    %1306 = vmatpush.msra.mxu0 %v937
    %1307 = vmatpush.msra.mxu0 %v919
    %1308 = vmatmul.f32.gmra.mxu0 %v339
    %v1309 = vpop.f32.mrf.mxu0
    %v1310 = vadd.f32 %v1287, %v1309
    %1311 = vmatmul.f32.gmra.mxu0 %v342
    %v1312 = vpop.f32.mrf.mxu0
    %v1313 = vadd.f32 %v1290, %v1312
    %1314 = vdwg.mxu0
    %1315 = vmatpush.msra.mxu0 %v614
    %1316 = vmatpush.msra.mxu0 %v596
    %1317 = vmatpush.msra.mxu0 %v578
    %1318 = vmatpush.msra.mxu0 %v560
    %1319 = vmatpush.msra.mxu0 %v542
    %1320 = vmatpush.msra.mxu0 %v524
    %1321 = vmatpush.msra.mxu0 %v506
    %1322 = vmatpush.msra.mxu0 %v488
    %1323 = vmatpush.msra.mxu0 %v470
    %1324 = vmatpush.msra.mxu0 %v452
    %1325 = vmatpush.msra.mxu0 %v434
    %1326 = vmatpush.msra.mxu0 %v416
    %1327 = vmatpush.msra.mxu0 %v398
    %1328 = vmatpush.msra.mxu0 %v380
    %1329 = vmatpush.msra.mxu0 %v362
    %1330 = vmatpush.msra.mxu0 %v344
    %1331 = vmatmul.f32.gmra.mxu0 %v337
    %v1332 = vpop.f32.mrf.mxu0
    %v1333 = vadd.f32 %v1211, %v1332
    %1334 = vmatmul.f32.gmra.mxu0 %v340
    %v1335 = vpop.f32.mrf.mxu0
    %v1336 = vadd.f32 %v1211, %v1335
    %1337 = vdwg.mxu0
    %1338 = vmatpush.msra.mxu0 %v902
    %1339 = vmatpush.msra.mxu0 %v884
    %1340 = vmatpush.msra.mxu0 %v866
    %1341 = vmatpush.msra.mxu0 %v848
    %1342 = vmatpush.msra.mxu0 %v830
    %1343 = vmatpush.msra.mxu0 %v812
    %1344 = vmatpush.msra.mxu0 %v794
    %1345 = vmatpush.msra.mxu0 %v776
    %1346 = vmatpush.msra.mxu0 %v758
    %1347 = vmatpush.msra.mxu0 %v740
    %1348 = vmatpush.msra.mxu0 %v722
    %1349 = vmatpush.msra.mxu0 %v704
    %1350 = vmatpush.msra.mxu0 %v686
    %1351 = vmatpush.msra.mxu0 %v668
    %1352 = vmatpush.msra.mxu0 %v650
    %1353 = vmatpush.msra.mxu0 %v632
    %1354 = vmatmul.f32.gmra.mxu0 %v338
    %v1355 = vpop.f32.mrf.mxu0
    %v1356 = vadd.f32 %v1333, %v1355
    %1357 = vmatmul.f32.gmra.mxu0 %v341
    %v1358 = vpop.f32.mrf.mxu0
    %v1359 = vadd.f32 %v1336, %v1358
    %1360 = vdwg.mxu0
    %1361 = vmatpush.msra.mxu0 %v1190
    %1362 = vmatpush.msra.mxu0 %v1172
    %1363 = vmatpush.msra.mxu0 %v1154
    %1364 = vmatpush.msra.mxu0 %v1136
    %1365 = vmatpush.msra.mxu0 %v1118
    %1366 = vmatpush.msra.mxu0 %v1100
    %1367 = vmatpush.msra.mxu0 %v1082
    %1368 = vmatpush.msra.mxu0 %v1064
    %1369 = vmatpush.msra.mxu0 %v1046
    %1370 = vmatpush.msra.mxu0 %v1028
    %1371 = vmatpush.msra.mxu0 %v1010
    %1372 = vmatpush.msra.mxu0 %v992
    %1373 = vmatpush.msra.mxu0 %v974
    %1374 = vmatpush.msra.mxu0 %v956
    %1375 = vmatpush.msra.mxu0 %v938
    %1376 = vmatpush.msra.mxu0 %v920
    %1377 = vmatmul.f32.gmra.mxu0 %v339
    %v1378 = vpop.f32.mrf.mxu0
    %v1379 = vadd.f32 %v1356, %v1378
    %1380 = vmatmul.f32.gmra.mxu0 %v342
    %v1381 = vpop.f32.mrf.mxu0
    %v1382 = vadd.f32 %v1359, %v1381
    %1383 = vdwg.mxu0
    %1384 = vmatpush.msra.mxu0 %v615
    %1385 = vmatpush.msra.mxu0 %v597
    %1386 = vmatpush.msra.mxu0 %v579
    %1387 = vmatpush.msra.mxu0 %v561
    %1388 = vmatpush.msra.mxu0 %v543
    %1389 = vmatpush.msra.mxu0 %v525
    %1390 = vmatpush.msra.mxu0 %v507
    %1391 = vmatpush.msra.mxu0 %v489
    %1392 = vmatpush.msra.mxu0 %v471
    %1393 = vmatpush.msra.mxu0 %v453
    %1394 = vmatpush.msra.mxu0 %v435
    %1395 = vmatpush.msra.mxu0 %v417
    %1396 = vmatpush.msra.mxu0 %v399
    %1397 = vmatpush.msra.mxu0 %v381
    %1398 = vmatpush.msra.mxu0 %v363
    %1399 = vmatpush.msra.mxu0 %v345
    %1400 = vmatmul.f32.gmra.mxu0 %v337
    %v1401 = vpop.f32.mrf.mxu0
    %v1402 = vadd.f32 %v1212, %v1401
    %1403 = vmatmul.f32.gmra.mxu0 %v340
    %v1404 = vpop.f32.mrf.mxu0
    %v1405 = vadd.f32 %v1212, %v1404
    %1406 = vdwg.mxu0
    %1407 = vmatpush.msra.mxu0 %v903
    %1408 = vmatpush.msra.mxu0 %v885
    %1409 = vmatpush.msra.mxu0 %v867
    %1410 = vmatpush.msra.mxu0 %v849
    %1411 = vmatpush.msra.mxu0 %v831
    %1412 = vmatpush.msra.mxu0 %v813
    %1413 = vmatpush.msra.mxu0 %v795
    %1414 = vmatpush.msra.mxu0 %v777
    %1415 = vmatpush.msra.mxu0 %v759
    %1416 = vmatpush.msra.mxu0 %v741
    %1417 = vmatpush.msra.mxu0 %v723
    %1418 = vmatpush.msra.mxu0 %v705
    %1419 = vmatpush.msra.mxu0 %v687
    %1420 = vmatpush.msra.mxu0 %v669
    %1421 = vmatpush.msra.mxu0 %v651
    %1422 = vmatpush.msra.mxu0 %v633
    %1423 = vmatmul.f32.gmra.mxu0 %v338
    %v1424 = vpop.f32.mrf.mxu0
    %v1425 = vadd.f32 %v1402, %v1424
    %1426 = vmatmul.f32.gmra.mxu0 %v341
    %v1427 = vpop.f32.mrf.mxu0
    %v1428 = vadd.f32 %v1405, %v1427
    %1429 = vdwg.mxu0
    %1430 = vmatpush.msra.mxu0 %v1191
    %1431 = vmatpush.msra.mxu0 %v1173
    %1432 = vmatpush.msra.mxu0 %v1155
    %1433 = vmatpush.msra.mxu0 %v1137
    %1434 = vmatpush.msra.mxu0 %v1119
    %1435 = vmatpush.msra.mxu0 %v1101
    %1436 = vmatpush.msra.mxu0 %v1083
    %1437 = vmatpush.msra.mxu0 %v1065
    %1438 = vmatpush.msra.mxu0 %v1047
    %1439 = vmatpush.msra.mxu0 %v1029
    %1440 = vmatpush.msra.mxu0 %v1011
    %1441 = vmatpush.msra.mxu0 %v993
    %1442 = vmatpush.msra.mxu0 %v975
    %1443 = vmatpush.msra.mxu0 %v957
    %1444 = vmatpush.msra.mxu0 %v939
    %1445 = vmatpush.msra.mxu0 %v921
    %1446 = vmatmul.f32.gmra.mxu0 %v339
    %v1447 = vpop.f32.mrf.mxu0
    %v1448 = vadd.f32 %v1425, %v1447
    %1449 = vmatmul.f32.gmra.mxu0 %v342
    %v1450 = vpop.f32.mrf.mxu0
    %v1451 = vadd.f32 %v1428, %v1450
    %1452 = vdwg.mxu0
    %1453 = vmatpush.msra.mxu0 %v616
    %1454 = vmatpush.msra.mxu0 %v598
    %1455 = vmatpush.msra.mxu0 %v580
    %1456 = vmatpush.msra.mxu0 %v562
    %1457 = vmatpush.msra.mxu0 %v544
    %1458 = vmatpush.msra.mxu0 %v526
    %1459 = vmatpush.msra.mxu0 %v508
    %1460 = vmatpush.msra.mxu0 %v490
    %1461 = vmatpush.msra.mxu0 %v472
    %1462 = vmatpush.msra.mxu0 %v454
    %1463 = vmatpush.msra.mxu0 %v436
    %1464 = vmatpush.msra.mxu0 %v418
    %1465 = vmatpush.msra.mxu0 %v400
    %1466 = vmatpush.msra.mxu0 %v382
    %1467 = vmatpush.msra.mxu0 %v364
    %1468 = vmatpush.msra.mxu0 %v346
    %1469 = vmatmul.f32.gmra.mxu0 %v337
    %v1470 = vpop.f32.mrf.mxu0
    %v1471 = vadd.f32 %v1213, %v1470
    %1472 = vmatmul.f32.gmra.mxu0 %v340
    %v1473 = vpop.f32.mrf.mxu0
    %v1474 = vadd.f32 %v1213, %v1473
    %1475 = vdwg.mxu0
    %1476 = vmatpush.msra.mxu0 %v904
    %1477 = vmatpush.msra.mxu0 %v886
    %1478 = vmatpush.msra.mxu0 %v868
    %1479 = vmatpush.msra.mxu0 %v850
    %1480 = vmatpush.msra.mxu0 %v832
    %1481 = vmatpush.msra.mxu0 %v814
    %1482 = vmatpush.msra.mxu0 %v796
    %1483 = vmatpush.msra.mxu0 %v778
    %1484 = vmatpush.msra.mxu0 %v760
    %1485 = vmatpush.msra.mxu0 %v742
    %1486 = vmatpush.msra.mxu0 %v724
    %1487 = vmatpush.msra.mxu0 %v706
    %1488 = vmatpush.msra.mxu0 %v688
    %1489 = vmatpush.msra.mxu0 %v670
    %1490 = vmatpush.msra.mxu0 %v652
    %1491 = vmatpush.msra.mxu0 %v634
    %1492 = vmatmul.f32.gmra.mxu0 %v338
    %v1493 = vpop.f32.mrf.mxu0
    %v1494 = vadd.f32 %v1471, %v1493
    %1495 = vmatmul.f32.gmra.mxu0 %v341
    %v1496 = vpop.f32.mrf.mxu0
    %v1497 = vadd.f32 %v1474, %v1496
    %1498 = vdwg.mxu0
    %1499 = vmatpush.msra.mxu0 %v1192
    %1500 = vmatpush.msra.mxu0 %v1174
    %1501 = vmatpush.msra.mxu0 %v1156
    %1502 = vmatpush.msra.mxu0 %v1138
    %1503 = vmatpush.msra.mxu0 %v1120
    %1504 = vmatpush.msra.mxu0 %v1102
    %1505 = vmatpush.msra.mxu0 %v1084
    %1506 = vmatpush.msra.mxu0 %v1066
    %1507 = vmatpush.msra.mxu0 %v1048
    %1508 = vmatpush.msra.mxu0 %v1030
    %1509 = vmatpush.msra.mxu0 %v1012
    %1510 = vmatpush.msra.mxu0 %v994
    %1511 = vmatpush.msra.mxu0 %v976
    %1512 = vmatpush.msra.mxu0 %v958
    %1513 = vmatpush.msra.mxu0 %v940
    %1514 = vmatpush.msra.mxu0 %v922
    %1515 = vmatmul.f32.gmra.mxu0 %v339
    %v1516 = vpop.f32.mrf.mxu0
    %v1517 = vadd.f32 %v1494, %v1516
    %1518 = vmatmul.f32.gmra.mxu0 %v342
    %v1519 = vpop.f32.mrf.mxu0
    %v1520 = vadd.f32 %v1497, %v1519
    %1521 = vdwg.mxu0
    %1522 = vmatpush.msra.mxu0 %v617
    %1523 = vmatpush.msra.mxu0 %v599
    %1524 = vmatpush.msra.mxu0 %v581
    %1525 = vmatpush.msra.mxu0 %v563
    %1526 = vmatpush.msra.mxu0 %v545
    %1527 = vmatpush.msra.mxu0 %v527
    %1528 = vmatpush.msra.mxu0 %v509
    %1529 = vmatpush.msra.mxu0 %v491
    %1530 = vmatpush.msra.mxu0 %v473
    %1531 = vmatpush.msra.mxu0 %v455
    %1532 = vmatpush.msra.mxu0 %v437
    %1533 = vmatpush.msra.mxu0 %v419
    %1534 = vmatpush.msra.mxu0 %v401
    %1535 = vmatpush.msra.mxu0 %v383
    %1536 = vmatpush.msra.mxu0 %v365
    %1537 = vmatpush.msra.mxu0 %v347
    %1538 = vmatmul.f32.gmra.mxu0 %v337
    %v1539 = vpop.f32.mrf.mxu0
    %v1540 = vadd.f32 %v1214, %v1539
    %1541 = vmatmul.f32.gmra.mxu0 %v340
    %v1542 = vpop.f32.mrf.mxu0
    %v1543 = vadd.f32 %v1214, %v1542
    %1544 = vdwg.mxu0
    %1545 = vmatpush.msra.mxu0 %v905
    %1546 = vmatpush.msra.mxu0 %v887
    %1547 = vmatpush.msra.mxu0 %v869
    %1548 = vmatpush.msra.mxu0 %v851
    %1549 = vmatpush.msra.mxu0 %v833
    %1550 = vmatpush.msra.mxu0 %v815
    %1551 = vmatpush.msra.mxu0 %v797
    %1552 = vmatpush.msra.mxu0 %v779
    %1553 = vmatpush.msra.mxu0 %v761
    %1554 = vmatpush.msra.mxu0 %v743
    %1555 = vmatpush.msra.mxu0 %v725
    %1556 = vmatpush.msra.mxu0 %v707
    %1557 = vmatpush.msra.mxu0 %v689
    %1558 = vmatpush.msra.mxu0 %v671
    %1559 = vmatpush.msra.mxu0 %v653
    %1560 = vmatpush.msra.mxu0 %v635
    %1561 = vmatmul.f32.gmra.mxu0 %v338
    %v1562 = vpop.f32.mrf.mxu0
    %v1563 = vadd.f32 %v1540, %v1562
    %1564 = vmatmul.f32.gmra.mxu0 %v341
    %v1565 = vpop.f32.mrf.mxu0
    %v1566 = vadd.f32 %v1543, %v1565
    %1567 = vdwg.mxu0
    %1568 = vmatpush.msra.mxu0 %v1193
    %1569 = vmatpush.msra.mxu0 %v1175
    %1570 = vmatpush.msra.mxu0 %v1157
    %1571 = vmatpush.msra.mxu0 %v1139
    %1572 = vmatpush.msra.mxu0 %v1121
    %1573 = vmatpush.msra.mxu0 %v1103
    %1574 = vmatpush.msra.mxu0 %v1085
    %1575 = vmatpush.msra.mxu0 %v1067
    %1576 = vmatpush.msra.mxu0 %v1049
    %1577 = vmatpush.msra.mxu0 %v1031
    %1578 = vmatpush.msra.mxu0 %v1013
    %1579 = vmatpush.msra.mxu0 %v995
    %1580 = vmatpush.msra.mxu0 %v977
    %1581 = vmatpush.msra.mxu0 %v959
    %1582 = vmatpush.msra.mxu0 %v941
    %1583 = vmatpush.msra.mxu0 %v923
    %1584 = vmatmul.f32.gmra.mxu0 %v339
    %v1585 = vpop.f32.mrf.mxu0
    %v1586 = vadd.f32 %v1563, %v1585
    %1587 = vmatmul.f32.gmra.mxu0 %v342
    %v1588 = vpop.f32.mrf.mxu0
    %v1589 = vadd.f32 %v1566, %v1588
    %1590 = vdwg.mxu0
    %1591 = vmatpush.msra.mxu0 %v618
    %1592 = vmatpush.msra.mxu0 %v600
    %1593 = vmatpush.msra.mxu0 %v582
    %1594 = vmatpush.msra.mxu0 %v564
    %1595 = vmatpush.msra.mxu0 %v546
    %1596 = vmatpush.msra.mxu0 %v528
    %1597 = vmatpush.msra.mxu0 %v510
    %1598 = vmatpush.msra.mxu0 %v492
    %1599 = vmatpush.msra.mxu0 %v474
    %1600 = vmatpush.msra.mxu0 %v456
    %1601 = vmatpush.msra.mxu0 %v438
    %1602 = vmatpush.msra.mxu0 %v420
    %1603 = vmatpush.msra.mxu0 %v402
    %1604 = vmatpush.msra.mxu0 %v384
    %1605 = vmatpush.msra.mxu0 %v366
    %1606 = vmatpush.msra.mxu0 %v348
    %1607 = vmatmul.f32.gmra.mxu0 %v337
    %v1608 = vpop.f32.mrf.mxu0
    %v1609 = vadd.f32 %v1215, %v1608
    %1610 = vmatmul.f32.gmra.mxu0 %v340
    %v1611 = vpop.f32.mrf.mxu0
    %v1612 = vadd.f32 %v1215, %v1611
    %1613 = vdwg.mxu0
    %1614 = vmatpush.msra.mxu0 %v906
    %1615 = vmatpush.msra.mxu0 %v888
    %1616 = vmatpush.msra.mxu0 %v870
    %1617 = vmatpush.msra.mxu0 %v852
    %1618 = vmatpush.msra.mxu0 %v834
    %1619 = vmatpush.msra.mxu0 %v816
    %1620 = vmatpush.msra.mxu0 %v798
    %1621 = vmatpush.msra.mxu0 %v780
    %1622 = vmatpush.msra.mxu0 %v762
    %1623 = vmatpush.msra.mxu0 %v744
    %1624 = vmatpush.msra.mxu0 %v726
    %1625 = vmatpush.msra.mxu0 %v708
    %1626 = vmatpush.msra.mxu0 %v690
    %1627 = vmatpush.msra.mxu0 %v672
    %1628 = vmatpush.msra.mxu0 %v654
    %1629 = vmatpush.msra.mxu0 %v636
    %1630 = vmatmul.f32.gmra.mxu0 %v338
    %v1631 = vpop.f32.mrf.mxu0
    %v1632 = vadd.f32 %v1609, %v1631
    %1633 = vmatmul.f32.gmra.mxu0 %v341
    %v1634 = vpop.f32.mrf.mxu0
    %v1635 = vadd.f32 %v1612, %v1634
    %1636 = vdwg.mxu0
    %1637 = vmatpush.msra.mxu0 %v1194
    %1638 = vmatpush.msra.mxu0 %v1176
    %1639 = vmatpush.msra.mxu0 %v1158
    %1640 = vmatpush.msra.mxu0 %v1140
    %1641 = vmatpush.msra.mxu0 %v1122
    %1642 = vmatpush.msra.mxu0 %v1104
    %1643 = vmatpush.msra.mxu0 %v1086
    %1644 = vmatpush.msra.mxu0 %v1068
    %1645 = vmatpush.msra.mxu0 %v1050
    %1646 = vmatpush.msra.mxu0 %v1032
    %1647 = vmatpush.msra.mxu0 %v1014
    %1648 = vmatpush.msra.mxu0 %v996
    %1649 = vmatpush.msra.mxu0 %v978
    %1650 = vmatpush.msra.mxu0 %v960
    %1651 = vmatpush.msra.mxu0 %v942
    %1652 = vmatpush.msra.mxu0 %v924
    %1653 = vmatmul.f32.gmra.mxu0 %v339
    %v1654 = vpop.f32.mrf.mxu0
    %v1655 = vadd.f32 %v1632, %v1654
    %1656 = vmatmul.f32.gmra.mxu0 %v342
    %v1657 = vpop.f32.mrf.mxu0
    %v1658 = vadd.f32 %v1635, %v1657
    %1659 = vdwg.mxu0
    %1660 = vmatpush.msra.mxu0 %v619
    %1661 = vmatpush.msra.mxu0 %v601
    %1662 = vmatpush.msra.mxu0 %v583
    %1663 = vmatpush.msra.mxu0 %v565
    %1664 = vmatpush.msra.mxu0 %v547
    %1665 = vmatpush.msra.mxu0 %v529
    %1666 = vmatpush.msra.mxu0 %v511
    %1667 = vmatpush.msra.mxu0 %v493
    %1668 = vmatpush.msra.mxu0 %v475
    %1669 = vmatpush.msra.mxu0 %v457
    %1670 = vmatpush.msra.mxu0 %v439
    %1671 = vmatpush.msra.mxu0 %v421
    %1672 = vmatpush.msra.mxu0 %v403
    %1673 = vmatpush.msra.mxu0 %v385
    %1674 = vmatpush.msra.mxu0 %v367
    %1675 = vmatpush.msra.mxu0 %v349
    %1676 = vmatmul.f32.gmra.mxu0 %v337
    %v1677 = vpop.f32.mrf.mxu0
    %v1678 = vadd.f32 %v1216, %v1677
    %1679 = vmatmul.f32.gmra.mxu0 %v340
    %v1680 = vpop.f32.mrf.mxu0
    %v1681 = vadd.f32 %v1216, %v1680
    %1682 = vdwg.mxu0
    %1683 = vmatpush.msra.mxu0 %v907
    %1684 = vmatpush.msra.mxu0 %v889
    %1685 = vmatpush.msra.mxu0 %v871
    %1686 = vmatpush.msra.mxu0 %v853
    %1687 = vmatpush.msra.mxu0 %v835
    %1688 = vmatpush.msra.mxu0 %v817
    %1689 = vmatpush.msra.mxu0 %v799
    %1690 = vmatpush.msra.mxu0 %v781
    %1691 = vmatpush.msra.mxu0 %v763
    %1692 = vmatpush.msra.mxu0 %v745
    %1693 = vmatpush.msra.mxu0 %v727
    %1694 = vmatpush.msra.mxu0 %v709
    %1695 = vmatpush.msra.mxu0 %v691
    %1696 = vmatpush.msra.mxu0 %v673
    %1697 = vmatpush.msra.mxu0 %v655
    %1698 = vmatpush.msra.mxu0 %v637
    %1699 = vmatmul.f32.gmra.mxu0 %v338
    %v1700 = vpop.f32.mrf.mxu0
    %v1701 = vadd.f32 %v1678, %v1700
    %1702 = vmatmul.f32.gmra.mxu0 %v341
    %v1703 = vpop.f32.mrf.mxu0
    %v1704 = vadd.f32 %v1681, %v1703
    %1705 = vdwg.mxu0
    %1706 = vmatpush.msra.mxu0 %v1195
    %1707 = vmatpush.msra.mxu0 %v1177
    %1708 = vmatpush.msra.mxu0 %v1159
    %1709 = vmatpush.msra.mxu0 %v1141
    %1710 = vmatpush.msra.mxu0 %v1123
    %1711 = vmatpush.msra.mxu0 %v1105
    %1712 = vmatpush.msra.mxu0 %v1087
    %1713 = vmatpush.msra.mxu0 %v1069
    %1714 = vmatpush.msra.mxu0 %v1051
    %1715 = vmatpush.msra.mxu0 %v1033
    %1716 = vmatpush.msra.mxu0 %v1015
    %1717 = vmatpush.msra.mxu0 %v997
    %1718 = vmatpush.msra.mxu0 %v979
    %1719 = vmatpush.msra.mxu0 %v961
    %1720 = vmatpush.msra.mxu0 %v943
    %1721 = vmatpush.msra.mxu0 %v925
    %1722 = vmatmul.f32.gmra.mxu0 %v339
    %v1723 = vpop.f32.mrf.mxu0
    %v1724 = vadd.f32 %v1701, %v1723
    %1725 = vmatmul.f32.gmra.mxu0 %v342
    %v1726 = vpop.f32.mrf.mxu0
    %v1727 = vadd.f32 %v1704, %v1726
    %1728 = vdwg.mxu0
    %1729 = vmatpush.msra.mxu0 %v620
    %1730 = vmatpush.msra.mxu0 %v602
    %1731 = vmatpush.msra.mxu0 %v584
    %1732 = vmatpush.msra.mxu0 %v566
    %1733 = vmatpush.msra.mxu0 %v548
    %1734 = vmatpush.msra.mxu0 %v530
    %1735 = vmatpush.msra.mxu0 %v512
    %1736 = vmatpush.msra.mxu0 %v494
    %1737 = vmatpush.msra.mxu0 %v476
    %1738 = vmatpush.msra.mxu0 %v458
    %1739 = vmatpush.msra.mxu0 %v440
    %1740 = vmatpush.msra.mxu0 %v422
    %1741 = vmatpush.msra.mxu0 %v404
    %1742 = vmatpush.msra.mxu0 %v386
    %1743 = vmatpush.msra.mxu0 %v368
    %1744 = vmatpush.msra.mxu0 %v350
    %1745 = vmatmul.f32.gmra.mxu0 %v337
    %v1746 = vpop.f32.mrf.mxu0
    %v1747 = vadd.f32 %v1217, %v1746
    %1748 = vmatmul.f32.gmra.mxu0 %v340
    %v1749 = vpop.f32.mrf.mxu0
    %v1750 = vadd.f32 %v1217, %v1749
    %1751 = vdwg.mxu0
    %1752 = vmatpush.msra.mxu0 %v908
    %1753 = vmatpush.msra.mxu0 %v890
    %1754 = vmatpush.msra.mxu0 %v872
    %1755 = vmatpush.msra.mxu0 %v854
    %1756 = vmatpush.msra.mxu0 %v836
    %1757 = vmatpush.msra.mxu0 %v818
    %1758 = vmatpush.msra.mxu0 %v800
    %1759 = vmatpush.msra.mxu0 %v782
    %1760 = vmatpush.msra.mxu0 %v764
    %1761 = vmatpush.msra.mxu0 %v746
    %1762 = vmatpush.msra.mxu0 %v728
    %1763 = vmatpush.msra.mxu0 %v710
    %1764 = vmatpush.msra.mxu0 %v692
    %1765 = vmatpush.msra.mxu0 %v674
    %1766 = vmatpush.msra.mxu0 %v656
    %1767 = vmatpush.msra.mxu0 %v638
    %1768 = vmatmul.f32.gmra.mxu0 %v338
    %v1769 = vpop.f32.mrf.mxu0
    %v1770 = vadd.f32 %v1747, %v1769
    %1771 = vmatmul.f32.gmra.mxu0 %v341
    %v1772 = vpop.f32.mrf.mxu0
    %v1773 = vadd.f32 %v1750, %v1772
    %1774 = vdwg.mxu0
    %1775 = vmatpush.msra.mxu0 %v1196
    %1776 = vmatpush.msra.mxu0 %v1178
    %1777 = vmatpush.msra.mxu0 %v1160
    %1778 = vmatpush.msra.mxu0 %v1142
    %1779 = vmatpush.msra.mxu0 %v1124
    %1780 = vmatpush.msra.mxu0 %v1106
    %1781 = vmatpush.msra.mxu0 %v1088
    %1782 = vmatpush.msra.mxu0 %v1070
    %1783 = vmatpush.msra.mxu0 %v1052
    %1784 = vmatpush.msra.mxu0 %v1034
    %1785 = vmatpush.msra.mxu0 %v1016
    %1786 = vmatpush.msra.mxu0 %v998
    %1787 = vmatpush.msra.mxu0 %v980
    %1788 = vmatpush.msra.mxu0 %v962
    %1789 = vmatpush.msra.mxu0 %v944
    %1790 = vmatpush.msra.mxu0 %v926
    %1791 = vmatmul.f32.gmra.mxu0 %v339
    %v1792 = vpop.f32.mrf.mxu0
    %v1793 = vadd.f32 %v1770, %v1792
    %1794 = vmatmul.f32.gmra.mxu0 %v342
    %v1795 = vpop.f32.mrf.mxu0
    %v1796 = vadd.f32 %v1773, %v1795
    %1797 = vdwg.mxu0
    %1798 = vmatpush.msra.mxu0 %v621
    %1799 = vmatpush.msra.mxu0 %v603
    %1800 = vmatpush.msra.mxu0 %v585
    %1801 = vmatpush.msra.mxu0 %v567
    %1802 = vmatpush.msra.mxu0 %v549
    %1803 = vmatpush.msra.mxu0 %v531
    %1804 = vmatpush.msra.mxu0 %v513
    %1805 = vmatpush.msra.mxu0 %v495
    %1806 = vmatpush.msra.mxu0 %v477
    %1807 = vmatpush.msra.mxu0 %v459
    %1808 = vmatpush.msra.mxu0 %v441
    %1809 = vmatpush.msra.mxu0 %v423
    %1810 = vmatpush.msra.mxu0 %v405
    %1811 = vmatpush.msra.mxu0 %v387
    %1812 = vmatpush.msra.mxu0 %v369
    %1813 = vmatpush.msra.mxu0 %v351
    %1814 = vmatmul.f32.gmra.mxu0 %v337
    %v1815 = vpop.f32.mrf.mxu0
    %v1816 = vadd.f32 %v1218, %v1815
    %1817 = vmatmul.f32.gmra.mxu0 %v340
    %v1818 = vpop.f32.mrf.mxu0
    %v1819 = vadd.f32 %v1218, %v1818
    %1820 = vdwg.mxu0
    %1821 = vmatpush.msra.mxu0 %v909
    %1822 = vmatpush.msra.mxu0 %v891
    %1823 = vmatpush.msra.mxu0 %v873
    %1824 = vmatpush.msra.mxu0 %v855
    %1825 = vmatpush.msra.mxu0 %v837
    %1826 = vmatpush.msra.mxu0 %v819
    %1827 = vmatpush.msra.mxu0 %v801
    %1828 = vmatpush.msra.mxu0 %v783
    %1829 = vmatpush.msra.mxu0 %v765
    %1830 = vmatpush.msra.mxu0 %v747
    %1831 = vmatpush.msra.mxu0 %v729
    %1832 = vmatpush.msra.mxu0 %v711
    %1833 = vmatpush.msra.mxu0 %v693
    %1834 = vmatpush.msra.mxu0 %v675
    %1835 = vmatpush.msra.mxu0 %v657
    %1836 = vmatpush.msra.mxu0 %v639
    %1837 = vmatmul.f32.gmra.mxu0 %v338
    %v1838 = vpop.f32.mrf.mxu0
    %v1839 = vadd.f32 %v1816, %v1838
    %1840 = vmatmul.f32.gmra.mxu0 %v341
    %v1841 = vpop.f32.mrf.mxu0
    %v1842 = vadd.f32 %v1819, %v1841
    %1843 = vdwg.mxu0
    %1844 = vmatpush.msra.mxu0 %v1197
    %1845 = vmatpush.msra.mxu0 %v1179
    %1846 = vmatpush.msra.mxu0 %v1161
    %1847 = vmatpush.msra.mxu0 %v1143
    %1848 = vmatpush.msra.mxu0 %v1125
    %1849 = vmatpush.msra.mxu0 %v1107
    %1850 = vmatpush.msra.mxu0 %v1089
    %1851 = vmatpush.msra.mxu0 %v1071
    %1852 = vmatpush.msra.mxu0 %v1053
    %1853 = vmatpush.msra.mxu0 %v1035
    %1854 = vmatpush.msra.mxu0 %v1017
    %1855 = vmatpush.msra.mxu0 %v999
    %1856 = vmatpush.msra.mxu0 %v981
    %1857 = vmatpush.msra.mxu0 %v963
    %1858 = vmatpush.msra.mxu0 %v945
    %1859 = vmatpush.msra.mxu0 %v927
    %1860 = vmatmul.f32.gmra.mxu0 %v339
    %v1861 = vpop.f32.mrf.mxu0
    %v1862 = vadd.f32 %v1839, %v1861
    %1863 = vmatmul.f32.gmra.mxu0 %v342
    %v1864 = vpop.f32.mrf.mxu0
    %v1865 = vadd.f32 %v1842, %v1864
    %1866 = vdwg.mxu0
    %1867 = vmatpush.msra.mxu0 %v622
    %1868 = vmatpush.msra.mxu0 %v604
    %1869 = vmatpush.msra.mxu0 %v586
    %1870 = vmatpush.msra.mxu0 %v568
    %1871 = vmatpush.msra.mxu0 %v550
    %1872 = vmatpush.msra.mxu0 %v532
    %1873 = vmatpush.msra.mxu0 %v514
    %1874 = vmatpush.msra.mxu0 %v496
    %1875 = vmatpush.msra.mxu0 %v478
    %1876 = vmatpush.msra.mxu0 %v460
    %1877 = vmatpush.msra.mxu0 %v442
    %1878 = vmatpush.msra.mxu0 %v424
    %1879 = vmatpush.msra.mxu0 %v406
    %1880 = vmatpush.msra.mxu0 %v388
    %1881 = vmatpush.msra.mxu0 %v370
    %1882 = vmatpush.msra.mxu0 %v352
    %1883 = vmatmul.f32.gmra.mxu0 %v337
    %v1884 = vpop.f32.mrf.mxu0
    %v1885 = vadd.f32 %v1219, %v1884
    %1886 = vmatmul.f32.gmra.mxu0 %v340
    %v1887 = vpop.f32.mrf.mxu0
    %v1888 = vadd.f32 %v1219, %v1887
    %1889 = vdwg.mxu0
    %1890 = vmatpush.msra.mxu0 %v910
    %1891 = vmatpush.msra.mxu0 %v892
    %1892 = vmatpush.msra.mxu0 %v874
    %1893 = vmatpush.msra.mxu0 %v856
    %1894 = vmatpush.msra.mxu0 %v838
    %1895 = vmatpush.msra.mxu0 %v820
    %1896 = vmatpush.msra.mxu0 %v802
    %1897 = vmatpush.msra.mxu0 %v784
    %1898 = vmatpush.msra.mxu0 %v766
    %1899 = vmatpush.msra.mxu0 %v748
    %1900 = vmatpush.msra.mxu0 %v730
    %1901 = vmatpush.msra.mxu0 %v712
    %1902 = vmatpush.msra.mxu0 %v694
    %1903 = vmatpush.msra.mxu0 %v676
    %1904 = vmatpush.msra.mxu0 %v658
    %1905 = vmatpush.msra.mxu0 %v640
    %1906 = vmatmul.f32.gmra.mxu0 %v338
    %v1907 = vpop.f32.mrf.mxu0
    %v1908 = vadd.f32 %v1885, %v1907
    %1909 = vmatmul.f32.gmra.mxu0 %v341
    %v1910 = vpop.f32.mrf.mxu0
    %v1911 = vadd.f32 %v1888, %v1910
    %1912 = vdwg.mxu0
    %1913 = vmatpush.msra.mxu0 %v1198
    %1914 = vmatpush.msra.mxu0 %v1180
    %1915 = vmatpush.msra.mxu0 %v1162
    %1916 = vmatpush.msra.mxu0 %v1144
    %1917 = vmatpush.msra.mxu0 %v1126
    %1918 = vmatpush.msra.mxu0 %v1108
    %1919 = vmatpush.msra.mxu0 %v1090
    %1920 = vmatpush.msra.mxu0 %v1072
    %1921 = vmatpush.msra.mxu0 %v1054
    %1922 = vmatpush.msra.mxu0 %v1036
    %1923 = vmatpush.msra.mxu0 %v1018
    %1924 = vmatpush.msra.mxu0 %v1000
    %1925 = vmatpush.msra.mxu0 %v982
    %1926 = vmatpush.msra.mxu0 %v964
    %1927 = vmatpush.msra.mxu0 %v946
    %1928 = vmatpush.msra.mxu0 %v928
    %1929 = vmatmul.f32.gmra.mxu0 %v339
    %v1930 = vpop.f32.mrf.mxu0
    %v1931 = vadd.f32 %v1908, %v1930
    %1932 = vmatmul.f32.gmra.mxu0 %v342
    %v1933 = vpop.f32.mrf.mxu0
    %v1934 = vadd.f32 %v1911, %v1933
    %1935 = vdwg.mxu0
    %1936 = vmatpush.msra.mxu0 %v623
    %1937 = vmatpush.msra.mxu0 %v605
    %1938 = vmatpush.msra.mxu0 %v587
    %1939 = vmatpush.msra.mxu0 %v569
    %1940 = vmatpush.msra.mxu0 %v551
    %1941 = vmatpush.msra.mxu0 %v533
    %1942 = vmatpush.msra.mxu0 %v515
    %1943 = vmatpush.msra.mxu0 %v497
    %1944 = vmatpush.msra.mxu0 %v479
    %1945 = vmatpush.msra.mxu0 %v461
    %1946 = vmatpush.msra.mxu0 %v443
    %1947 = vmatpush.msra.mxu0 %v425
    %1948 = vmatpush.msra.mxu0 %v407
    %1949 = vmatpush.msra.mxu0 %v389
    %1950 = vmatpush.msra.mxu0 %v371
    %1951 = vmatpush.msra.mxu0 %v353
    %1952 = vmatmul.f32.gmra.mxu0 %v337
    %v1953 = vpop.f32.mrf.mxu0
    %v1954 = vadd.f32 %v1220, %v1953
    %1955 = vmatmul.f32.gmra.mxu0 %v340
    %v1956 = vpop.f32.mrf.mxu0
    %v1957 = vadd.f32 %v1220, %v1956
    %1958 = vdwg.mxu0
    %1959 = vmatpush.msra.mxu0 %v911
    %1960 = vmatpush.msra.mxu0 %v893
    %1961 = vmatpush.msra.mxu0 %v875
    %1962 = vmatpush.msra.mxu0 %v857
    %1963 = vmatpush.msra.mxu0 %v839
    %1964 = vmatpush.msra.mxu0 %v821
    %1965 = vmatpush.msra.mxu0 %v803
    %1966 = vmatpush.msra.mxu0 %v785
    %1967 = vmatpush.msra.mxu0 %v767
    %1968 = vmatpush.msra.mxu0 %v749
    %1969 = vmatpush.msra.mxu0 %v731
    %1970 = vmatpush.msra.mxu0 %v713
    %1971 = vmatpush.msra.mxu0 %v695
    %1972 = vmatpush.msra.mxu0 %v677
    %1973 = vmatpush.msra.mxu0 %v659
    %1974 = vmatpush.msra.mxu0 %v641
    %1975 = vmatmul.f32.gmra.mxu0 %v338
    %v1976 = vpop.f32.mrf.mxu0
    %v1977 = vadd.f32 %v1954, %v1976
    %1978 = vmatmul.f32.gmra.mxu0 %v341
    %v1979 = vpop.f32.mrf.mxu0
    %v1980 = vadd.f32 %v1957, %v1979
    %1981 = vdwg.mxu0
    %1982 = vmatpush.msra.mxu0 %v1199
    %1983 = vmatpush.msra.mxu0 %v1181
    %1984 = vmatpush.msra.mxu0 %v1163
    %1985 = vmatpush.msra.mxu0 %v1145
    %1986 = vmatpush.msra.mxu0 %v1127
    %1987 = vmatpush.msra.mxu0 %v1109
    %1988 = vmatpush.msra.mxu0 %v1091
    %1989 = vmatpush.msra.mxu0 %v1073
    %1990 = vmatpush.msra.mxu0 %v1055
    %1991 = vmatpush.msra.mxu0 %v1037
    %1992 = vmatpush.msra.mxu0 %v1019
    %1993 = vmatpush.msra.mxu0 %v1001
    %1994 = vmatpush.msra.mxu0 %v983
    %1995 = vmatpush.msra.mxu0 %v965
    %1996 = vmatpush.msra.mxu0 %v947
    %1997 = vmatpush.msra.mxu0 %v929
    %1998 = vmatmul.f32.gmra.mxu0 %v339
    %v1999 = vpop.f32.mrf.mxu0
    %v2000 = vadd.f32 %v1977, %v1999
    %2001 = vmatmul.f32.gmra.mxu0 %v342
    %v2002 = vpop.f32.mrf.mxu0
    %v2003 = vadd.f32 %v1980, %v2002
    %2004 = vdwg.mxu0
    %2005 = vmatpush.msra.mxu0 %v624
    %2006 = vmatpush.msra.mxu0 %v606
    %2007 = vmatpush.msra.mxu0 %v588
    %2008 = vmatpush.msra.mxu0 %v570
    %2009 = vmatpush.msra.mxu0 %v552
    %2010 = vmatpush.msra.mxu0 %v534
    %2011 = vmatpush.msra.mxu0 %v516
    %2012 = vmatpush.msra.mxu0 %v498
    %2013 = vmatpush.msra.mxu0 %v480
    %2014 = vmatpush.msra.mxu0 %v462
    %2015 = vmatpush.msra.mxu0 %v444
    %2016 = vmatpush.msra.mxu0 %v426
    %2017 = vmatpush.msra.mxu0 %v408
    %2018 = vmatpush.msra.mxu0 %v390
    %2019 = vmatpush.msra.mxu0 %v372
    %2020 = vmatpush.msra.mxu0 %v354
    %2021 = vmatmul.f32.gmra.mxu0 %v337
    %v2022 = vpop.f32.mrf.mxu0
    %v2023 = vadd.f32 %v1221, %v2022
    %2024 = vmatmul.f32.gmra.mxu0 %v340
    %v2025 = vpop.f32.mrf.mxu0
    %v2026 = vadd.f32 %v1221, %v2025
    %2027 = vdwg.mxu0
    %2028 = vmatpush.msra.mxu0 %v912
    %2029 = vmatpush.msra.mxu0 %v894
    %2030 = vmatpush.msra.mxu0 %v876
    %2031 = vmatpush.msra.mxu0 %v858
    %2032 = vmatpush.msra.mxu0 %v840
    %2033 = vmatpush.msra.mxu0 %v822
    %2034 = vmatpush.msra.mxu0 %v804
    %2035 = vmatpush.msra.mxu0 %v786
    %2036 = vmatpush.msra.mxu0 %v768
    %2037 = vmatpush.msra.mxu0 %v750
    %2038 = vmatpush.msra.mxu0 %v732
    %2039 = vmatpush.msra.mxu0 %v714
    %2040 = vmatpush.msra.mxu0 %v696
    %2041 = vmatpush.msra.mxu0 %v678
    %2042 = vmatpush.msra.mxu0 %v660
    %2043 = vmatpush.msra.mxu0 %v642
    %2044 = vmatmul.f32.gmra.mxu0 %v338
    %v2045 = vpop.f32.mrf.mxu0
    %v2046 = vadd.f32 %v2023, %v2045
    %2047 = vmatmul.f32.gmra.mxu0 %v341
    %v2048 = vpop.f32.mrf.mxu0
    %v2049 = vadd.f32 %v2026, %v2048
    %2050 = vdwg.mxu0
    %2051 = vmatpush.msra.mxu0 %v1200
    %2052 = vmatpush.msra.mxu0 %v1182
    %2053 = vmatpush.msra.mxu0 %v1164
    %2054 = vmatpush.msra.mxu0 %v1146
    %2055 = vmatpush.msra.mxu0 %v1128
    %2056 = vmatpush.msra.mxu0 %v1110
    %2057 = vmatpush.msra.mxu0 %v1092
    %2058 = vmatpush.msra.mxu0 %v1074
    %2059 = vmatpush.msra.mxu0 %v1056
    %2060 = vmatpush.msra.mxu0 %v1038
    %2061 = vmatpush.msra.mxu0 %v1020
    %2062 = vmatpush.msra.mxu0 %v1002
    %2063 = vmatpush.msra.mxu0 %v984
    %2064 = vmatpush.msra.mxu0 %v966
    %2065 = vmatpush.msra.mxu0 %v948
    %2066 = vmatpush.msra.mxu0 %v930
    %2067 = vmatmul.f32.gmra.mxu0 %v339
    %v2068 = vpop.f32.mrf.mxu0
    %v2069 = vadd.f32 %v2046, %v2068
    %2070 = vmatmul.f32.gmra.mxu0 %v342
    %v2071 = vpop.f32.mrf.mxu0
    %v2072 = vadd.f32 %v2049, %v2071
    %2073 = vdwg.mxu0
    %2074 = vmatpush.msra.mxu0 %v625
    %2075 = vmatpush.msra.mxu0 %v607
    %2076 = vmatpush.msra.mxu0 %v589
    %2077 = vmatpush.msra.mxu0 %v571
    %2078 = vmatpush.msra.mxu0 %v553
    %2079 = vmatpush.msra.mxu0 %v535
    %2080 = vmatpush.msra.mxu0 %v517
    %2081 = vmatpush.msra.mxu0 %v499
    %2082 = vmatpush.msra.mxu0 %v481
    %2083 = vmatpush.msra.mxu0 %v463
    %2084 = vmatpush.msra.mxu0 %v445
    %2085 = vmatpush.msra.mxu0 %v427
    %2086 = vmatpush.msra.mxu0 %v409
    %2087 = vmatpush.msra.mxu0 %v391
    %2088 = vmatpush.msra.mxu0 %v373
    %2089 = vmatpush.msra.mxu0 %v355
    %2090 = vmatmul.f32.gmra.mxu0 %v337
    %v2091 = vpop.f32.mrf.mxu0
    %v2092 = vadd.f32 %v1222, %v2091
    %2093 = vmatmul.f32.gmra.mxu0 %v340
    %v2094 = vpop.f32.mrf.mxu0
    %v2095 = vadd.f32 %v1222, %v2094
    %2096 = vdwg.mxu0
    %2097 = vmatpush.msra.mxu0 %v913
    %2098 = vmatpush.msra.mxu0 %v895
    %2099 = vmatpush.msra.mxu0 %v877
    %2100 = vmatpush.msra.mxu0 %v859
    %2101 = vmatpush.msra.mxu0 %v841
    %2102 = vmatpush.msra.mxu0 %v823
    %2103 = vmatpush.msra.mxu0 %v805
    %2104 = vmatpush.msra.mxu0 %v787
    %2105 = vmatpush.msra.mxu0 %v769
    %2106 = vmatpush.msra.mxu0 %v751
    %2107 = vmatpush.msra.mxu0 %v733
    %2108 = vmatpush.msra.mxu0 %v715
    %2109 = vmatpush.msra.mxu0 %v697
    %2110 = vmatpush.msra.mxu0 %v679
    %2111 = vmatpush.msra.mxu0 %v661
    %2112 = vmatpush.msra.mxu0 %v643
    %2113 = vmatmul.f32.gmra.mxu0 %v338
    %v2114 = vpop.f32.mrf.mxu0
    %v2115 = vadd.f32 %v2092, %v2114
    %2116 = vmatmul.f32.gmra.mxu0 %v341
    %v2117 = vpop.f32.mrf.mxu0
    %v2118 = vadd.f32 %v2095, %v2117
    %2119 = vdwg.mxu0
    %2120 = vmatpush.msra.mxu0 %v1201
    %2121 = vmatpush.msra.mxu0 %v1183
    %2122 = vmatpush.msra.mxu0 %v1165
    %2123 = vmatpush.msra.mxu0 %v1147
    %2124 = vmatpush.msra.mxu0 %v1129
    %2125 = vmatpush.msra.mxu0 %v1111
    %2126 = vmatpush.msra.mxu0 %v1093
    %2127 = vmatpush.msra.mxu0 %v1075
    %2128 = vmatpush.msra.mxu0 %v1057
    %2129 = vmatpush.msra.mxu0 %v1039
    %2130 = vmatpush.msra.mxu0 %v1021
    %2131 = vmatpush.msra.mxu0 %v1003
    %2132 = vmatpush.msra.mxu0 %v985
    %2133 = vmatpush.msra.mxu0 %v967
    %2134 = vmatpush.msra.mxu0 %v949
    %2135 = vmatpush.msra.mxu0 %v931
    %2136 = vmatmul.f32.gmra.mxu0 %v339
    %v2137 = vpop.f32.mrf.mxu0
    %v2138 = vadd.f32 %v2115, %v2137
    %2139 = vmatmul.f32.gmra.mxu0 %v342
    %v2140 = vpop.f32.mrf.mxu0
    %v2141 = vadd.f32 %v2118, %v2140
    %2142 = vdwg.mxu0
    %2143 = vmatpush.msra.mxu0 %v626
    %2144 = vmatpush.msra.mxu0 %v608
    %2145 = vmatpush.msra.mxu0 %v590
    %2146 = vmatpush.msra.mxu0 %v572
    %2147 = vmatpush.msra.mxu0 %v554
    %2148 = vmatpush.msra.mxu0 %v536
    %2149 = vmatpush.msra.mxu0 %v518
    %2150 = vmatpush.msra.mxu0 %v500
    %2151 = vmatpush.msra.mxu0 %v482
    %2152 = vmatpush.msra.mxu0 %v464
    %2153 = vmatpush.msra.mxu0 %v446
    %2154 = vmatpush.msra.mxu0 %v428
    %2155 = vmatpush.msra.mxu0 %v410
    %2156 = vmatpush.msra.mxu0 %v392
    %2157 = vmatpush.msra.mxu0 %v374
    %2158 = vmatpush.msra.mxu0 %v356
    %2159 = vmatmul.f32.gmra.mxu0 %v337
    %v2160 = vpop.f32.mrf.mxu0
    %v2161 = vadd.f32 %v1223, %v2160
    %2162 = vmatmul.f32.gmra.mxu0 %v340
    %v2163 = vpop.f32.mrf.mxu0
    %v2164 = vadd.f32 %v1223, %v2163
    %2165 = vdwg.mxu0
    %2166 = vmatpush.msra.mxu0 %v914
    %2167 = vmatpush.msra.mxu0 %v896
    %2168 = vmatpush.msra.mxu0 %v878
    %2169 = vmatpush.msra.mxu0 %v860
    %2170 = vmatpush.msra.mxu0 %v842
    %2171 = vmatpush.msra.mxu0 %v824
    %2172 = vmatpush.msra.mxu0 %v806
    %2173 = vmatpush.msra.mxu0 %v788
    %2174 = vmatpush.msra.mxu0 %v770
    %2175 = vmatpush.msra.mxu0 %v752
    %2176 = vmatpush.msra.mxu0 %v734
    %2177 = vmatpush.msra.mxu0 %v716
    %2178 = vmatpush.msra.mxu0 %v698
    %2179 = vmatpush.msra.mxu0 %v680
    %2180 = vmatpush.msra.mxu0 %v662
    %2181 = vmatpush.msra.mxu0 %v644
    %2182 = vmatmul.f32.gmra.mxu0 %v338
    %v2183 = vpop.f32.mrf.mxu0
    %v2184 = vadd.f32 %v2161, %v2183
    %2185 = vmatmul.f32.gmra.mxu0 %v341
    %v2186 = vpop.f32.mrf.mxu0
    %v2187 = vadd.f32 %v2164, %v2186
    %2188 = vdwg.mxu0
    %2189 = vmatpush.msra.mxu0 %v1202
    %2190 = vmatpush.msra.mxu0 %v1184
    %2191 = vmatpush.msra.mxu0 %v1166
    %2192 = vmatpush.msra.mxu0 %v1148
    %2193 = vmatpush.msra.mxu0 %v1130
    %2194 = vmatpush.msra.mxu0 %v1112
    %2195 = vmatpush.msra.mxu0 %v1094
    %2196 = vmatpush.msra.mxu0 %v1076
    %2197 = vmatpush.msra.mxu0 %v1058
    %2198 = vmatpush.msra.mxu0 %v1040
    %2199 = vmatpush.msra.mxu0 %v1022
    %2200 = vmatpush.msra.mxu0 %v1004
    %2201 = vmatpush.msra.mxu0 %v986
    %2202 = vmatpush.msra.mxu0 %v968
    %2203 = vmatpush.msra.mxu0 %v950
    %2204 = vmatpush.msra.mxu0 %v932
    %2205 = vmatmul.f32.gmra.mxu0 %v339
    %v2206 = vpop.f32.mrf.mxu0
    %v2207 = vadd.f32 %v2184, %v2206
    %2208 = vmatmul.f32.gmra.mxu0 %v342
    %v2209 = vpop.f32.mrf.mxu0
    %v2210 = vadd.f32 %v2187, %v2209
    %2211 = vdwg.mxu0
    %2212 = vmatpush.msra.mxu0 %v627
    %2213 = vmatpush.msra.mxu0 %v609
    %2214 = vmatpush.msra.mxu0 %v591
    %2215 = vmatpush.msra.mxu0 %v573
    %2216 = vmatpush.msra.mxu0 %v555
    %2217 = vmatpush.msra.mxu0 %v537
    %2218 = vmatpush.msra.mxu0 %v519
    %2219 = vmatpush.msra.mxu0 %v501
    %2220 = vmatpush.msra.mxu0 %v483
    %2221 = vmatpush.msra.mxu0 %v465
    %2222 = vmatpush.msra.mxu0 %v447
    %2223 = vmatpush.msra.mxu0 %v429
    %2224 = vmatpush.msra.mxu0 %v411
    %2225 = vmatpush.msra.mxu0 %v393
    %2226 = vmatpush.msra.mxu0 %v375
    %2227 = vmatpush.msra.mxu0 %v357
    %2228 = vmatmul.f32.gmra.mxu0 %v337
    %v2229 = vpop.f32.mrf.mxu0
    %v2230 = vadd.f32 %v1224, %v2229
    %2231 = vmatmul.f32.gmra.mxu0 %v340
    %v2232 = vpop.f32.mrf.mxu0
    %v2233 = vadd.f32 %v1224, %v2232
    %2234 = vdwg.mxu0
    %2235 = vmatpush.msra.mxu0 %v915
    %2236 = vmatpush.msra.mxu0 %v897
    %2237 = vmatpush.msra.mxu0 %v879
    %2238 = vmatpush.msra.mxu0 %v861
    %2239 = vmatpush.msra.mxu0 %v843
    %2240 = vmatpush.msra.mxu0 %v825
    %2241 = vmatpush.msra.mxu0 %v807
    %2242 = vmatpush.msra.mxu0 %v789
    %2243 = vmatpush.msra.mxu0 %v771
    %2244 = vmatpush.msra.mxu0 %v753
    %2245 = vmatpush.msra.mxu0 %v735
    %2246 = vmatpush.msra.mxu0 %v717
    %2247 = vmatpush.msra.mxu0 %v699
    %2248 = vmatpush.msra.mxu0 %v681
    %2249 = vmatpush.msra.mxu0 %v663
    %2250 = vmatpush.msra.mxu0 %v645
    %2251 = vmatmul.f32.gmra.mxu0 %v338
    %v2252 = vpop.f32.mrf.mxu0
    %v2253 = vadd.f32 %v2230, %v2252
    %2254 = vmatmul.f32.gmra.mxu0 %v341
    %v2255 = vpop.f32.mrf.mxu0
    %v2256 = vadd.f32 %v2233, %v2255
    %2257 = vdwg.mxu0
    %2258 = vmatpush.msra.mxu0 %v1203
    %2259 = vmatpush.msra.mxu0 %v1185
    %2260 = vmatpush.msra.mxu0 %v1167
    %2261 = vmatpush.msra.mxu0 %v1149
    %2262 = vmatpush.msra.mxu0 %v1131
    %2263 = vmatpush.msra.mxu0 %v1113
    %2264 = vmatpush.msra.mxu0 %v1095
    %2265 = vmatpush.msra.mxu0 %v1077
    %2266 = vmatpush.msra.mxu0 %v1059
    %2267 = vmatpush.msra.mxu0 %v1041
    %2268 = vmatpush.msra.mxu0 %v1023
    %2269 = vmatpush.msra.mxu0 %v1005
    %2270 = vmatpush.msra.mxu0 %v987
    %2271 = vmatpush.msra.mxu0 %v969
    %2272 = vmatpush.msra.mxu0 %v951
    %2273 = vmatpush.msra.mxu0 %v933
    %2274 = vmatmul.f32.gmra.mxu0 %v339
    %v2275 = vpop.f32.mrf.mxu0
    %v2276 = vadd.f32 %v2253, %v2275
    %2277 = vmatmul.f32.gmra.mxu0 %v342
    %v2278 = vpop.f32.mrf.mxu0
    %v2279 = vadd.f32 %v2256, %v2278
    %2280 = vdwg.mxu0
    %2281 = vmatpush.msra.mxu0 %v628
    %2282 = vmatpush.msra.mxu0 %v610
    %2283 = vmatpush.msra.mxu0 %v592
    %2284 = vmatpush.msra.mxu0 %v574
    %2285 = vmatpush.msra.mxu0 %v556
    %2286 = vmatpush.msra.mxu0 %v538
    %2287 = vmatpush.msra.mxu0 %v520
    %2288 = vmatpush.msra.mxu0 %v502
    %2289 = vmatpush.msra.mxu0 %v484
    %2290 = vmatpush.msra.mxu0 %v466
    %2291 = vmatpush.msra.mxu0 %v448
    %2292 = vmatpush.msra.mxu0 %v430
    %2293 = vmatpush.msra.mxu0 %v412
    %2294 = vmatpush.msra.mxu0 %v394
    %2295 = vmatpush.msra.mxu0 %v376
    %2296 = vmatpush.msra.mxu0 %v358
    %2297 = vmatmul.f32.gmra.mxu0 %v337
    %v2298 = vpop.f32.mrf.mxu0
    %v2299 = vadd.f32 %v1225, %v2298
    %2300 = vmatmul.f32.gmra.mxu0 %v340
    %v2301 = vpop.f32.mrf.mxu0
    %v2302 = vadd.f32 %v1225, %v2301
    %2303 = vdwg.mxu0
    %2304 = vmatpush.msra.mxu0 %v916
    %2305 = vmatpush.msra.mxu0 %v898
    %2306 = vmatpush.msra.mxu0 %v880
    %2307 = vmatpush.msra.mxu0 %v862
    %2308 = vmatpush.msra.mxu0 %v844
    %2309 = vmatpush.msra.mxu0 %v826
    %2310 = vmatpush.msra.mxu0 %v808
    %2311 = vmatpush.msra.mxu0 %v790
    %2312 = vmatpush.msra.mxu0 %v772
    %2313 = vmatpush.msra.mxu0 %v754
    %2314 = vmatpush.msra.mxu0 %v736
    %2315 = vmatpush.msra.mxu0 %v718
    %2316 = vmatpush.msra.mxu0 %v700
    %2317 = vmatpush.msra.mxu0 %v682
    %2318 = vmatpush.msra.mxu0 %v664
    %2319 = vmatpush.msra.mxu0 %v646
    %2320 = vmatmul.f32.gmra.mxu0 %v338
    %v2321 = vpop.f32.mrf.mxu0
    %v2322 = vadd.f32 %v2299, %v2321
    %2323 = vmatmul.f32.gmra.mxu0 %v341
    %v2324 = vpop.f32.mrf.mxu0
    %v2325 = vadd.f32 %v2302, %v2324
    %2326 = vdwg.mxu0
    %2327 = vmatpush.msra.mxu0 %v1204
    %2328 = vmatpush.msra.mxu0 %v1186
    %2329 = vmatpush.msra.mxu0 %v1168
    %2330 = vmatpush.msra.mxu0 %v1150
    %2331 = vmatpush.msra.mxu0 %v1132
    %2332 = vmatpush.msra.mxu0 %v1114
    %2333 = vmatpush.msra.mxu0 %v1096
    %2334 = vmatpush.msra.mxu0 %v1078
    %2335 = vmatpush.msra.mxu0 %v1060
    %2336 = vmatpush.msra.mxu0 %v1042
    %2337 = vmatpush.msra.mxu0 %v1024
    %2338 = vmatpush.msra.mxu0 %v1006
    %2339 = vmatpush.msra.mxu0 %v988
    %2340 = vmatpush.msra.mxu0 %v970
    %2341 = vmatpush.msra.mxu0 %v952
    %2342 = vmatpush.msra.mxu0 %v934
    %2343 = vmatmul.f32.gmra.mxu0 %v339
    %v2344 = vpop.f32.mrf.mxu0
    %v2345 = vadd.f32 %v2322, %v2344
    %2346 = vmatmul.f32.gmra.mxu0 %v342
    %v2347 = vpop.f32.mrf.mxu0
    %v2348 = vadd.f32 %v2325, %v2347
    %2349 = vdwg.mxu0
    %2350 = vmatpush.msra.mxu0 %v629
    %2351 = vmatpush.msra.mxu0 %v611
    %2352 = vmatpush.msra.mxu0 %v593
    %2353 = vmatpush.msra.mxu0 %v575
    %2354 = vmatpush.msra.mxu0 %v557
    %2355 = vmatpush.msra.mxu0 %v539
    %2356 = vmatpush.msra.mxu0 %v521
    %2357 = vmatpush.msra.mxu0 %v503
    %2358 = vmatpush.msra.mxu0 %v485
    %2359 = vmatpush.msra.mxu0 %v467
    %2360 = vmatpush.msra.mxu0 %v449
    %2361 = vmatpush.msra.mxu0 %v431
    %2362 = vmatpush.msra.mxu0 %v413
    %2363 = vmatpush.msra.mxu0 %v395
    %2364 = vmatpush.msra.mxu0 %v377
    %2365 = vmatpush.msra.mxu0 %v359
    %2366 = vmatmul.f32.gmra.mxu0 %v337
    %v2367 = vpop.f32.mrf.mxu0
    %v2368 = vadd.f32 %v1226, %v2367
    %2369 = vmatmul.f32.gmra.mxu0 %v340
    %v2370 = vpop.f32.mrf.mxu0
    %v2371 = vadd.f32 %v1226, %v2370
    %2372 = vdwg.mxu0
    %2373 = vmatpush.msra.mxu0 %v917
    %2374 = vmatpush.msra.mxu0 %v899
    %2375 = vmatpush.msra.mxu0 %v881
    %2376 = vmatpush.msra.mxu0 %v863
    %2377 = vmatpush.msra.mxu0 %v845
    %2378 = vmatpush.msra.mxu0 %v827
    %2379 = vmatpush.msra.mxu0 %v809
    %2380 = vmatpush.msra.mxu0 %v791
    %2381 = vmatpush.msra.mxu0 %v773
    %2382 = vmatpush.msra.mxu0 %v755
    %2383 = vmatpush.msra.mxu0 %v737
    %2384 = vmatpush.msra.mxu0 %v719
    %2385 = vmatpush.msra.mxu0 %v701
    %2386 = vmatpush.msra.mxu0 %v683
    %2387 = vmatpush.msra.mxu0 %v665
    %2388 = vmatpush.msra.mxu0 %v647
    %2389 = vmatmul.f32.gmra.mxu0 %v338
    %v2390 = vpop.f32.mrf.mxu0
    %v2391 = vadd.f32 %v2368, %v2390
    %2392 = vmatmul.f32.gmra.mxu0 %v341
    %v2393 = vpop.f32.mrf.mxu0
    %v2394 = vadd.f32 %v2371, %v2393
    %2395 = vdwg.mxu0
    %2396 = vmatpush.msra.mxu0 %v1205
    %2397 = vmatpush.msra.mxu0 %v1187
    %2398 = vmatpush.msra.mxu0 %v1169
    %2399 = vmatpush.msra.mxu0 %v1151
    %2400 = vmatpush.msra.mxu0 %v1133
    %2401 = vmatpush.msra.mxu0 %v1115
    %2402 = vmatpush.msra.mxu0 %v1097
    %2403 = vmatpush.msra.mxu0 %v1079
    %2404 = vmatpush.msra.mxu0 %v1061
    %2405 = vmatpush.msra.mxu0 %v1043
    %2406 = vmatpush.msra.mxu0 %v1025
    %2407 = vmatpush.msra.mxu0 %v1007
    %2408 = vmatpush.msra.mxu0 %v989
    %2409 = vmatpush.msra.mxu0 %v971
    %2410 = vmatpush.msra.mxu0 %v953
    %2411 = vmatpush.msra.mxu0 %v935
    %2412 = vmatmul.f32.gmra.mxu0 %v339
    %v2413 = vpop.f32.mrf.mxu0
    %v2414 = vadd.f32 %v2391, %v2413
    %2415 = vmatmul.f32.gmra.mxu0 %v342
    %v2416 = vpop.f32.mrf.mxu0
    %v2417 = vadd.f32 %v2394, %v2416
    %2418 = vdwg.mxu0
    %2419 = vmatpush.msra.mxu0 %v630
    %2420 = vmatpush.msra.mxu0 %v612
    %2421 = vmatpush.msra.mxu0 %v594
    %2422 = vmatpush.msra.mxu0 %v576
    %2423 = vmatpush.msra.mxu0 %v558
    %2424 = vmatpush.msra.mxu0 %v540
    %2425 = vmatpush.msra.mxu0 %v522
    %2426 = vmatpush.msra.mxu0 %v504
    %2427 = vmatpush.msra.mxu0 %v486
    %2428 = vmatpush.msra.mxu0 %v468
    %2429 = vmatpush.msra.mxu0 %v450
    %2430 = vmatpush.msra.mxu0 %v432
    %2431 = vmatpush.msra.mxu0 %v414
    %2432 = vmatpush.msra.mxu0 %v396
    %2433 = vmatpush.msra.mxu0 %v378
    %2434 = vmatpush.msra.mxu0 %v360
    %2435 = vmatmul.f32.gmra.mxu0 %v337
    %v2436 = vpop.f32.mrf.mxu0
    %v2437 = vadd.f32 %v1227, %v2436
    %2438 = vmatmul.f32.gmra.mxu0 %v340
    %v2439 = vpop.f32.mrf.mxu0
    %v2440 = vadd.f32 %v1227, %v2439
    %2441 = vdwg.mxu0
    %2442 = vmatpush.msra.mxu0 %v918
    %2443 = vmatpush.msra.mxu0 %v900
    %2444 = vmatpush.msra.mxu0 %v882
    %2445 = vmatpush.msra.mxu0 %v864
    %2446 = vmatpush.msra.mxu0 %v846
    %2447 = vmatpush.msra.mxu0 %v828
    %2448 = vmatpush.msra.mxu0 %v810
    %2449 = vmatpush.msra.mxu0 %v792
    %2450 = vmatpush.msra.mxu0 %v774
    %2451 = vmatpush.msra.mxu0 %v756
    %2452 = vmatpush.msra.mxu0 %v738
    %2453 = vmatpush.msra.mxu0 %v720
    %2454 = vmatpush.msra.mxu0 %v702
    %2455 = vmatpush.msra.mxu0 %v684
    %2456 = vmatpush.msra.mxu0 %v666
    %2457 = vmatpush.msra.mxu0 %v648
    %2458 = vmatmul.f32.gmra.mxu0 %v338
    %v2459 = vpop.f32.mrf.mxu0
    %v2460 = vadd.f32 %v2437, %v2459
    %2461 = vmatmul.f32.gmra.mxu0 %v341
    %v2462 = vpop.f32.mrf.mxu0
    %v2463 = vadd.f32 %v2440, %v2462
    %2464 = vdwg.mxu0
    %2465 = vmatpush.msra.mxu0 %v1206
    %2466 = vmatpush.msra.mxu0 %v1188
    %2467 = vmatpush.msra.mxu0 %v1170
    %2468 = vmatpush.msra.mxu0 %v1152
    %2469 = vmatpush.msra.mxu0 %v1134
    %2470 = vmatpush.msra.mxu0 %v1116
    %2471 = vmatpush.msra.mxu0 %v1098
    %2472 = vmatpush.msra.mxu0 %v1080
    %2473 = vmatpush.msra.mxu0 %v1062
    %2474 = vmatpush.msra.mxu0 %v1044
    %2475 = vmatpush.msra.mxu0 %v1026
    %2476 = vmatpush.msra.mxu0 %v1008
    %2477 = vmatpush.msra.mxu0 %v990
    %2478 = vmatpush.msra.mxu0 %v972
    %2479 = vmatpush.msra.mxu0 %v954
    %2480 = vmatpush.msra.mxu0 %v936
    %2481 = vmatmul.f32.gmra.mxu0 %v339
    %v2482 = vpop.f32.mrf.mxu0
    %v2483 = vadd.f32 %v2460, %v2482
    %2484 = vmatmul.f32.gmra.mxu0 %v342
    %v2485 = vpop.f32.mrf.mxu0
    %v2486 = vadd.f32 %v2463, %v2485
    %2487 = vdwg.mxu0
    %2488 = vmatpush.xpose.msra.mxu0 0.0
    %2489 = vmatpush.xpose.msra.mxu0 0.0
    %2490 = vmatpush.xpose.msra.mxu0 0.0
    %2491 = vmatpush.xpose.msra.mxu0 0.0
    %2492 = vmatpush.xpose.msra.mxu0 0.0
    %2493 = vmatpush.xpose.msra.mxu0 0.0
    %2494 = vmatpush.xpose.msra.mxu0 0.0
    %2495 = vmatpush.xpose.msra.mxu0 0.0
    %2496 = vmatpush.xpose.msra.mxu0 0.0
    %2497 = vmatpush.xpose.msra.mxu0 0.0
    %2498 = vmatpush.xpose.msra.mxu0 0.0
    %2499 = vmatpush.xpose.msra.mxu0 0.0
    %2500 = vmatpush.xpose.msra.mxu0 0.0
    %2501 = vmatpush.xpose.msra.mxu0 0.0
    %2502 = vmatpush.xpose.msra.mxu0 0.0
    %2503 = vmatpush.xpose.msra.mxu0 %v1724
    %2504 = vmatmul.f32.gmra.mxu0 %v1310
    %v2505 = vpop.f32.mrf.mxu0
    %v2506 = vadd.f32 0.0, %v2505
    %2507 = vdwg.mxu0
    %v2508 = vmul.f32 %v2506, 0.14142136
    %vm2509 = vcmask 64512
    %v2510 = vsel %vm2509, %v2508, -inf
    %2511 = vmax.xlane.f32.xlu0 %v2510
    %v2512 = vpop.xlane.xlu0 %2511
    %v2513 = vsub.f32 %v2508, %v2512
    %v2514 = vmul.f32 %v2513, 1.442695
    %v2515 = vpow.pop %v2514
    %v2516 = vsel %vm2509, %v2515, 0.0
    %2517 = vadd.xlane.f32.xlu0 %v2516
    %v2518 = vpop.xlane.xlu0 %2517
    %v2519 = vrcp.pop %v2518
    %v2520 = vmul.f32 %v2515, %v2519
    %v2522 = vsel %vm2509, %v2520, 0
    %2524 = vmatpush.msra.mxu0 0.0
    %2525 = vmatpush.msra.mxu0 0.0
    %2526 = vmatpush.msra.mxu0 0.0
    %2527 = vmatpush.msra.mxu0 0.0
    %2528 = vmatpush.msra.mxu0 0.0
    %2529 = vmatpush.msra.mxu0 0.0
    %2530 = vmatpush.msra.mxu0 0.0
    %2531 = vmatpush.msra.mxu0 0.0
    %2532 = vmatpush.msra.mxu0 0.0
    %2533 = vmatpush.msra.mxu0 0.0
    %2534 = vmatpush.msra.mxu0 0.0
    %2535 = vmatpush.msra.mxu0 0.0
    %2536 = vmatpush.msra.mxu0 0.0
    %2537 = vmatpush.msra.mxu0 0.0
    %2538 = vmatpush.msra.mxu0 0.0
    %2539 = vmatpush.msra.mxu0 %v2138
    %2540 = vmatmul.f32.gmra.mxu0 %v2522
    %v2541 = vpop.f32.mrf.mxu0
    %v2542 = vadd.f32 0.0, %v2541
    %2543 = vdwg.mxu0
    %2544 = vmatpush.xpose.msra.mxu0 0.0
    %2545 = vmatpush.xpose.msra.mxu0 0.0
    %2546 = vmatpush.xpose.msra.mxu0 0.0
    %2547 = vmatpush.xpose.msra.mxu0 0.0
    %2548 = vmatpush.xpose.msra.mxu0 0.0
    %2549 = vmatpush.xpose.msra.mxu0 0.0
    %2550 = vmatpush.xpose.msra.mxu0 0.0
    %2551 = vmatpush.xpose.msra.mxu0 0.0
    %2552 = vmatpush.xpose.msra.mxu0 0.0
    %2553 = vmatpush.xpose.msra.mxu0 0.0
    %2554 = vmatpush.xpose.msra.mxu0 0.0
    %2555 = vmatpush.xpose.msra.mxu0 0.0
    %2556 = vmatpush.xpose.msra.mxu0 0.0
    %2557 = vmatpush.xpose.msra.mxu0 0.0
    %2558 = vmatpush.xpose.msra.mxu0 0.0
    %2559 = vmatpush.xpose.msra.mxu0 %v1793
    %2560 = vmatmul.f32.gmra.mxu0 %v1379
    %v2561 = vpop.f32.mrf.mxu0
    %v2562 = vadd.f32 0.0, %v2561
    %2563 = vdwg.mxu0
    %v2564 = vmul.f32 %v2562, 0.14142136
    %v2565 = vsel %vm2509, %v2564, -inf
    %2566 = vmax.xlane.f32.xlu0 %v2565
    %v2567 = vpop.xlane.xlu0 %2566
    %v2568 = vsub.f32 %v2564, %v2567
    %v2569 = vmul.f32 %v2568, 1.442695
    %v2570 = vpow.pop %v2569
    %v2571 = vsel %vm2509, %v2570, 0.0
    %2572 = vadd.xlane.f32.xlu0 %v2571
    %v2573 = vpop.xlane.xlu0 %2572
    %v2574 = vrcp.pop %v2573
    %v2575 = vmul.f32 %v2570, %v2574
    %v2577 = vsel %vm2509, %v2575, 0
    %2579 = vmatpush.msra.mxu0 0.0
    %2580 = vmatpush.msra.mxu0 0.0
    %2581 = vmatpush.msra.mxu0 0.0
    %2582 = vmatpush.msra.mxu0 0.0
    %2583 = vmatpush.msra.mxu0 0.0
    %2584 = vmatpush.msra.mxu0 0.0
    %2585 = vmatpush.msra.mxu0 0.0
    %2586 = vmatpush.msra.mxu0 0.0
    %2587 = vmatpush.msra.mxu0 0.0
    %2588 = vmatpush.msra.mxu0 0.0
    %2589 = vmatpush.msra.mxu0 0.0
    %2590 = vmatpush.msra.mxu0 0.0
    %2591 = vmatpush.msra.mxu0 0.0
    %2592 = vmatpush.msra.mxu0 0.0
    %2593 = vmatpush.msra.mxu0 0.0
    %2594 = vmatpush.msra.mxu0 %v2207
    %2595 = vmatmul.f32.gmra.mxu0 %v2577
    %v2596 = vpop.f32.mrf.mxu0
    %v2597 = vadd.f32 0.0, %v2596
    %2598 = vdwg.mxu0
    %2599 = vmatpush.xpose.msra.mxu0 0.0
    %2600 = vmatpush.xpose.msra.mxu0 0.0
    %2601 = vmatpush.xpose.msra.mxu0 0.0
    %2602 = vmatpush.xpose.msra.mxu0 0.0
    %2603 = vmatpush.xpose.msra.mxu0 0.0
    %2604 = vmatpush.xpose.msra.mxu0 0.0
    %2605 = vmatpush.xpose.msra.mxu0 0.0
    %2606 = vmatpush.xpose.msra.mxu0 0.0
    %2607 = vmatpush.xpose.msra.mxu0 0.0
    %2608 = vmatpush.xpose.msra.mxu0 0.0
    %2609 = vmatpush.xpose.msra.mxu0 0.0
    %2610 = vmatpush.xpose.msra.mxu0 0.0
    %2611 = vmatpush.xpose.msra.mxu0 0.0
    %2612 = vmatpush.xpose.msra.mxu0 0.0
    %2613 = vmatpush.xpose.msra.mxu0 0.0
    %2614 = vmatpush.xpose.msra.mxu0 %v1862
    %2615 = vmatmul.f32.gmra.mxu0 %v1448
    %v2616 = vpop.f32.mrf.mxu0
    %v2617 = vadd.f32 0.0, %v2616
    %2618 = vdwg.mxu0
    %v2619 = vmul.f32 %v2617, 0.14142136
    %v2620 = vsel %vm2509, %v2619, -inf
    %2621 = vmax.xlane.f32.xlu0 %v2620
    %v2622 = vpop.xlane.xlu0 %2621
    %v2623 = vsub.f32 %v2619, %v2622
    %v2624 = vmul.f32 %v2623, 1.442695
    %v2625 = vpow.pop %v2624
    %v2626 = vsel %vm2509, %v2625, 0.0
    %2627 = vadd.xlane.f32.xlu0 %v2626
    %v2628 = vpop.xlane.xlu0 %2627
    %v2629 = vrcp.pop %v2628
    %v2630 = vmul.f32 %v2625, %v2629
    %v2632 = vsel %vm2509, %v2630, 0
    %2634 = vmatpush.msra.mxu0 0.0
    %2635 = vmatpush.msra.mxu0 0.0
    %2636 = vmatpush.msra.mxu0 0.0
    %2637 = vmatpush.msra.mxu0 0.0
    %2638 = vmatpush.msra.mxu0 0.0
    %2639 = vmatpush.msra.mxu0 0.0
    %2640 = vmatpush.msra.mxu0 0.0
    %2641 = vmatpush.msra.mxu0 0.0
    %2642 = vmatpush.msra.mxu0 0.0
    %2643 = vmatpush.msra.mxu0 0.0
    %2644 = vmatpush.msra.mxu0 0.0
    %2645 = vmatpush.msra.mxu0 0.0
    %2646 = vmatpush.msra.mxu0 0.0
    %2647 = vmatpush.msra.mxu0 0.0
    %2648 = vmatpush.msra.mxu0 0.0
    %2649 = vmatpush.msra.mxu0 %v2276
    %2650 = vmatmul.f32.gmra.mxu0 %v2632
    %v2651 = vpop.f32.mrf.mxu0
    %v2652 = vadd.f32 0.0, %v2651
    %2653 = vdwg.mxu0
    %2654 = vmatpush.xpose.msra.mxu0 0.0
    %2655 = vmatpush.xpose.msra.mxu0 0.0
    %2656 = vmatpush.xpose.msra.mxu0 0.0
    %2657 = vmatpush.xpose.msra.mxu0 0.0
    %2658 = vmatpush.xpose.msra.mxu0 0.0
    %2659 = vmatpush.xpose.msra.mxu0 0.0
    %2660 = vmatpush.xpose.msra.mxu0 0.0
    %2661 = vmatpush.xpose.msra.mxu0 0.0
    %2662 = vmatpush.xpose.msra.mxu0 0.0
    %2663 = vmatpush.xpose.msra.mxu0 0.0
    %2664 = vmatpush.xpose.msra.mxu0 0.0
    %2665 = vmatpush.xpose.msra.mxu0 0.0
    %2666 = vmatpush.xpose.msra.mxu0 0.0
    %2667 = vmatpush.xpose.msra.mxu0 0.0
    %2668 = vmatpush.xpose.msra.mxu0 0.0
    %2669 = vmatpush.xpose.msra.mxu0 %v1931
    %2670 = vmatmul.f32.gmra.mxu0 %v1517
    %v2671 = vpop.f32.mrf.mxu0
    %v2672 = vadd.f32 0.0, %v2671
    %2673 = vdwg.mxu0
    %v2674 = vmul.f32 %v2672, 0.14142136
    %v2675 = vsel %vm2509, %v2674, -inf
    %2676 = vmax.xlane.f32.xlu0 %v2675
    %v2677 = vpop.xlane.xlu0 %2676
    %v2678 = vsub.f32 %v2674, %v2677
    %v2679 = vmul.f32 %v2678, 1.442695
    %v2680 = vpow.pop %v2679
    %v2681 = vsel %vm2509, %v2680, 0.0
    %2682 = vadd.xlane.f32.xlu0 %v2681
    %v2683 = vpop.xlane.xlu0 %2682
    %v2684 = vrcp.pop %v2683
    %v2685 = vmul.f32 %v2680, %v2684
    %v2687 = vsel %vm2509, %v2685, 0
    %2689 = vmatpush.msra.mxu0 0.0
    %2690 = vmatpush.msra.mxu0 0.0
    %2691 = vmatpush.msra.mxu0 0.0
    %2692 = vmatpush.msra.mxu0 0.0
    %2693 = vmatpush.msra.mxu0 0.0
    %2694 = vmatpush.msra.mxu0 0.0
    %2695 = vmatpush.msra.mxu0 0.0
    %2696 = vmatpush.msra.mxu0 0.0
    %2697 = vmatpush.msra.mxu0 0.0
    %2698 = vmatpush.msra.mxu0 0.0
    %2699 = vmatpush.msra.mxu0 0.0
    %2700 = vmatpush.msra.mxu0 0.0
    %2701 = vmatpush.msra.mxu0 0.0
    %2702 = vmatpush.msra.mxu0 0.0
    %2703 = vmatpush.msra.mxu0 0.0
    %2704 = vmatpush.msra.mxu0 %v2345
    %2705 = vmatmul.f32.gmra.mxu0 %v2687
    %v2706 = vpop.f32.mrf.mxu0
    %v2707 = vadd.f32 0.0, %v2706
    %2708 = vdwg.mxu0
    %2709 = vmatpush.xpose.msra.mxu0 0.0
    %2710 = vmatpush.xpose.msra.mxu0 0.0
    %2711 = vmatpush.xpose.msra.mxu0 0.0
    %2712 = vmatpush.xpose.msra.mxu0 0.0
    %2713 = vmatpush.xpose.msra.mxu0 0.0
    %2714 = vmatpush.xpose.msra.mxu0 0.0
    %2715 = vmatpush.xpose.msra.mxu0 0.0
    %2716 = vmatpush.xpose.msra.mxu0 0.0
    %2717 = vmatpush.xpose.msra.mxu0 0.0
    %2718 = vmatpush.xpose.msra.mxu0 0.0
    %2719 = vmatpush.xpose.msra.mxu0 0.0
    %2720 = vmatpush.xpose.msra.mxu0 0.0
    %2721 = vmatpush.xpose.msra.mxu0 0.0
    %2722 = vmatpush.xpose.msra.mxu0 0.0
    %2723 = vmatpush.xpose.msra.mxu0 0.0
    %2724 = vmatpush.xpose.msra.mxu0 %v2000
    %2725 = vmatmul.f32.gmra.mxu0 %v1586
    %v2726 = vpop.f32.mrf.mxu0
    %v2727 = vadd.f32 0.0, %v2726
    %2728 = vdwg.mxu0
    %v2729 = vmul.f32 %v2727, 0.14142136
    %v2730 = vsel %vm2509, %v2729, -inf
    %2731 = vmax.xlane.f32.xlu0 %v2730
    %v2732 = vpop.xlane.xlu0 %2731
    %v2733 = vsub.f32 %v2729, %v2732
    %v2734 = vmul.f32 %v2733, 1.442695
    %v2735 = vpow.pop %v2734
    %v2736 = vsel %vm2509, %v2735, 0.0
    %2737 = vadd.xlane.f32.xlu0 %v2736
    %v2738 = vpop.xlane.xlu0 %2737
    %v2739 = vrcp.pop %v2738
    %v2740 = vmul.f32 %v2735, %v2739
    %v2742 = vsel %vm2509, %v2740, 0
    %2744 = vmatpush.msra.mxu0 0.0
    %2745 = vmatpush.msra.mxu0 0.0
    %2746 = vmatpush.msra.mxu0 0.0
    %2747 = vmatpush.msra.mxu0 0.0
    %2748 = vmatpush.msra.mxu0 0.0
    %2749 = vmatpush.msra.mxu0 0.0
    %2750 = vmatpush.msra.mxu0 0.0
    %2751 = vmatpush.msra.mxu0 0.0
    %2752 = vmatpush.msra.mxu0 0.0
    %2753 = vmatpush.msra.mxu0 0.0
    %2754 = vmatpush.msra.mxu0 0.0
    %2755 = vmatpush.msra.mxu0 0.0
    %2756 = vmatpush.msra.mxu0 0.0
    %2757 = vmatpush.msra.mxu0 0.0
    %2758 = vmatpush.msra.mxu0 0.0
    %2759 = vmatpush.msra.mxu0 %v2414
    %2760 = vmatmul.f32.gmra.mxu0 %v2742
    %v2761 = vpop.f32.mrf.mxu0
    %v2762 = vadd.f32 0.0, %v2761
    %2763 = vdwg.mxu0
    %2764 = vmatpush.xpose.msra.mxu0 0.0
    %2765 = vmatpush.xpose.msra.mxu0 0.0
    %2766 = vmatpush.xpose.msra.mxu0 0.0
    %2767 = vmatpush.xpose.msra.mxu0 0.0
    %2768 = vmatpush.xpose.msra.mxu0 0.0
    %2769 = vmatpush.xpose.msra.mxu0 0.0
    %2770 = vmatpush.xpose.msra.mxu0 0.0
    %2771 = vmatpush.xpose.msra.mxu0 0.0
    %2772 = vmatpush.xpose.msra.mxu0 0.0
    %2773 = vmatpush.xpose.msra.mxu0 0.0
    %2774 = vmatpush.xpose.msra.mxu0 0.0
    %2775 = vmatpush.xpose.msra.mxu0 0.0
    %2776 = vmatpush.xpose.msra.mxu0 0.0
    %2777 = vmatpush.xpose.msra.mxu0 0.0
    %2778 = vmatpush.xpose.msra.mxu0 0.0
    %2779 = vmatpush.xpose.msra.mxu0 %v2069
    %2780 = vmatmul.f32.gmra.mxu0 %v1655
    %v2781 = vpop.f32.mrf.mxu0
    %v2782 = vadd.f32 0.0, %v2781
    %2783 = vdwg.mxu0
    %v2784 = vmul.f32 %v2782, 0.14142136
    %v2785 = vsel %vm2509, %v2784, -inf
    %2786 = vmax.xlane.f32.xlu0 %v2785
    %v2787 = vpop.xlane.xlu0 %2786
    %v2788 = vsub.f32 %v2784, %v2787
    %v2789 = vmul.f32 %v2788, 1.442695
    %v2790 = vpow.pop %v2789
    %v2791 = vsel %vm2509, %v2790, 0.0
    %2792 = vadd.xlane.f32.xlu0 %v2791
    %v2793 = vpop.xlane.xlu0 %2792
    %v2794 = vrcp.pop %v2793
    %v2795 = vmul.f32 %v2790, %v2794
    %v2797 = vsel %vm2509, %v2795, 0
    %2799 = vmatpush.msra.mxu0 0.0
    %2800 = vmatpush.msra.mxu0 0.0
    %2801 = vmatpush.msra.mxu0 0.0
    %2802 = vmatpush.msra.mxu0 0.0
    %2803 = vmatpush.msra.mxu0 0.0
    %2804 = vmatpush.msra.mxu0 0.0
    %2805 = vmatpush.msra.mxu0 0.0
    %2806 = vmatpush.msra.mxu0 0.0
    %2807 = vmatpush.msra.mxu0 0.0
    %2808 = vmatpush.msra.mxu0 0.0
    %2809 = vmatpush.msra.mxu0 0.0
    %2810 = vmatpush.msra.mxu0 0.0
    %2811 = vmatpush.msra.mxu0 0.0
    %2812 = vmatpush.msra.mxu0 0.0
    %2813 = vmatpush.msra.mxu0 0.0
    %2814 = vmatpush.msra.mxu0 %v2483
    %2815 = vmatmul.f32.gmra.mxu0 %v2797
    %v2816 = vpop.f32.mrf.mxu0
    %v2817 = vadd.f32 0.0, %v2816
    %2818 = vdwg.mxu0
    %2819 = vmatpush.xpose.msra.mxu0 0.0
    %2820 = vmatpush.xpose.msra.mxu0 0.0
    %2821 = vmatpush.xpose.msra.mxu0 0.0
    %2822 = vmatpush.xpose.msra.mxu0 0.0
    %2823 = vmatpush.xpose.msra.mxu0 0.0
    %2824 = vmatpush.xpose.msra.mxu0 0.0
    %2825 = vmatpush.xpose.msra.mxu0 0.0
    %2826 = vmatpush.xpose.msra.mxu0 0.0
    %2827 = vmatpush.xpose.msra.mxu0 0.0
    %2828 = vmatpush.xpose.msra.mxu0 0.0
    %2829 = vmatpush.xpose.msra.mxu0 0.0
    %2830 = vmatpush.xpose.msra.mxu0 0.0
    %2831 = vmatpush.xpose.msra.mxu0 0.0
    %2832 = vmatpush.xpose.msra.mxu0 0.0
    %2833 = vmatpush.xpose.msra.mxu0 0.0
    %2834 = vmatpush.xpose.msra.mxu0 %v1727
    %2835 = vmatmul.f32.gmra.mxu0 %v1313
    %v2836 = vpop.f32.mrf.mxu0
    %v2837 = vadd.f32 0.0, %v2836
    %2838 = vdwg.mxu0
    %v2839 = vmul.f32 %v2837, 0.14142136
    %v2840 = vsel %vm2509, %v2839, -inf
    %2841 = vmax.xlane.f32.xlu0 %v2840
    %v2842 = vpop.xlane.xlu0 %2841
    %v2843 = vsub.f32 %v2839, %v2842
    %v2844 = vmul.f32 %v2843, 1.442695
    %v2845 = vpow.pop %v2844
    %v2846 = vsel %vm2509, %v2845, 0.0
    %2847 = vadd.xlane.f32.xlu0 %v2846
    %v2848 = vpop.xlane.xlu0 %2847
    %v2849 = vrcp.pop %v2848
    %v2850 = vmul.f32 %v2845, %v2849
    %v2852 = vsel %vm2509, %v2850, 0
    %2854 = vmatpush.msra.mxu0 0.0
    %2855 = vmatpush.msra.mxu0 0.0
    %2856 = vmatpush.msra.mxu0 0.0
    %2857 = vmatpush.msra.mxu0 0.0
    %2858 = vmatpush.msra.mxu0 0.0
    %2859 = vmatpush.msra.mxu0 0.0
    %2860 = vmatpush.msra.mxu0 0.0
    %2861 = vmatpush.msra.mxu0 0.0
    %2862 = vmatpush.msra.mxu0 0.0
    %2863 = vmatpush.msra.mxu0 0.0
    %2864 = vmatpush.msra.mxu0 0.0
    %2865 = vmatpush.msra.mxu0 0.0
    %2866 = vmatpush.msra.mxu0 0.0
    %2867 = vmatpush.msra.mxu0 0.0
    %2868 = vmatpush.msra.mxu0 0.0
    %2869 = vmatpush.msra.mxu0 %v2141
    %2870 = vmatmul.f32.gmra.mxu0 %v2852
    %v2871 = vpop.f32.mrf.mxu0
    %v2872 = vadd.f32 0.0, %v2871
    %2873 = vdwg.mxu0
    %2874 = vmatpush.xpose.msra.mxu0 0.0
    %2875 = vmatpush.xpose.msra.mxu0 0.0
    %2876 = vmatpush.xpose.msra.mxu0 0.0
    %2877 = vmatpush.xpose.msra.mxu0 0.0
    %2878 = vmatpush.xpose.msra.mxu0 0.0
    %2879 = vmatpush.xpose.msra.mxu0 0.0
    %2880 = vmatpush.xpose.msra.mxu0 0.0
    %2881 = vmatpush.xpose.msra.mxu0 0.0
    %2882 = vmatpush.xpose.msra.mxu0 0.0
    %2883 = vmatpush.xpose.msra.mxu0 0.0
    %2884 = vmatpush.xpose.msra.mxu0 0.0
    %2885 = vmatpush.xpose.msra.mxu0 0.0
    %2886 = vmatpush.xpose.msra.mxu0 0.0
    %2887 = vmatpush.xpose.msra.mxu0 0.0
    %2888 = vmatpush.xpose.msra.mxu0 0.0
    %2889 = vmatpush.xpose.msra.mxu0 %v1796
    %2890 = vmatmul.f32.gmra.mxu0 %v1382
    %v2891 = vpop.f32.mrf.mxu0
    %v2892 = vadd.f32 0.0, %v2891
    %2893 = vdwg.mxu0
    %v2894 = vmul.f32 %v2892, 0.14142136
    %v2895 = vsel %vm2509, %v2894, -inf
    %2896 = vmax.xlane.f32.xlu0 %v2895
    %v2897 = vpop.xlane.xlu0 %2896
    %v2898 = vsub.f32 %v2894, %v2897
    %v2899 = vmul.f32 %v2898, 1.442695
    %v2900 = vpow.pop %v2899
    %v2901 = vsel %vm2509, %v2900, 0.0
    %2902 = vadd.xlane.f32.xlu0 %v2901
    %v2903 = vpop.xlane.xlu0 %2902
    %v2904 = vrcp.pop %v2903
    %v2905 = vmul.f32 %v2900, %v2904
    %v2907 = vsel %vm2509, %v2905, 0
    %2909 = vmatpush.msra.mxu0 0.0
    %2910 = vmatpush.msra.mxu0 0.0
    %2911 = vmatpush.msra.mxu0 0.0
    %2912 = vmatpush.msra.mxu0 0.0
    %2913 = vmatpush.msra.mxu0 0.0
    %2914 = vmatpush.msra.mxu0 0.0
    %2915 = vmatpush.msra.mxu0 0.0
    %2916 = vmatpush.msra.mxu0 0.0
    %2917 = vmatpush.msra.mxu0 0.0
    %2918 = vmatpush.msra.mxu0 0.0
    %2919 = vmatpush.msra.mxu0 0.0
    %2920 = vmatpush.msra.mxu0 0.0
    %2921 = vmatpush.msra.mxu0 0.0
    %2922 = vmatpush.msra.mxu0 0.0
    %2923 = vmatpush.msra.mxu0 0.0
    %2924 = vmatpush.msra.mxu0 %v2210
    %2925 = vmatmul.f32.gmra.mxu0 %v2907
    %v2926 = vpop.f32.mrf.mxu0
    %v2927 = vadd.f32 0.0, %v2926
    %2928 = vdwg.mxu0
    %2929 = vmatpush.xpose.msra.mxu0 0.0
    %2930 = vmatpush.xpose.msra.mxu0 0.0
    %2931 = vmatpush.xpose.msra.mxu0 0.0
    %2932 = vmatpush.xpose.msra.mxu0 0.0
    %2933 = vmatpush.xpose.msra.mxu0 0.0
    %2934 = vmatpush.xpose.msra.mxu0 0.0
    %2935 = vmatpush.xpose.msra.mxu0 0.0
    %2936 = vmatpush.xpose.msra.mxu0 0.0
    %2937 = vmatpush.xpose.msra.mxu0 0.0
    %2938 = vmatpush.xpose.msra.mxu0 0.0
    %2939 = vmatpush.xpose.msra.mxu0 0.0
    %2940 = vmatpush.xpose.msra.mxu0 0.0
    %2941 = vmatpush.xpose.msra.mxu0 0.0
    %2942 = vmatpush.xpose.msra.mxu0 0.0
    %2943 = vmatpush.xpose.msra.mxu0 0.0
    %2944 = vmatpush.xpose.msra.mxu0 %v1865
    %2945 = vmatmul.f32.gmra.mxu0 %v1451
    %v2946 = vpop.f32.mrf.mxu0
    %v2947 = vadd.f32 0.0, %v2946
    %2948 = vdwg.mxu0
    %v2949 = vmul.f32 %v2947, 0.14142136
    %v2950 = vsel %vm2509, %v2949, -inf
    %2951 = vmax.xlane.f32.xlu0 %v2950
    %v2952 = vpop.xlane.xlu0 %2951
    %v2953 = vsub.f32 %v2949, %v2952
    %v2954 = vmul.f32 %v2953, 1.442695
    %v2955 = vpow.pop %v2954
    %v2956 = vsel %vm2509, %v2955, 0.0
    %2957 = vadd.xlane.f32.xlu0 %v2956
    %v2958 = vpop.xlane.xlu0 %2957
    %v2959 = vrcp.pop %v2958
    %v2960 = vmul.f32 %v2955, %v2959
    %v2962 = vsel %vm2509, %v2960, 0
    %2964 = vmatpush.msra.mxu0 0.0
    %2965 = vmatpush.msra.mxu0 0.0
    %2966 = vmatpush.msra.mxu0 0.0
    %2967 = vmatpush.msra.mxu0 0.0
    %2968 = vmatpush.msra.mxu0 0.0
    %2969 = vmatpush.msra.mxu0 0.0
    %2970 = vmatpush.msra.mxu0 0.0
    %2971 = vmatpush.msra.mxu0 0.0
    %2972 = vmatpush.msra.mxu0 0.0
    %2973 = vmatpush.msra.mxu0 0.0
    %2974 = vmatpush.msra.mxu0 0.0
    %2975 = vmatpush.msra.mxu0 0.0
    %2976 = vmatpush.msra.mxu0 0.0
    %2977 = vmatpush.msra.mxu0 0.0
    %2978 = vmatpush.msra.mxu0 0.0
    %2979 = vmatpush.msra.mxu0 %v2279
    %2980 = vmatmul.f32.gmra.mxu0 %v2962
    %v2981 = vpop.f32.mrf.mxu0
    %v2982 = vadd.f32 0.0, %v2981
    %2983 = vdwg.mxu0
    %2984 = vmatpush.xpose.msra.mxu0 0.0
    %2985 = vmatpush.xpose.msra.mxu0 0.0
    %2986 = vmatpush.xpose.msra.mxu0 0.0
    %2987 = vmatpush.xpose.msra.mxu0 0.0
    %2988 = vmatpush.xpose.msra.mxu0 0.0
    %2989 = vmatpush.xpose.msra.mxu0 0.0
    %2990 = vmatpush.xpose.msra.mxu0 0.0
    %2991 = vmatpush.xpose.msra.mxu0 0.0
    %2992 = vmatpush.xpose.msra.mxu0 0.0
    %2993 = vmatpush.xpose.msra.mxu0 0.0
    %2994 = vmatpush.xpose.msra.mxu0 0.0
    %2995 = vmatpush.xpose.msra.mxu0 0.0
    %2996 = vmatpush.xpose.msra.mxu0 0.0
    %2997 = vmatpush.xpose.msra.mxu0 0.0
    %2998 = vmatpush.xpose.msra.mxu0 0.0
    %2999 = vmatpush.xpose.msra.mxu0 %v1934
    %3000 = vmatmul.f32.gmra.mxu0 %v1520
    %v3001 = vpop.f32.mrf.mxu0
    %v3002 = vadd.f32 0.0, %v3001
    %3003 = vdwg.mxu0
    %v3004 = vmul.f32 %v3002, 0.14142136
    %v3005 = vsel %vm2509, %v3004, -inf
    %3006 = vmax.xlane.f32.xlu0 %v3005
    %v3007 = vpop.xlane.xlu0 %3006
    %v3008 = vsub.f32 %v3004, %v3007
    %v3009 = vmul.f32 %v3008, 1.442695
    %v3010 = vpow.pop %v3009
    %v3011 = vsel %vm2509, %v3010, 0.0
    %3012 = vadd.xlane.f32.xlu0 %v3011
    %v3013 = vpop.xlane.xlu0 %3012
    %v3014 = vrcp.pop %v3013
    %v3015 = vmul.f32 %v3010, %v3014
    %v3017 = vsel %vm2509, %v3015, 0
    %3019 = vmatpush.msra.mxu0 0.0
    %3020 = vmatpush.msra.mxu0 0.0
    %3021 = vmatpush.msra.mxu0 0.0
    %3022 = vmatpush.msra.mxu0 0.0
    %3023 = vmatpush.msra.mxu0 0.0
    %3024 = vmatpush.msra.mxu0 0.0
    %3025 = vmatpush.msra.mxu0 0.0
    %3026 = vmatpush.msra.mxu0 0.0
    %3027 = vmatpush.msra.mxu0 0.0
    %3028 = vmatpush.msra.mxu0 0.0
    %3029 = vmatpush.msra.mxu0 0.0
    %3030 = vmatpush.msra.mxu0 0.0
    %3031 = vmatpush.msra.mxu0 0.0
    %3032 = vmatpush.msra.mxu0 0.0
    %3033 = vmatpush.msra.mxu0 0.0
    %3034 = vmatpush.msra.mxu0 %v2348
    %3035 = vmatmul.f32.gmra.mxu0 %v3017
    %v3036 = vpop.f32.mrf.mxu0
    %v3037 = vadd.f32 0.0, %v3036
    %3038 = vdwg.mxu0
    %3039 = vmatpush.xpose.msra.mxu0 0.0
    %3040 = vmatpush.xpose.msra.mxu0 0.0
    %3041 = vmatpush.xpose.msra.mxu0 0.0
    %3042 = vmatpush.xpose.msra.mxu0 0.0
    %3043 = vmatpush.xpose.msra.mxu0 0.0
    %3044 = vmatpush.xpose.msra.mxu0 0.0
    %3045 = vmatpush.xpose.msra.mxu0 0.0
    %3046 = vmatpush.xpose.msra.mxu0 0.0
    %3047 = vmatpush.xpose.msra.mxu0 0.0
    %3048 = vmatpush.xpose.msra.mxu0 0.0
    %3049 = vmatpush.xpose.msra.mxu0 0.0
    %3050 = vmatpush.xpose.msra.mxu0 0.0
    %3051 = vmatpush.xpose.msra.mxu0 0.0
    %3052 = vmatpush.xpose.msra.mxu0 0.0
    %3053 = vmatpush.xpose.msra.mxu0 0.0
    %3054 = vmatpush.xpose.msra.mxu0 %v2003
    %3055 = vmatmul.f32.gmra.mxu0 %v1589
    %v3056 = vpop.f32.mrf.mxu0
    %v3057 = vadd.f32 0.0, %v3056
    %3058 = vdwg.mxu0
    %v3059 = vmul.f32 %v3057, 0.14142136
    %v3060 = vsel %vm2509, %v3059, -inf
    %3061 = vmax.xlane.f32.xlu0 %v3060
    %v3062 = vpop.xlane.xlu0 %3061
    %v3063 = vsub.f32 %v3059, %v3062
    %v3064 = vmul.f32 %v3063, 1.442695
    %v3065 = vpow.pop %v3064
    %v3066 = vsel %vm2509, %v3065, 0.0
    %3067 = vadd.xlane.f32.xlu0 %v3066
    %v3068 = vpop.xlane.xlu0 %3067
    %v3069 = vrcp.pop %v3068
    %v3070 = vmul.f32 %v3065, %v3069
    %v3072 = vsel %vm2509, %v3070, 0
    %3074 = vmatpush.msra.mxu0 0.0
    %3075 = vmatpush.msra.mxu0 0.0
    %3076 = vmatpush.msra.mxu0 0.0
    %3077 = vmatpush.msra.mxu0 0.0
    %3078 = vmatpush.msra.mxu0 0.0
    %3079 = vmatpush.msra.mxu0 0.0
    %3080 = vmatpush.msra.mxu0 0.0
    %3081 = vmatpush.msra.mxu0 0.0
    %3082 = vmatpush.msra.mxu0 0.0
    %3083 = vmatpush.msra.mxu0 0.0
    %3084 = vmatpush.msra.mxu0 0.0
    %3085 = vmatpush.msra.mxu0 0.0
    %3086 = vmatpush.msra.mxu0 0.0
    %3087 = vmatpush.msra.mxu0 0.0
    %3088 = vmatpush.msra.mxu0 0.0
    %3089 = vmatpush.msra.mxu0 %v2417
    %3090 = vmatmul.f32.gmra.mxu0 %v3072
    %v3091 = vpop.f32.mrf.mxu0
    %v3092 = vadd.f32 0.0, %v3091
    %3093 = vdwg.mxu0
    %3094 = vmatpush.xpose.msra.mxu0 0.0
    %3095 = vmatpush.xpose.msra.mxu0 0.0
    %3096 = vmatpush.xpose.msra.mxu0 0.0
    %3097 = vmatpush.xpose.msra.mxu0 0.0
    %3098 = vmatpush.xpose.msra.mxu0 0.0
    %3099 = vmatpush.xpose.msra.mxu0 0.0
    %3100 = vmatpush.xpose.msra.mxu0 0.0
    %3101 = vmatpush.xpose.msra.mxu0 0.0
    %3102 = vmatpush.xpose.msra.mxu0 0.0
    %3103 = vmatpush.xpose.msra.mxu0 0.0
    %3104 = vmatpush.xpose.msra.mxu0 0.0
    %3105 = vmatpush.xpose.msra.mxu0 0.0
    %3106 = vmatpush.xpose.msra.mxu0 0.0
    %3107 = vmatpush.xpose.msra.mxu0 0.0
    %3108 = vmatpush.xpose.msra.mxu0 0.0
    %3109 = vmatpush.xpose.msra.mxu0 %v2072
    %3110 = vmatmul.f32.gmra.mxu0 %v1658
    %v3111 = vpop.f32.mrf.mxu0
    %v3112 = vadd.f32 0.0, %v3111
    %3113 = vdwg.mxu0
    %v3114 = vmul.f32 %v3112, 0.14142136
    %v3115 = vsel %vm2509, %v3114, -inf
    %3116 = vmax.xlane.f32.xlu0 %v3115
    %v3117 = vpop.xlane.xlu0 %3116
    %v3118 = vsub.f32 %v3114, %v3117
    %v3119 = vmul.f32 %v3118, 1.442695
    %v3120 = vpow.pop %v3119
    %v3121 = vsel %vm2509, %v3120, 0.0
    %3122 = vadd.xlane.f32.xlu0 %v3121
    %v3123 = vpop.xlane.xlu0 %3122
    %v3124 = vrcp.pop %v3123
    %v3125 = vmul.f32 %v3120, %v3124
    %v3127 = vsel %vm2509, %v3125, 0
    %3129 = vmatpush.msra.mxu0 0.0
    %3130 = vmatpush.msra.mxu0 0.0
    %3131 = vmatpush.msra.mxu0 0.0
    %3132 = vmatpush.msra.mxu0 0.0
    %3133 = vmatpush.msra.mxu0 0.0
    %3134 = vmatpush.msra.mxu0 0.0
    %3135 = vmatpush.msra.mxu0 0.0
    %3136 = vmatpush.msra.mxu0 0.0
    %3137 = vmatpush.msra.mxu0 0.0
    %3138 = vmatpush.msra.mxu0 0.0
    %3139 = vmatpush.msra.mxu0 0.0
    %3140 = vmatpush.msra.mxu0 0.0
    %3141 = vmatpush.msra.mxu0 0.0
    %3142 = vmatpush.msra.mxu0 0.0
    %3143 = vmatpush.msra.mxu0 0.0
    %3144 = vmatpush.msra.mxu0 %v2486
    %3145 = vmatmul.f32.gmra.mxu0 %v3127
    %v3146 = vpop.f32.mrf.mxu0
    %v3147 = vadd.f32 0.0, %v3146
    %3148 = vdwg.mxu0
    %v3149 = vld [vmem:[#allocation7] sm:$0xff]
    %v3150 = vld [vmem:[#allocation7 + $0x8] sm:$0xff]
    %v3151 = vld [vmem:[#allocation7 + $0x10] sm:$0xff]
    %v3152 = vld [vmem:[#allocation7 + $0x18] sm:$0xff]
    %v3153 = vld [vmem:[#allocation7 + $0x20] sm:$0xff]
    %v3154 = vld [vmem:[#allocation7 + $0x28] sm:$0xff]
    %v3155 = vld [vmem:[#allocation7 + $0x30] sm:$0xff]
    %v3156 = vld [vmem:[#allocation7 + $0x38] sm:$0xff]
    %v3157 = vld [vmem:[#allocation7 + $0x40] sm:$0xff]
    %v3158 = vld [vmem:[#allocation7 + $0x48] sm:$0xff]
    %v3159 = vld [vmem:[#allocation7 + $0x50] sm:$0xff]
    %v3160 = vld [vmem:[#allocation7 + $0x58] sm:$0xff]
    %v3161 = vld [vmem:[#allocation7 + $0x60] sm:$0xff]
    %v3162 = vld [vmem:[#allocation7 + $0x68] sm:$0xff]
    %v3163 = vld [vmem:[#allocation7 + $0x70] sm:$0xff]
    %v3164 = vld [vmem:[#allocation7 + $0x78] sm:$0xff]
    %v3165 = vld [vmem:[#allocation7 + $0x80] sm:$0xff]
    %v3166 = vld [vmem:[#allocation7 + $0x88] sm:$0xff]
    %v3167 = vld [vmem:[#allocation7 + $0x90] sm:$0xff]
    %v3168 = vld [vmem:[#allocation7 + $0x98] sm:$0xff]
    %v3169 = vld [vmem:[#allocation7 + $0xa0] sm:$0xff]
    %v3170 = vld [vmem:[#allocation7 + $0xa8] sm:$0xff]
    %v3171 = vld [vmem:[#allocation7 + $0xb0] sm:$0xff]
    %v3172 = vld [vmem:[#allocation7 + $0xb8] sm:$0xff]
    %v3173 = vld [vmem:[#allocation7 + $0xc0] sm:$0xff]
    %v3174 = vld [vmem:[#allocation7 + $0xc8] sm:$0xff]
    %v3175 = vld [vmem:[#allocation7 + $0xd0] sm:$0xff]
    %v3176 = vld [vmem:[#allocation7 + $0xd8] sm:$0xff]
    %v3177 = vld [vmem:[#allocation7 + $0xe0] sm:$0xff]
    %v3178 = vld [vmem:[#allocation7 + $0xe8] sm:$0xff]
    %v3179 = vld [vmem:[#allocation7 + $0xf0] sm:$0xff]
    %v3180 = vld [vmem:[#allocation7 + $0xf8] sm:$0xff]
    %v3181 = vld [vmem:[#allocation7 + $0x100] sm:$0xff]
    %v3182 = vld [vmem:[#allocation7 + $0x108] sm:$0xff]
    %v3183 = vld [vmem:[#allocation7 + $0x110] sm:$0xff]
    %v3184 = vld [vmem:[#allocation7 + $0x118] sm:$0xff]
    %v3185 = vld [vmem:[#allocation7 + $0x120] sm:$0xff]
    %v3186 = vld [vmem:[#allocation7 + $0x128] sm:$0xff]
    %v3187 = vld [vmem:[#allocation7 + $0x130] sm:$0xff]
    %v3188 = vld [vmem:[#allocation7 + $0x138] sm:$0xff]
    %v3189 = vld [vmem:[#allocation7 + $0x140] sm:$0xff]
    %v3190 = vld [vmem:[#allocation7 + $0x148] sm:$0xff]
    %v3191 = vld [vmem:[#allocation7 + $0x150] sm:$0xff]
    %v3192 = vld [vmem:[#allocation7 + $0x158] sm:$0xff]
    %v3193 = vld [vmem:[#allocation7 + $0x160] sm:$0xff]
    %v3194 = vld [vmem:[#allocation7 + $0x168] sm:$0xff]
    %v3195 = vld [vmem:[#allocation7 + $0x170] sm:$0xff]
    %v3196 = vld [vmem:[#allocation7 + $0x178] sm:$0xff]
    %v3197 = vld [vmem:[#allocation7 + $0x180] sm:$0xff]
    %v3198 = vld [vmem:[#allocation7 + $0x188] sm:$0xff]
    %v3199 = vld [vmem:[#allocation7 + $0x190] sm:$0xff]
    %v3200 = vld [vmem:[#allocation7 + $0x198] sm:$0xff]
    %v3201 = vld [vmem:[#allocation7 + $0x1a0] sm:$0xff]
    %v3202 = vld [vmem:[#allocation7 + $0x1a8] sm:$0xff]
    %v3203 = vld [vmem:[#allocation7 + $0x1b0] sm:$0xff]
    %v3204 = vld [vmem:[#allocation7 + $0x1b8] sm:$0xff]
    %v3205 = vld [vmem:[#allocation7 + $0x1c0] sm:$0xff]
    %v3206 = vld [vmem:[#allocation7 + $0x1c8] sm:$0xff]
    %v3207 = vld [vmem:[#allocation7 + $0x1d0] sm:$0xff]
    %v3208 = vld [vmem:[#allocation7 + $0x1d8] sm:$0xff]
    %v3209 = vld [vmem:[#allocation7 + $0x1e0] sm:$0xff]
    %v3210 = vld [vmem:[#allocation7 + $0x1e8] sm:$0xff]
    %v3211 = vld [vmem:[#allocation7 + $0x1f0] sm:$0xff]
    %v3212 = vld [vmem:[#allocation7 + $0x1f8] sm:$0xff]
    %v3213 = vld [vmem:[#allocation7 + $0x200] sm:$0xff]
    %v3214 = vld [vmem:[#allocation7 + $0x208] sm:$0xff]
    %v3215 = vld [vmem:[#allocation7 + $0x210] sm:$0xff]
    %v3216 = vld [vmem:[#allocation7 + $0x218] sm:$0xff]
    %v3217 = vld [vmem:[#allocation7 + $0x220] sm:$0xff]
    %v3218 = vld [vmem:[#allocation7 + $0x228] sm:$0xff]
    %v3219 = vld [vmem:[#allocation7 + $0x230] sm:$0xff]
    %v3220 = vld [vmem:[#allocation7 + $0x238] sm:$0xff]
    %v3221 = vld [vmem:[#allocation7 + $0x240] sm:$0xff]
    %v3222 = vld [vmem:[#allocation7 + $0x248] sm:$0xff]
    %v3223 = vld [vmem:[#allocation7 + $0x250] sm:$0xff]
    %v3224 = vld [vmem:[#allocation7 + $0x258] sm:$0xff]
    %v3225 = vld [vmem:[#allocation7 + $0x260] sm:$0xff]
    %v3226 = vld [vmem:[#allocation7 + $0x268] sm:$0xff]
    %v3227 = vld [vmem:[#allocation7 + $0x270] sm:$0xff]
    %v3228 = vld [vmem:[#allocation7 + $0x278] sm:$0xff]
    %v3229 = vld [vmem:[#allocation7 + $0x280] sm:$0xff]
    %v3230 = vld [vmem:[#allocation7 + $0x288] sm:$0xff]
    %v3231 = vld [vmem:[#allocation7 + $0x290] sm:$0xff]
    %v3232 = vld [vmem:[#allocation7 + $0x298] sm:$0xff]
    %v3233 = vld [vmem:[#allocation7 + $0x2a0] sm:$0xff]
    %v3234 = vld [vmem:[#allocation7 + $0x2a8] sm:$0xff]
    %v3235 = vld [vmem:[#allocation7 + $0x2b0] sm:$0xff]
    %v3236 = vld [vmem:[#allocation7 + $0x2b8] sm:$0xff]
    %v3237 = vld [vmem:[#allocation7 + $0x2c0] sm:$0xff]
    %v3238 = vld [vmem:[#allocation7 + $0x2c8] sm:$0xff]
    %v3239 = vld [vmem:[#allocation7 + $0x2d0] sm:$0xff]
    %v3240 = vld [vmem:[#allocation7 + $0x2d8] sm:$0xff]
    %v3241 = vld [vmem:[#allocation7 + $0x2e0] sm:$0xff]
    %v3242 = vld [vmem:[#allocation7 + $0x2e8] sm:$0xff]
    %v3243 = vld [vmem:[#allocation7 + $0x2f0] sm:$0xff]
    %v3244 = vld [vmem:[#allocation7 + $0x2f8] sm:$0xff]
    %v3245 = vld [vmem:[#allocation7 + $0x300] sm:$0xff]
    %v3246 = vld [vmem:[#allocation7 + $0x308] sm:$0xff]
    %v3247 = vld [vmem:[#allocation7 + $0x310] sm:$0xff]
    %v3248 = vld [vmem:[#allocation7 + $0x318] sm:$0xff]
    %v3249 = vld [vmem:[#allocation7 + $0x320] sm:$0xff]
    %v3250 = vld [vmem:[#allocation7 + $0x328] sm:$0xff]
    %v3251 = vld [vmem:[#allocation7 + $0x330] sm:$0xff]
    %v3252 = vld [vmem:[#allocation7 + $0x338] sm:$0xff]
    %v3253 = vld [vmem:[#allocation7 + $0x340] sm:$0xff]
    %v3254 = vld [vmem:[#allocation7 + $0x348] sm:$0xff]
    %v3255 = vld [vmem:[#allocation7 + $0x350] sm:$0xff]
    %v3256 = vld [vmem:[#allocation7 + $0x358] sm:$0xff]
    %v3257 = vld [vmem:[#allocation7 + $0x360] sm:$0xff]
    %v3258 = vld [vmem:[#allocation7 + $0x368] sm:$0xff]
    %v3259 = vld [vmem:[#allocation7 + $0x370] sm:$0xff]
    %v3260 = vld [vmem:[#allocation7 + $0x378] sm:$0xff]
    %v3261 = vld [vmem:[#allocation7 + $0x380] sm:$0xff]
    %v3262 = vld [vmem:[#allocation7 + $0x388] sm:$0xff]
    %v3263 = vld [vmem:[#allocation7 + $0x390] sm:$0xff]
    %v3264 = vld [vmem:[#allocation7 + $0x398] sm:$0xff]
    %v3265 = vld [vmem:[#allocation7 + $0x3a0] sm:$0xff]
    %v3266 = vld [vmem:[#allocation7 + $0x3a8] sm:$0xff]
    %v3267 = vld [vmem:[#allocation7 + $0x3b0] sm:$0xff]
    %v3268 = vld [vmem:[#allocation7 + $0x3b8] sm:$0xff]
    %v3269 = vld [vmem:[#allocation7 + $0x3c0] sm:$0xff]
    %v3270 = vld [vmem:[#allocation7 + $0x3c8] sm:$0xff]
    %v3271 = vld [vmem:[#allocation7 + $0x3d0] sm:$0xff]
    %v3272 = vld [vmem:[#allocation7 + $0x3d8] sm:$0xff]
    %v3273 = vld [vmem:[#allocation7 + $0x3e0] sm:$0xff]
    %v3274 = vld [vmem:[#allocation7 + $0x3e8] sm:$0xff]
    %v3275 = vld [vmem:[#allocation7 + $0x3f0] sm:$0xff]
    %v3276 = vld [vmem:[#allocation7 + $0x3f8] sm:$0xff]
    %v3277 = vld [vmem:[#allocation7 + $0x400] sm:$0xff]
    %v3278 = vld [vmem:[#allocation7 + $0x408] sm:$0xff]
    %v3279 = vld [vmem:[#allocation7 + $0x410] sm:$0xff]
    %v3280 = vld [vmem:[#allocation7 + $0x418] sm:$0xff]
    %v3281 = vld [vmem:[#allocation7 + $0x420] sm:$0xff]
    %v3282 = vld [vmem:[#allocation7 + $0x428] sm:$0xff]
    %v3283 = vld [vmem:[#allocation7 + $0x430] sm:$0xff]
    %v3284 = vld [vmem:[#allocation7 + $0x438] sm:$0xff]
    %v3285 = vld [vmem:[#allocation7 + $0x440] sm:$0xff]
    %v3286 = vld [vmem:[#allocation7 + $0x448] sm:$0xff]
    %v3287 = vld [vmem:[#allocation7 + $0x450] sm:$0xff]
    %v3288 = vld [vmem:[#allocation7 + $0x458] sm:$0xff]
    %v3289 = vld [vmem:[#allocation7 + $0x460] sm:$0xff]
    %v3290 = vld [vmem:[#allocation7 + $0x468] sm:$0xff]
    %v3291 = vld [vmem:[#allocation7 + $0x470] sm:$0xff]
    %v3292 = vld [vmem:[#allocation7 + $0x478] sm:$0xff]
    %v3293 = vld [vmem:[#allocation7 + $0x480] sm:$0xff]
    %v3294 = vld [vmem:[#allocation7 + $0x488] sm:$0xff]
    %v3295 = vld [vmem:[#allocation7 + $0x490] sm:$0xff]
    %v3296 = vld [vmem:[#allocation7 + $0x498] sm:$0xff]
    %v3297 = vld [vmem:[#allocation7 + $0x4a0] sm:$0xff]
    %v3298 = vld [vmem:[#allocation7 + $0x4a8] sm:$0xff]
    %v3299 = vld [vmem:[#allocation7 + $0x4b0] sm:$0xff]
    %v3300 = vld [vmem:[#allocation7 + $0x4b8] sm:$0xff]
    %v3301 = vld [vmem:[#allocation7 + $0x4c0] sm:$0xff]
    %v3302 = vld [vmem:[#allocation7 + $0x4c8] sm:$0xff]
    %v3303 = vld [vmem:[#allocation7 + $0x4d0] sm:$0xff]
    %v3304 = vld [vmem:[#allocation7 + $0x4d8] sm:$0xff]
    %v3305 = vld [vmem:[#allocation7 + $0x4e0] sm:$0xff]
    %v3306 = vld [vmem:[#allocation7 + $0x4e8] sm:$0xff]
    %v3307 = vld [vmem:[#allocation7 + $0x4f0] sm:$0xff]
    %v3308 = vld [vmem:[#allocation7 + $0x4f8] sm:$0xff]
    %v3309 = vld [vmem:[#allocation7 + $0x500] sm:$0xff]
    %v3310 = vld [vmem:[#allocation7 + $0x508] sm:$0xff]
    %v3311 = vld [vmem:[#allocation7 + $0x510] sm:$0xff]
    %v3312 = vld [vmem:[#allocation7 + $0x518] sm:$0xff]
    %v3313 = vld [vmem:[#allocation7 + $0x520] sm:$0xff]
    %v3314 = vld [vmem:[#allocation7 + $0x528] sm:$0xff]
    %v3315 = vld [vmem:[#allocation7 + $0x530] sm:$0xff]
    %v3316 = vld [vmem:[#allocation7 + $0x538] sm:$0xff]
    %v3317 = vld [vmem:[#allocation7 + $0x540] sm:$0xff]
    %v3318 = vld [vmem:[#allocation7 + $0x548] sm:$0xff]
    %v3319 = vld [vmem:[#allocation7 + $0x550] sm:$0xff]
    %v3320 = vld [vmem:[#allocation7 + $0x558] sm:$0xff]
    %v3321 = vld [vmem:[#allocation7 + $0x560] sm:$0xff]
    %v3322 = vld [vmem:[#allocation7 + $0x568] sm:$0xff]
    %v3323 = vld [vmem:[#allocation7 + $0x570] sm:$0xff]
    %v3324 = vld [vmem:[#allocation7 + $0x578] sm:$0xff]
    %v3325 = vld [vmem:[#allocation7 + $0x580] sm:$0xff]
    %v3326 = vld [vmem:[#allocation7 + $0x588] sm:$0xff]
    %v3327 = vld [vmem:[#allocation7 + $0x590] sm:$0xff]
    %v3328 = vld [vmem:[#allocation7 + $0x598] sm:$0xff]
    %v3329 = vld [vmem:[#allocation7 + $0x5a0] sm:$0xff]
    %v3330 = vld [vmem:[#allocation7 + $0x5a8] sm:$0xff]
    %v3331 = vld [vmem:[#allocation7 + $0x5b0] sm:$0xff]
    %v3332 = vld [vmem:[#allocation7 + $0x5b8] sm:$0xff]
    %v3333 = vld [vmem:[#allocation7 + $0x5c0] sm:$0xff]
    %v3334 = vld [vmem:[#allocation7 + $0x5c8] sm:$0xff]
    %v3335 = vld [vmem:[#allocation7 + $0x5d0] sm:$0xff]
    %v3336 = vld [vmem:[#allocation7 + $0x5d8] sm:$0xff]
    %v3337 = vld [vmem:[#allocation7 + $0x5e0] sm:$0xff]
    %v3338 = vld [vmem:[#allocation7 + $0x5e8] sm:$0xff]
    %v3339 = vld [vmem:[#allocation7 + $0x5f0] sm:$0xff]
    %v3340 = vld [vmem:[#allocation7 + $0x5f8] sm:$0xff]
    %v3341 = vld [vmem:[#allocation7 + $0x600] sm:$0xff]
    %v3342 = vld [vmem:[#allocation7 + $0x608] sm:$0xff]
    %v3343 = vld [vmem:[#allocation7 + $0x610] sm:$0xff]
    %v3344 = vld [vmem:[#allocation7 + $0x618] sm:$0xff]
    %v3345 = vld [vmem:[#allocation7 + $0x620] sm:$0xff]
    %v3346 = vld [vmem:[#allocation7 + $0x628] sm:$0xff]
    %v3347 = vld [vmem:[#allocation7 + $0x630] sm:$0xff]
    %v3348 = vld [vmem:[#allocation7 + $0x638] sm:$0xff]
    %v3349 = vld [vmem:[#allocation7 + $0x640] sm:$0xff]
    %v3350 = vld [vmem:[#allocation7 + $0x648] sm:$0xff]
    %v3351 = vld [vmem:[#allocation7 + $0x650] sm:$0xff]
    %v3352 = vld [vmem:[#allocation7 + $0x658] sm:$0xff]
    %v3353 = vld [vmem:[#allocation7 + $0x660] sm:$0xff]
    %v3354 = vld [vmem:[#allocation7 + $0x668] sm:$0xff]
    %v3355 = vld [vmem:[#allocation7 + $0x670] sm:$0xff]
    %v3356 = vld [vmem:[#allocation7 + $0x678] sm:$0xff]
    %v3357 = vld [vmem:[#allocation7 + $0x680] sm:$0xff]
    %v3358 = vld [vmem:[#allocation7 + $0x688] sm:$0xff]
    %v3359 = vld [vmem:[#allocation7 + $0x690] sm:$0xff]
    %v3360 = vld [vmem:[#allocation7 + $0x698] sm:$0xff]
    %v3361 = vld [vmem:[#allocation7 + $0x6a0] sm:$0xff]
    %v3362 = vld [vmem:[#allocation7 + $0x6a8] sm:$0xff]
    %v3363 = vld [vmem:[#allocation7 + $0x6b0] sm:$0xff]
    %v3364 = vld [vmem:[#allocation7 + $0x6b8] sm:$0xff]
    %v3365 = vld [vmem:[#allocation7 + $0x6c0] sm:$0xff]
    %v3366 = vld [vmem:[#allocation7 + $0x6c8] sm:$0xff]
    %v3367 = vld [vmem:[#allocation7 + $0x6d0] sm:$0xff]
    %v3368 = vld [vmem:[#allocation7 + $0x6d8] sm:$0xff]
    %v3369 = vld [vmem:[#allocation7 + $0x6e0] sm:$0xff]
    %v3370 = vld [vmem:[#allocation7 + $0x6e8] sm:$0xff]
    %v3371 = vld [vmem:[#allocation7 + $0x6f0] sm:$0xff]
    %v3372 = vld [vmem:[#allocation7 + $0x6f8] sm:$0xff]
    %v3373 = vld [vmem:[#allocation7 + $0x700] sm:$0xff]
    %v3374 = vld [vmem:[#allocation7 + $0x708] sm:$0xff]
    %v3375 = vld [vmem:[#allocation7 + $0x710] sm:$0xff]
    %v3376 = vld [vmem:[#allocation7 + $0x718] sm:$0xff]
    %v3377 = vld [vmem:[#allocation7 + $0x720] sm:$0xff]
    %v3378 = vld [vmem:[#allocation7 + $0x728] sm:$0xff]
    %v3379 = vld [vmem:[#allocation7 + $0x730] sm:$0xff]
    %v3380 = vld [vmem:[#allocation7 + $0x738] sm:$0xff]
    %v3381 = vld [vmem:[#allocation7 + $0x740] sm:$0xff]
    %v3382 = vld [vmem:[#allocation7 + $0x748] sm:$0xff]
    %v3383 = vld [vmem:[#allocation7 + $0x750] sm:$0xff]
    %v3384 = vld [vmem:[#allocation7 + $0x758] sm:$0xff]
    %v3385 = vld [vmem:[#allocation7 + $0x760] sm:$0xff]
    %v3386 = vld [vmem:[#allocation7 + $0x768] sm:$0xff]
    %v3387 = vld [vmem:[#allocation7 + $0x770] sm:$0xff]
    %v3388 = vld [vmem:[#allocation7 + $0x778] sm:$0xff]
    %v3389 = vld [vmem:[#allocation7 + $0x780] sm:$0xff]
    %v3390 = vld [vmem:[#allocation7 + $0x788] sm:$0xff]
    %v3391 = vld [vmem:[#allocation7 + $0x790] sm:$0xff]
    %v3392 = vld [vmem:[#allocation7 + $0x798] sm:$0xff]
    %v3393 = vld [vmem:[#allocation7 + $0x7a0] sm:$0xff]
    %v3394 = vld [vmem:[#allocation7 + $0x7a8] sm:$0xff]
    %v3395 = vld [vmem:[#allocation7 + $0x7b0] sm:$0xff]
    %v3396 = vld [vmem:[#allocation7 + $0x7b8] sm:$0xff]
    %v3397 = vld [vmem:[#allocation7 + $0x7c0] sm:$0xff]
    %v3398 = vld [vmem:[#allocation7 + $0x7c8] sm:$0xff]
    %v3399 = vld [vmem:[#allocation7 + $0x7d0] sm:$0xff]
    %v3400 = vld [vmem:[#allocation7 + $0x7d8] sm:$0xff]
    %v3401 = vld [vmem:[#allocation7 + $0x7e0] sm:$0xff]
    %v3402 = vld [vmem:[#allocation7 + $0x7e8] sm:$0xff]
    %v3403 = vld [vmem:[#allocation7 + $0x7f0] sm:$0xff]
    %v3404 = vld [vmem:[#allocation7 + $0x7f8] sm:$0xff]
    %v3405 = vld [vmem:[#allocation7 + $0x800] sm:$0xff]
    %v3406 = vld [vmem:[#allocation7 + $0x808] sm:$0xff]
    %v3407 = vld [vmem:[#allocation7 + $0x810] sm:$0xff]
    %v3408 = vld [vmem:[#allocation7 + $0x818] sm:$0xff]
    %v3409 = vld [vmem:[#allocation7 + $0x820] sm:$0xff]
    %v3410 = vld [vmem:[#allocation7 + $0x828] sm:$0xff]
    %v3411 = vld [vmem:[#allocation7 + $0x830] sm:$0xff]
    %v3412 = vld [vmem:[#allocation7 + $0x838] sm:$0xff]
    %v3413 = vld [vmem:[#allocation7 + $0x840] sm:$0xff]
    %v3414 = vld [vmem:[#allocation7 + $0x848] sm:$0xff]
    %v3415 = vld [vmem:[#allocation7 + $0x850] sm:$0xff]
    %v3416 = vld [vmem:[#allocation7 + $0x858] sm:$0xff]
    %v3417 = vld [vmem:[#allocation7 + $0x860] sm:$0xff]
    %v3418 = vld [vmem:[#allocation7 + $0x868] sm:$0xff]
    %v3419 = vld [vmem:[#allocation7 + $0x870] sm:$0xff]
    %v3420 = vld [vmem:[#allocation7 + $0x878] sm:$0xff]
    %v3421 = vld [vmem:[#allocation7 + $0x880] sm:$0xff]
    %v3422 = vld [vmem:[#allocation7 + $0x888] sm:$0xff]
    %v3423 = vld [vmem:[#allocation7 + $0x890] sm:$0xff]
    %v3424 = vld [vmem:[#allocation7 + $0x898] sm:$0xff]
    %v3425 = vld [vmem:[#allocation7 + $0x8a0] sm:$0xff]
    %v3426 = vld [vmem:[#allocation7 + $0x8a8] sm:$0xff]
    %v3427 = vld [vmem:[#allocation7 + $0x8b0] sm:$0xff]
    %v3428 = vld [vmem:[#allocation7 + $0x8b8] sm:$0xff]
    %v3429 = vld [vmem:[#allocation7 + $0x8c0] sm:$0xff]
    %v3430 = vld [vmem:[#allocation7 + $0x8c8] sm:$0xff]
    %v3431 = vld [vmem:[#allocation7 + $0x8d0] sm:$0xff]
    %v3432 = vld [vmem:[#allocation7 + $0x8d8] sm:$0xff]
    %v3433 = vld [vmem:[#allocation7 + $0x8e0] sm:$0xff]
    %v3434 = vld [vmem:[#allocation7 + $0x8e8] sm:$0xff]
    %v3435 = vld [vmem:[#allocation7 + $0x8f0] sm:$0xff]
    %v3436 = vld [vmem:[#allocation7 + $0x8f8] sm:$0xff]
    %v3438 = vperm.slane %v225, 0
    %v3439 = vperm.slane %v225, 1
    %v3440 = vperm.slane %v225, 2
    %3444 = vmatpush.msra.mxu0 %v3194
    %3445 = vmatpush.msra.mxu0 %v3191
    %3446 = vmatpush.msra.mxu0 %v3188
    %3447 = vmatpush.msra.mxu0 %v3185
    %3448 = vmatpush.msra.mxu0 %v3182
    %3449 = vmatpush.msra.mxu0 %v3179
    %3450 = vmatpush.msra.mxu0 %v3176
    %3451 = vmatpush.msra.mxu0 %v3173
    %3452 = vmatpush.msra.mxu0 %v3170
    %3453 = vmatpush.msra.mxu0 %v3167
    %3454 = vmatpush.msra.mxu0 %v3164
    %3455 = vmatpush.msra.mxu0 %v3161
    %3456 = vmatpush.msra.mxu0 %v3158
    %3457 = vmatpush.msra.mxu0 %v3155
    %3458 = vmatpush.msra.mxu0 %v3152
    %3459 = vmatpush.msra.mxu0 %v3149
    %3460 = vmatmul.f32.gmra.mxu0 %v2542
    %v3461 = vpop.f32.mrf.mxu0
    %v3462 = vadd.f32 %v3438, %v3461
    %3463 = vmatmul.f32.gmra.mxu0 %v2872
    %v3464 = vpop.f32.mrf.mxu0
    %v3465 = vadd.f32 %v3438, %v3464
    %3466 = vdwg.mxu0
    %3467 = vmatpush.msra.mxu0 %v3242
    %3468 = vmatpush.msra.mxu0 %v3239
    %3469 = vmatpush.msra.mxu0 %v3236
    %3470 = vmatpush.msra.mxu0 %v3233
    %3471 = vmatpush.msra.mxu0 %v3230
    %3472 = vmatpush.msra.mxu0 %v3227
    %3473 = vmatpush.msra.mxu0 %v3224
    %3474 = vmatpush.msra.mxu0 %v3221
    %3475 = vmatpush.msra.mxu0 %v3218
    %3476 = vmatpush.msra.mxu0 %v3215
    %3477 = vmatpush.msra.mxu0 %v3212
    %3478 = vmatpush.msra.mxu0 %v3209
    %3479 = vmatpush.msra.mxu0 %v3206
    %3480 = vmatpush.msra.mxu0 %v3203
    %3481 = vmatpush.msra.mxu0 %v3200
    %3482 = vmatpush.msra.mxu0 %v3197
    %3483 = vmatmul.f32.gmra.mxu0 %v2597
    %v3484 = vpop.f32.mrf.mxu0
    %v3485 = vadd.f32 %v3462, %v3484
    %3486 = vmatmul.f32.gmra.mxu0 %v2927
    %v3487 = vpop.f32.mrf.mxu0
    %v3488 = vadd.f32 %v3465, %v3487
    %3489 = vdwg.mxu0
    %3490 = vmatpush.msra.mxu0 %v3290
    %3491 = vmatpush.msra.mxu0 %v3287
    %3492 = vmatpush.msra.mxu0 %v3284
    %3493 = vmatpush.msra.mxu0 %v3281
    %3494 = vmatpush.msra.mxu0 %v3278
    %3495 = vmatpush.msra.mxu0 %v3275
    %3496 = vmatpush.msra.mxu0 %v3272
    %3497 = vmatpush.msra.mxu0 %v3269
    %3498 = vmatpush.msra.mxu0 %v3266
    %3499 = vmatpush.msra.mxu0 %v3263
    %3500 = vmatpush.msra.mxu0 %v3260
    %3501 = vmatpush.msra.mxu0 %v3257
    %3502 = vmatpush.msra.mxu0 %v3254
    %3503 = vmatpush.msra.mxu0 %v3251
    %3504 = vmatpush.msra.mxu0 %v3248
    %3505 = vmatpush.msra.mxu0 %v3245
    %3506 = vmatmul.f32.gmra.mxu0 %v2652
    %v3507 = vpop.f32.mrf.mxu0
    %v3508 = vadd.f32 %v3485, %v3507
    %3509 = vmatmul.f32.gmra.mxu0 %v2982
    %v3510 = vpop.f32.mrf.mxu0
    %v3511 = vadd.f32 %v3488, %v3510
    %3512 = vdwg.mxu0
    %3513 = vmatpush.msra.mxu0 %v3338
    %3514 = vmatpush.msra.mxu0 %v3335
    %3515 = vmatpush.msra.mxu0 %v3332
    %3516 = vmatpush.msra.mxu0 %v3329
    %3517 = vmatpush.msra.mxu0 %v3326
    %3518 = vmatpush.msra.mxu0 %v3323
    %3519 = vmatpush.msra.mxu0 %v3320
    %3520 = vmatpush.msra.mxu0 %v3317
    %3521 = vmatpush.msra.mxu0 %v3314
    %3522 = vmatpush.msra.mxu0 %v3311
    %3523 = vmatpush.msra.mxu0 %v3308
    %3524 = vmatpush.msra.mxu0 %v3305
    %3525 = vmatpush.msra.mxu0 %v3302
    %3526 = vmatpush.msra.mxu0 %v3299
    %3527 = vmatpush.msra.mxu0 %v3296
    %3528 = vmatpush.msra.mxu0 %v3293
    %3529 = vmatmul.f32.gmra.mxu0 %v2707
    %v3530 = vpop.f32.mrf.mxu0
    %v3531 = vadd.f32 %v3508, %v3530
    %3532 = vmatmul.f32.gmra.mxu0 %v3037
    %v3533 = vpop.f32.mrf.mxu0
    %v3534 = vadd.f32 %v3511, %v3533
    %3535 = vdwg.mxu0
    %3536 = vmatpush.msra.mxu0 %v3386
    %3537 = vmatpush.msra.mxu0 %v3383
    %3538 = vmatpush.msra.mxu0 %v3380
    %3539 = vmatpush.msra.mxu0 %v3377
    %3540 = vmatpush.msra.mxu0 %v3374
    %3541 = vmatpush.msra.mxu0 %v3371
    %3542 = vmatpush.msra.mxu0 %v3368
    %3543 = vmatpush.msra.mxu0 %v3365
    %3544 = vmatpush.msra.mxu0 %v3362
    %3545 = vmatpush.msra.mxu0 %v3359
    %3546 = vmatpush.msra.mxu0 %v3356
    %3547 = vmatpush.msra.mxu0 %v3353
    %3548 = vmatpush.msra.mxu0 %v3350
    %3549 = vmatpush.msra.mxu0 %v3347
    %3550 = vmatpush.msra.mxu0 %v3344
    %3551 = vmatpush.msra.mxu0 %v3341
    %3552 = vmatmul.f32.gmra.mxu0 %v2762
    %v3553 = vpop.f32.mrf.mxu0
    %v3554 = vadd.f32 %v3531, %v3553
    %3555 = vmatmul.f32.gmra.mxu0 %v3092
    %v3556 = vpop.f32.mrf.mxu0
    %v3557 = vadd.f32 %v3534, %v3556
    %3558 = vdwg.mxu0
    %3559 = vmatpush.msra.mxu0 %v3434
    %3560 = vmatpush.msra.mxu0 %v3431
    %3561 = vmatpush.msra.mxu0 %v3428
    %3562 = vmatpush.msra.mxu0 %v3425
    %3563 = vmatpush.msra.mxu0 %v3422
    %3564 = vmatpush.msra.mxu0 %v3419
    %3565 = vmatpush.msra.mxu0 %v3416
    %3566 = vmatpush.msra.mxu0 %v3413
    %3567 = vmatpush.msra.mxu0 %v3410
    %3568 = vmatpush.msra.mxu0 %v3407
    %3569 = vmatpush.msra.mxu0 %v3404
    %3570 = vmatpush.msra.mxu0 %v3401
    %3571 = vmatpush.msra.mxu0 %v3398
    %3572 = vmatpush.msra.mxu0 %v3395
    %3573 = vmatpush.msra.mxu0 %v3392
    %3574 = vmatpush.msra.mxu0 %v3389
    %3575 = vmatmul.f32.gmra.mxu0 %v2817
    %v3576 = vpop.f32.mrf.mxu0
    %v3577 = vadd.f32 %v3554, %v3576
    %3578 = vmatmul.f32.gmra.mxu0 %v3147
    %v3579 = vpop.f32.mrf.mxu0
    %v3580 = vadd.f32 %v3557, %v3579
    %3581 = vdwg.mxu0
    %3582 = vmatpush.msra.mxu0 %v3195
    %3583 = vmatpush.msra.mxu0 %v3192
    %3584 = vmatpush.msra.mxu0 %v3189
    %3585 = vmatpush.msra.mxu0 %v3186
    %3586 = vmatpush.msra.mxu0 %v3183
    %3587 = vmatpush.msra.mxu0 %v3180
    %3588 = vmatpush.msra.mxu0 %v3177
    %3589 = vmatpush.msra.mxu0 %v3174
    %3590 = vmatpush.msra.mxu0 %v3171
    %3591 = vmatpush.msra.mxu0 %v3168
    %3592 = vmatpush.msra.mxu0 %v3165
    %3593 = vmatpush.msra.mxu0 %v3162
    %3594 = vmatpush.msra.mxu0 %v3159
    %3595 = vmatpush.msra.mxu0 %v3156
    %3596 = vmatpush.msra.mxu0 %v3153
    %3597 = vmatpush.msra.mxu0 %v3150
    %3598 = vmatmul.f32.gmra.mxu0 %v2542
    %v3599 = vpop.f32.mrf.mxu0
    %v3600 = vadd.f32 %v3439, %v3599
    %3601 = vmatmul.f32.gmra.mxu0 %v2872
    %v3602 = vpop.f32.mrf.mxu0
    %v3603 = vadd.f32 %v3439, %v3602
    %3604 = vdwg.mxu0
    %3605 = vmatpush.msra.mxu0 %v3243
    %3606 = vmatpush.msra.mxu0 %v3240
    %3607 = vmatpush.msra.mxu0 %v3237
    %3608 = vmatpush.msra.mxu0 %v3234
    %3609 = vmatpush.msra.mxu0 %v3231
    %3610 = vmatpush.msra.mxu0 %v3228
    %3611 = vmatpush.msra.mxu0 %v3225
    %3612 = vmatpush.msra.mxu0 %v3222
    %3613 = vmatpush.msra.mxu0 %v3219
    %3614 = vmatpush.msra.mxu0 %v3216
    %3615 = vmatpush.msra.mxu0 %v3213
    %3616 = vmatpush.msra.mxu0 %v3210
    %3617 = vmatpush.msra.mxu0 %v3207
    %3618 = vmatpush.msra.mxu0 %v3204
    %3619 = vmatpush.msra.mxu0 %v3201
    %3620 = vmatpush.msra.mxu0 %v3198
    %3621 = vmatmul.f32.gmra.mxu0 %v2597
    %v3622 = vpop.f32.mrf.mxu0
    %v3623 = vadd.f32 %v3600, %v3622
    %3624 = vmatmul.f32.gmra.mxu0 %v2927
    %v3625 = vpop.f32.mrf.mxu0
    %v3626 = vadd.f32 %v3603, %v3625
    %3627 = vdwg.mxu0
    %3628 = vmatpush.msra.mxu0 %v3291
    %3629 = vmatpush.msra.mxu0 %v3288
    %3630 = vmatpush.msra.mxu0 %v3285
    %3631 = vmatpush.msra.mxu0 %v3282
    %3632 = vmatpush.msra.mxu0 %v3279
    %3633 = vmatpush.msra.mxu0 %v3276
    %3634 = vmatpush.msra.mxu0 %v3273
    %3635 = vmatpush.msra.mxu0 %v3270
    %3636 = vmatpush.msra.mxu0 %v3267
    %3637 = vmatpush.msra.mxu0 %v3264
    %3638 = vmatpush.msra.mxu0 %v3261
    %3639 = vmatpush.msra.mxu0 %v3258
    %3640 = vmatpush.msra.mxu0 %v3255
    %3641 = vmatpush.msra.mxu0 %v3252
    %3642 = vmatpush.msra.mxu0 %v3249
    %3643 = vmatpush.msra.mxu0 %v3246
    %3644 = vmatmul.f32.gmra.mxu0 %v2652
    %v3645 = vpop.f32.mrf.mxu0
    %v3646 = vadd.f32 %v3623, %v3645
    %3647 = vmatmul.f32.gmra.mxu0 %v2982
    %v3648 = vpop.f32.mrf.mxu0
    %v3649 = vadd.f32 %v3626, %v3648
    %3650 = vdwg.mxu0
    %3651 = vmatpush.msra.mxu0 %v3339
    %3652 = vmatpush.msra.mxu0 %v3336
    %3653 = vmatpush.msra.mxu0 %v3333
    %3654 = vmatpush.msra.mxu0 %v3330
    %3655 = vmatpush.msra.mxu0 %v3327
    %3656 = vmatpush.msra.mxu0 %v3324
    %3657 = vmatpush.msra.mxu0 %v3321
    %3658 = vmatpush.msra.mxu0 %v3318
    %3659 = vmatpush.msra.mxu0 %v3315
    %3660 = vmatpush.msra.mxu0 %v3312
    %3661 = vmatpush.msra.mxu0 %v3309
    %3662 = vmatpush.msra.mxu0 %v3306
    %3663 = vmatpush.msra.mxu0 %v3303
    %3664 = vmatpush.msra.mxu0 %v3300
    %3665 = vmatpush.msra.mxu0 %v3297
    %3666 = vmatpush.msra.mxu0 %v3294
    %3667 = vmatmul.f32.gmra.mxu0 %v2707
    %v3668 = vpop.f32.mrf.mxu0
    %v3669 = vadd.f32 %v3646, %v3668
    %3670 = vmatmul.f32.gmra.mxu0 %v3037
    %v3671 = vpop.f32.mrf.mxu0
    %v3672 = vadd.f32 %v3649, %v3671
    %3673 = vdwg.mxu0
    %3674 = vmatpush.msra.mxu0 %v3387
    %3675 = vmatpush.msra.mxu0 %v3384
    %3676 = vmatpush.msra.mxu0 %v3381
    %3677 = vmatpush.msra.mxu0 %v3378
    %3678 = vmatpush.msra.mxu0 %v3375
    %3679 = vmatpush.msra.mxu0 %v3372
    %3680 = vmatpush.msra.mxu0 %v3369
    %3681 = vmatpush.msra.mxu0 %v3366
    %3682 = vmatpush.msra.mxu0 %v3363
    %3683 = vmatpush.msra.mxu0 %v3360
    %3684 = vmatpush.msra.mxu0 %v3357
    %3685 = vmatpush.msra.mxu0 %v3354
    %3686 = vmatpush.msra.mxu0 %v3351
    %3687 = vmatpush.msra.mxu0 %v3348
    %3688 = vmatpush.msra.mxu0 %v3345
    %3689 = vmatpush.msra.mxu0 %v3342
    %3690 = vmatmul.f32.gmra.mxu0 %v2762
    %v3691 = vpop.f32.mrf.mxu0
    %v3692 = vadd.f32 %v3669, %v3691
    %3693 = vmatmul.f32.gmra.mxu0 %v3092
    %v3694 = vpop.f32.mrf.mxu0
    %v3695 = vadd.f32 %v3672, %v3694
    %3696 = vdwg.mxu0
    %3697 = vmatpush.msra.mxu0 %v3435
    %3698 = vmatpush.msra.mxu0 %v3432
    %3699 = vmatpush.msra.mxu0 %v3429
    %3700 = vmatpush.msra.mxu0 %v3426
    %3701 = vmatpush.msra.mxu0 %v3423
    %3702 = vmatpush.msra.mxu0 %v3420
    %3703 = vmatpush.msra.mxu0 %v3417
    %3704 = vmatpush.msra.mxu0 %v3414
    %3705 = vmatpush.msra.mxu0 %v3411
    %3706 = vmatpush.msra.mxu0 %v3408
    %3707 = vmatpush.msra.mxu0 %v3405
    %3708 = vmatpush.msra.mxu0 %v3402
    %3709 = vmatpush.msra.mxu0 %v3399
    %3710 = vmatpush.msra.mxu0 %v3396
    %3711 = vmatpush.msra.mxu0 %v3393
    %3712 = vmatpush.msra.mxu0 %v3390
    %3713 = vmatmul.f32.gmra.mxu0 %v2817
    %v3714 = vpop.f32.mrf.mxu0
    %v3715 = vadd.f32 %v3692, %v3714
    %3716 = vmatmul.f32.gmra.mxu0 %v3147
    %v3717 = vpop.f32.mrf.mxu0
    %v3718 = vadd.f32 %v3695, %v3717
    %3719 = vdwg.mxu0
    %3720 = vmatpush.msra.mxu0 %v3196
    %3721 = vmatpush.msra.mxu0 %v3193
    %3722 = vmatpush.msra.mxu0 %v3190
    %3723 = vmatpush.msra.mxu0 %v3187
    %3724 = vmatpush.msra.mxu0 %v3184
    %3725 = vmatpush.msra.mxu0 %v3181
    %3726 = vmatpush.msra.mxu0 %v3178
    %3727 = vmatpush.msra.mxu0 %v3175
    %3728 = vmatpush.msra.mxu0 %v3172
    %3729 = vmatpush.msra.mxu0 %v3169
    %3730 = vmatpush.msra.mxu0 %v3166
    %3731 = vmatpush.msra.mxu0 %v3163
    %3732 = vmatpush.msra.mxu0 %v3160
    %3733 = vmatpush.msra.mxu0 %v3157
    %3734 = vmatpush.msra.mxu0 %v3154
    %3735 = vmatpush.msra.mxu0 %v3151
    %3736 = vmatmul.f32.gmra.mxu0 %v2542
    %v3737 = vpop.f32.mrf.mxu0
    %v3738 = vadd.f32 %v3440, %v3737
    %3739 = vmatmul.f32.gmra.mxu0 %v2872
    %v3740 = vpop.f32.mrf.mxu0
    %v3741 = vadd.f32 %v3440, %v3740
    %3742 = vdwg.mxu0
    %3743 = vmatpush.msra.mxu0 %v3244
    %3744 = vmatpush.msra.mxu0 %v3241
    %3745 = vmatpush.msra.mxu0 %v3238
    %3746 = vmatpush.msra.mxu0 %v3235
    %3747 = vmatpush.msra.mxu0 %v3232
    %3748 = vmatpush.msra.mxu0 %v3229
    %3749 = vmatpush.msra.mxu0 %v3226
    %3750 = vmatpush.msra.mxu0 %v3223
    %3751 = vmatpush.msra.mxu0 %v3220
    %3752 = vmatpush.msra.mxu0 %v3217
    %3753 = vmatpush.msra.mxu0 %v3214
    %3754 = vmatpush.msra.mxu0 %v3211
    %3755 = vmatpush.msra.mxu0 %v3208
    %3756 = vmatpush.msra.mxu0 %v3205
    %3757 = vmatpush.msra.mxu0 %v3202
    %3758 = vmatpush.msra.mxu0 %v3199
    %3759 = vmatmul.f32.gmra.mxu0 %v2597
    %v3760 = vpop.f32.mrf.mxu0
    %v3761 = vadd.f32 %v3738, %v3760
    %3762 = vmatmul.f32.gmra.mxu0 %v2927
    %v3763 = vpop.f32.mrf.mxu0
    %v3764 = vadd.f32 %v3741, %v3763
    %3765 = vdwg.mxu0
    %3766 = vmatpush.msra.mxu0 %v3292
    %3767 = vmatpush.msra.mxu0 %v3289
    %3768 = vmatpush.msra.mxu0 %v3286
    %3769 = vmatpush.msra.mxu0 %v3283
    %3770 = vmatpush.msra.mxu0 %v3280
    %3771 = vmatpush.msra.mxu0 %v3277
    %3772 = vmatpush.msra.mxu0 %v3274
    %3773 = vmatpush.msra.mxu0 %v3271
    %3774 = vmatpush.msra.mxu0 %v3268
    %3775 = vmatpush.msra.mxu0 %v3265
    %3776 = vmatpush.msra.mxu0 %v3262
    %3777 = vmatpush.msra.mxu0 %v3259
    %3778 = vmatpush.msra.mxu0 %v3256
    %3779 = vmatpush.msra.mxu0 %v3253
    %3780 = vmatpush.msra.mxu0 %v3250
    %3781 = vmatpush.msra.mxu0 %v3247
    %3782 = vmatmul.f32.gmra.mxu0 %v2652
    %v3783 = vpop.f32.mrf.mxu0
    %v3784 = vadd.f32 %v3761, %v3783
    %3785 = vmatmul.f32.gmra.mxu0 %v2982
    %v3786 = vpop.f32.mrf.mxu0
    %v3787 = vadd.f32 %v3764, %v3786
    %3788 = vdwg.mxu0
    %3789 = vmatpush.msra.mxu0 %v3340
    %3790 = vmatpush.msra.mxu0 %v3337
    %3791 = vmatpush.msra.mxu0 %v3334
    %3792 = vmatpush.msra.mxu0 %v3331
    %3793 = vmatpush.msra.mxu0 %v3328
    %3794 = vmatpush.msra.mxu0 %v3325
    %3795 = vmatpush.msra.mxu0 %v3322
    %3796 = vmatpush.msra.mxu0 %v3319
    %3797 = vmatpush.msra.mxu0 %v3316
    %3798 = vmatpush.msra.mxu0 %v3313
    %3799 = vmatpush.msra.mxu0 %v3310
    %3800 = vmatpush.msra.mxu0 %v3307
    %3801 = vmatpush.msra.mxu0 %v3304
    %3802 = vmatpush.msra.mxu0 %v3301
    %3803 = vmatpush.msra.mxu0 %v3298
    %3804 = vmatpush.msra.mxu0 %v3295
    %3805 = vmatmul.f32.gmra.mxu0 %v2707
    %v3806 = vpop.f32.mrf.mxu0
    %v3807 = vadd.f32 %v3784, %v3806
    %3808 = vmatmul.f32.gmra.mxu0 %v3037
    %v3809 = vpop.f32.mrf.mxu0
    %v3810 = vadd.f32 %v3787, %v3809
    %3811 = vdwg.mxu0
    %3812 = vmatpush.msra.mxu0 %v3388
    %3813 = vmatpush.msra.mxu0 %v3385
    %3814 = vmatpush.msra.mxu0 %v3382
    %3815 = vmatpush.msra.mxu0 %v3379
    %3816 = vmatpush.msra.mxu0 %v3376
    %3817 = vmatpush.msra.mxu0 %v3373
    %3818 = vmatpush.msra.mxu0 %v3370
    %3819 = vmatpush.msra.mxu0 %v3367
    %3820 = vmatpush.msra.mxu0 %v3364
    %3821 = vmatpush.msra.mxu0 %v3361
    %3822 = vmatpush.msra.mxu0 %v3358
    %3823 = vmatpush.msra.mxu0 %v3355
    %3824 = vmatpush.msra.mxu0 %v3352
    %3825 = vmatpush.msra.mxu0 %v3349
    %3826 = vmatpush.msra.mxu0 %v3346
    %3827 = vmatpush.msra.mxu0 %v3343
    %3828 = vmatmul.f32.gmra.mxu0 %v2762
    %v3829 = vpop.f32.mrf.mxu0
    %v3830 = vadd.f32 %v3807, %v3829
    %3831 = vmatmul.f32.gmra.mxu0 %v3092
    %v3832 = vpop.f32.mrf.mxu0
    %v3833 = vadd.f32 %v3810, %v3832
    %3834 = vdwg.mxu0
    %3835 = vmatpush.msra.mxu0 %v3436
    %3836 = vmatpush.msra.mxu0 %v3433
    %3837 = vmatpush.msra.mxu0 %v3430
    %3838 = vmatpush.msra.mxu0 %v3427
    %3839 = vmatpush.msra.mxu0 %v3424
    %3840 = vmatpush.msra.mxu0 %v3421
    %3841 = vmatpush.msra.mxu0 %v3418
    %3842 = vmatpush.msra.mxu0 %v3415
    %3843 = vmatpush.msra.mxu0 %v3412
    %3844 = vmatpush.msra.mxu0 %v3409
    %3845 = vmatpush.msra.mxu0 %v3406
    %3846 = vmatpush.msra.mxu0 %v3403
    %3847 = vmatpush.msra.mxu0 %v3400
    %3848 = vmatpush.msra.mxu0 %v3397
    %3849 = vmatpush.msra.mxu0 %v3394
    %3850 = vmatpush.msra.mxu0 %v3391
    %3851 = vmatmul.f32.gmra.mxu0 %v2817
    %v3852 = vpop.f32.mrf.mxu0
    %v3853 = vadd.f32 %v3830, %v3852
    %3854 = vmatmul.f32.gmra.mxu0 %v3147
    %v3855 = vpop.f32.mrf.mxu0
    %v3856 = vadd.f32 %v3833, %v3855
    %3857 = vdwg.mxu0
    %v3858 = vadd.f32 %v216, %v3577
    %v3859 = vadd.f32 %v217, %v3715
    %v3860 = vadd.f32 %v218, %v3853
    %v3861 = vadd.f32 %v219, %v3580
    %v3862 = vadd.f32 %v220, %v3718
    %v3863 = vadd.f32 %v221, %v3856
    %v3864 = vadd.f32 %v3858, %v3859
    %v3865 = vadd.f32 %v3864, %v3860
    %3866 = vadd.xlane.f32.xlu0 %v3865
    %v3867 = vpop.xlane.xlu0 %3866
    %v3868 = vadd.f32 %v3861, %v3862
    %v3869 = vadd.f32 %v3868, %v3863
    %3870 = vadd.xlane.f32.xlu0 %v3869
    %v3871 = vpop.xlane.xlu0 %3870
    %v3872 = vmul.f32 %v3867, 0.0033333334
    %v3873 = vmul.f32 %v3871, 0.0033333334
    %v3874 = vsub.f32 %v3858, %v3872
    %v3875 = vsub.f32 %v3859, %v3872
    %v3876 = vsub.f32 %v3860, %v3872
    %v3877 = vsub.f32 %v3861, %v3873
    %v3878 = vsub.f32 %v3862, %v3873
    %v3879 = vsub.f32 %v3863, %v3873
    %v3880 = vmul.f32 %v3874, %v242
    %v3881 = vmul.f32 %v3875, %v243
    %v3882 = vmul.f32 %v3876, %v244
    %v3883 = vmul.f32 %v3877, %v242
    %v3884 = vmul.f32 %v3878, %v243
    %v3885 = vmul.f32 %v3879, %v244
    %v3886 = vmul.f32 %v3880, %v3880
    %v3887 = vmul.f32 %v3881, %v3881
    %v3888 = vmul.f32 %v3882, %v3882
    %v3889 = vmul.f32 %v3883, %v3883
    %v3890 = vmul.f32 %v3884, %v3884
    %v3891 = vmul.f32 %v3885, %v3885
    %v3892 = vadd.f32 %v3886, %v3887
    %v3893 = vadd.f32 %v3892, %v3888
    %3894 = vadd.xlane.f32.xlu0 %v3893
    %v3895 = vpop.xlane.xlu0 %3894
    %v3896 = vadd.f32 %v3889, %v3890
    %v3897 = vadd.f32 %v3896, %v3891
    %3898 = vadd.xlane.f32.xlu0 %v3897
    %v3899 = vpop.xlane.xlu0 %3898
    %v3900 = vmul.f32 %v3895, 0.0033444816
    %v3901 = vmul.f32 %v3899, 0.0033444816
    %v3902 = vrsqrt.pop %v3900
    %v3903 = vmul.f32 %v3902, %v3900
    %v3904 = vmul.f32 %v3903, %v3902
    %v3905 = vmul.f32 0.5, %v3904
    %v3906 = vsub.f32 1.5, %v3905
    %v3907 = vmul.f32 %v3902, %v3906
    %v3908 = vmul.f32 %v3900, %v3907
    %vm3909 = vcmp.eq.f32.partialorder %v3900, inf
    %v3910 = vsel %vm3909, %v3900, %v3908
    %vm3911 = vcmp.eq.f32.partialorder %v3900, 0.0
    %v3912 = vand.u32 %v3900, 2147483648
    %v3913 = vsel %vm3911, %v3912, %v3910
    %v3914 = vrsqrt.pop %v3901
    %v3915 = vmul.f32 %v3914, %v3901
    %v3916 = vmul.f32 %v3915, %v3914
    %v3917 = vmul.f32 0.5, %v3916
    %v3918 = vsub.f32 1.5, %v3917
    %v3919 = vmul.f32 %v3914, %v3918
    %v3920 = vmul.f32 %v3901, %v3919
    %vm3921 = vcmp.eq.f32.partialorder %v3901, inf
    %v3922 = vsel %vm3921, %v3901, %v3920
    %vm3923 = vcmp.eq.f32.partialorder %v3901, 0.0
    %v3924 = vand.u32 %v3901, 2147483648
    %v3925 = vsel %vm3923, %v3924, %v3922
    %v3926 = vadd.f32 %v3913, 1e-06
    %v3927 = vadd.f32 %v3925, 1e-06
    %v3928 = vrcp.pop %v3926
    %v3929 = vrcp.pop %v3927
    %v3931 = vperm.slane %v230, 0
    %v3932 = vperm.slane %v230, 1
    %v3933 = vperm.slane %v230, 2
    %v3937 = vmul.f32 %v3931, %v3880
    %v3938 = vmul.f32 %v3932, %v3881
    %v3939 = vmul.f32 %v3933, %v3882
    %v3940 = vmul.f32 %v3931, %v3883
    %v3941 = vmul.f32 %v3932, %v3884
    %v3942 = vmul.f32 %v3933, %v3885
    %v3943 = vmul.f32 %v3937, %v3928
    %v3944 = vmul.f32 %v3938, %v3928
    %v3945 = vmul.f32 %v3939, %v3928
    %v3946 = vmul.f32 %v3940, %v3929
    %v3947 = vmul.f32 %v3941, %v3929
    %v3948 = vmul.f32 %v3942, %v3929
    %v3950 = vperm.slane %v231, 0
    %v3951 = vperm.slane %v231, 1
    %v3952 = vperm.slane %v231, 2
    %v3956 = vadd.f32 %v3943, %v3950
    %v3957 = vadd.f32 %v3944, %v3951
    %v3958 = vadd.f32 %v3945, %v3952
    %v3959 = vadd.f32 %v3946, %v3950
    %v3960 = vadd.f32 %v3947, %v3951
    %v3961 = vadd.f32 %v3948, %v3952
    %v3962 = vld [vmem:[#allocation16] sm:$0xff]
    %v3963 = vld [vmem:[#allocation16 + $0x8] sm:$0xff]
    %v3964 = vld [vmem:[#allocation16 + $0x10] sm:$0xff]
    %v3965 = vld [vmem:[#allocation16 + $0x18] sm:$0xff]
    %v3966 = vld [vmem:[#allocation16 + $0x20] sm:$0xff]
    %v3967 = vld [vmem:[#allocation16 + $0x28] sm:$0xff]
    %v3968 = vld [vmem:[#allocation16 + $0x30] sm:$0xff]
    %v3969 = vld [vmem:[#allocation16 + $0x38] sm:$0xff]
    %v3970 = vld [vmem:[#allocation16 + $0x40] sm:$0xff]
    %v3971 = vld [vmem:[#allocation16 + $0x48] sm:$0xff]
    %v3972 = vld [vmem:[#allocation16 + $0x50] sm:$0xff]
    %v3973 = vld [vmem:[#allocation16 + $0x58] sm:$0xff]
    %v3974 = vld [vmem:[#allocation16 + $0x60] sm:$0xff]
    %v3975 = vld [vmem:[#allocation16 + $0x68] sm:$0xff]
    %v3976 = vld [vmem:[#allocation16 + $0x70] sm:$0xff]
    %v3977 = vld [vmem:[#allocation16 + $0x78] sm:$0xff]
    %v3978 = vld [vmem:[#allocation16 + $0x80] sm:$0xff]
    %v3979 = vld [vmem:[#allocation16 + $0x88] sm:$0xff]
    %v3980 = vld [vmem:[#allocation16 + $0x90] sm:$0xff]
    %v3981 = vld [vmem:[#allocation16 + $0x98] sm:$0xff]
    %v3982 = vld [vmem:[#allocation16 + $0xa0] sm:$0xff]
    %v3983 = vld [vmem:[#allocation16 + $0xa8] sm:$0xff]
    %v3984 = vld [vmem:[#allocation16 + $0xb0] sm:$0xff]
    %v3985 = vld [vmem:[#allocation16 + $0xb8] sm:$0xff]
    %v3986 = vld [vmem:[#allocation16 + $0xc0] sm:$0xff]
    %v3987 = vld [vmem:[#allocation16 + $0xc8] sm:$0xff]
    %v3988 = vld [vmem:[#allocation16 + $0xd0] sm:$0xff]
    %v3989 = vld [vmem:[#allocation16 + $0xd8] sm:$0xff]
    %v3990 = vld [vmem:[#allocation16 + $0xe0] sm:$0xff]
    %v3991 = vld [vmem:[#allocation16 + $0xe8] sm:$0xff]
    %v3992 = vld [vmem:[#allocation16 + $0xf0] sm:$0xff]
    %v3993 = vld [vmem:[#allocation16 + $0xf8] sm:$0xff]
    %v3994 = vld [vmem:[#allocation16 + $0x100] sm:$0xff]
    %v3995 = vld [vmem:[#allocation16 + $0x108] sm:$0xff]
    %v3996 = vld [vmem:[#allocation16 + $0x110] sm:$0xff]
    %v3997 = vld [vmem:[#allocation16 + $0x118] sm:$0xff]
    %v3998 = vld [vmem:[#allocation16 + $0x120] sm:$0xff]
    %v3999 = vld [vmem:[#allocation16 + $0x128] sm:$0xff]
    %v4000 = vld [vmem:[#allocation16 + $0x130] sm:$0xff]
    %v4001 = vld [vmem:[#allocation16 + $0x138] sm:$0xff]
    %v4002 = vld [vmem:[#allocation16 + $0x140] sm:$0xff]
    %v4003 = vld [vmem:[#allocation16 + $0x148] sm:$0xff]
    %v4004 = vld [vmem:[#allocation16 + $0x150] sm:$0xff]
    %v4005 = vld [vmem:[#allocation16 + $0x158] sm:$0xff]
    %v4006 = vld [vmem:[#allocation16 + $0x160] sm:$0xff]
    %v4007 = vld [vmem:[#allocation16 + $0x168] sm:$0xff]
    %v4008 = vld [vmem:[#allocation16 + $0x170] sm:$0xff]
    %v4009 = vld [vmem:[#allocation16 + $0x178] sm:$0xff]
    %v4011 = vperm.slane %v226, 0
    %4013 = vmatpush.msra.mxu0 %v3977
    %4014 = vmatpush.msra.mxu0 %v3976
    %4015 = vmatpush.msra.mxu0 %v3975
    %4016 = vmatpush.msra.mxu0 %v3974
    %4017 = vmatpush.msra.mxu0 %v3973
    %4018 = vmatpush.msra.mxu0 %v3972
    %4019 = vmatpush.msra.mxu0 %v3971
    %4020 = vmatpush.msra.mxu0 %v3970
    %4021 = vmatpush.msra.mxu0 %v3969
    %4022 = vmatpush.msra.mxu0 %v3968
    %4023 = vmatpush.msra.mxu0 %v3967
    %4024 = vmatpush.msra.mxu0 %v3966
    %4025 = vmatpush.msra.mxu0 %v3965
    %4026 = vmatpush.msra.mxu0 %v3964
    %4027 = vmatpush.msra.mxu0 %v3963
    %4028 = vmatpush.msra.mxu0 %v3962
    %4029 = vmatmul.f32.gmra.mxu0 %v3956
    %v4030 = vpop.f32.mrf.mxu0
    %v4031 = vadd.f32 %v4011, %v4030
    %4032 = vmatmul.f32.gmra.mxu0 %v3959
    %v4033 = vpop.f32.mrf.mxu0
    %v4034 = vadd.f32 %v4011, %v4033
    %4035 = vdwg.mxu0
    %4036 = vmatpush.msra.mxu0 %v3993
    %4037 = vmatpush.msra.mxu0 %v3992
    %4038 = vmatpush.msra.mxu0 %v3991
    %4039 = vmatpush.msra.mxu0 %v3990
    %4040 = vmatpush.msra.mxu0 %v3989
    %4041 = vmatpush.msra.mxu0 %v3988
    %4042 = vmatpush.msra.mxu0 %v3987
    %4043 = vmatpush.msra.mxu0 %v3986
    %4044 = vmatpush.msra.mxu0 %v3985
    %4045 = vmatpush.msra.mxu0 %v3984
    %4046 = vmatpush.msra.mxu0 %v3983
    %4047 = vmatpush.msra.mxu0 %v3982
    %4048 = vmatpush.msra.mxu0 %v3981
    %4049 = vmatpush.msra.mxu0 %v3980
    %4050 = vmatpush.msra.mxu0 %v3979
    %4051 = vmatpush.msra.mxu0 %v3978
    %4052 = vmatmul.f32.gmra.mxu0 %v3957
    %v4053 = vpop.f32.mrf.mxu0
    %v4054 = vadd.f32 %v4031, %v4053
    %4055 = vmatmul.f32.gmra.mxu0 %v3960
    %v4056 = vpop.f32.mrf.mxu0
    %v4057 = vadd.f32 %v4034, %v4056
    %4058 = vdwg.mxu0
    %4059 = vmatpush.msra.mxu0 %v4009
    %4060 = vmatpush.msra.mxu0 %v4008
    %4061 = vmatpush.msra.mxu0 %v4007
    %4062 = vmatpush.msra.mxu0 %v4006
    %4063 = vmatpush.msra.mxu0 %v4005
    %4064 = vmatpush.msra.mxu0 %v4004
    %4065 = vmatpush.msra.mxu0 %v4003
    %4066 = vmatpush.msra.mxu0 %v4002
    %4067 = vmatpush.msra.mxu0 %v4001
    %4068 = vmatpush.msra.mxu0 %v4000
    %4069 = vmatpush.msra.mxu0 %v3999
    %4070 = vmatpush.msra.mxu0 %v3998
    %4071 = vmatpush.msra.mxu0 %v3997
    %4072 = vmatpush.msra.mxu0 %v3996
    %4073 = vmatpush.msra.mxu0 %v3995
    %4074 = vmatpush.msra.mxu0 %v3994
    %4075 = vmatmul.f32.gmra.mxu0 %v3958
    %v4076 = vpop.f32.mrf.mxu0
    %v4077 = vadd.f32 %v4054, %v4076
    %4078 = vmatmul.f32.gmra.mxu0 %v3961
    %v4079 = vpop.f32.mrf.mxu0
    %v4080 = vadd.f32 %v4057, %v4079
    %4081 = vdwg.mxu0
    %v4082 = vmax.f32 %v4077, 0.0
    %v4083 = vmax.f32 %v4080, 0.0
    %v4084 = vld [vmem:[#allocation19] sm:$0xff]
    %v4085 = vld [vmem:[#allocation19 + $0x8] sm:$0xff]
    %v4086 = vld [vmem:[#allocation19 + $0x10] sm:$0xff]
    %v4087 = vld [vmem:[#allocation19 + $0x18] sm:$0xff]
    %v4088 = vld [vmem:[#allocation19 + $0x20] sm:$0xff]
    %v4089 = vld [vmem:[#allocation19 + $0x28] sm:$0xff]
    %v4090 = vld [vmem:[#allocation19 + $0x30] sm:$0xff]
    %v4091 = vld [vmem:[#allocation19 + $0x38] sm:$0xff]
    %v4092 = vld [vmem:[#allocation19 + $0x40] sm:$0xff]
    %v4093 = vld [vmem:[#allocation19 + $0x48] sm:$0xff]
    %v4094 = vld [vmem:[#allocation19 + $0x50] sm:$0xff]
    %v4095 = vld [vmem:[#allocation19 + $0x58] sm:$0xff]
    %v4096 = vld [vmem:[#allocation19 + $0x60] sm:$0xff]
    %v4097 = vld [vmem:[#allocation19 + $0x68] sm:$0xff]
    %v4098 = vld [vmem:[#allocation19 + $0x70] sm:$0xff]
    %v4099 = vld [vmem:[#allocation19 + $0x78] sm:$0xff]
    %v4100 = vld [vmem:[#allocation19 + $0x80] sm:$0xff]
    %v4101 = vld [vmem:[#allocation19 + $0x88] sm:$0xff]
    %v4102 = vld [vmem:[#allocation19 + $0x90] sm:$0xff]
    %v4103 = vld [vmem:[#allocation19 + $0x98] sm:$0xff]
    %v4104 = vld [vmem:[#allocation19 + $0xa0] sm:$0xff]
    %v4105 = vld [vmem:[#allocation19 + $0xa8] sm:$0xff]
    %v4106 = vld [vmem:[#allocation19 + $0xb0] sm:$0xff]
    %v4107 = vld [vmem:[#allocation19 + $0xb8] sm:$0xff]
    %v4108 = vld [vmem:[#allocation19 + $0xc0] sm:$0xff]
    %v4109 = vld [vmem:[#allocation19 + $0xc8] sm:$0xff]
    %v4110 = vld [vmem:[#allocation19 + $0xd0] sm:$0xff]
    %v4111 = vld [vmem:[#allocation19 + $0xd8] sm:$0xff]
    %v4112 = vld [vmem:[#allocation19 + $0xe0] sm:$0xff]
    %v4113 = vld [vmem:[#allocation19 + $0xe8] sm:$0xff]
    %v4114 = vld [vmem:[#allocation19 + $0xf0] sm:$0xff]
    %v4115 = vld [vmem:[#allocation19 + $0xf8] sm:$0xff]
    %v4116 = vld [vmem:[#allocation19 + $0x100] sm:$0xff]
    %v4117 = vld [vmem:[#allocation19 + $0x108] sm:$0xff]
    %v4118 = vld [vmem:[#allocation19 + $0x110] sm:$0xff]
    %v4119 = vld [vmem:[#allocation19 + $0x118] sm:$0xff]
    %v4120 = vld [vmem:[#allocation19 + $0x120] sm:$0xff]
    %v4121 = vld [vmem:[#allocation19 + $0x128] sm:$0xff]
    %v4122 = vld [vmem:[#allocation19 + $0x130] sm:$0xff]
    %v4123 = vld [vmem:[#allocation19 + $0x138] sm:$0xff]
    %v4124 = vld [vmem:[#allocation19 + $0x140] sm:$0xff]
    %v4125 = vld [vmem:[#allocation19 + $0x148] sm:$0xff]
    %v4126 = vld [vmem:[#allocation19 + $0x150] sm:$0xff]
    %v4127 = vld [vmem:[#allocation19 + $0x158] sm:$0xff]
    %v4128 = vld [vmem:[#allocation19 + $0x160] sm:$0xff]
    %v4129 = vld [vmem:[#allocation19 + $0x168] sm:$0xff]
    %v4130 = vld [vmem:[#allocation19 + $0x170] sm:$0xff]
    %v4131 = vld [vmem:[#allocation19 + $0x178] sm:$0xff]
    %v4133 = vperm.slane %v227, 0
    %v4134 = vperm.slane %v227, 1
    %v4135 = vperm.slane %v227, 2
    %4139 = vmatpush.msra.mxu0 %v4129
    %4140 = vmatpush.msra.mxu0 %v4126
    %4141 = vmatpush.msra.mxu0 %v4123
    %4142 = vmatpush.msra.mxu0 %v4120
    %4143 = vmatpush.msra.mxu0 %v4117
    %4144 = vmatpush.msra.mxu0 %v4114
    %4145 = vmatpush.msra.mxu0 %v4111
    %4146 = vmatpush.msra.mxu0 %v4108
    %4147 = vmatpush.msra.mxu0 %v4105
    %4148 = vmatpush.msra.mxu0 %v4102
    %4149 = vmatpush.msra.mxu0 %v4099
    %4150 = vmatpush.msra.mxu0 %v4096
    %4151 = vmatpush.msra.mxu0 %v4093
    %4152 = vmatpush.msra.mxu0 %v4090
    %4153 = vmatpush.msra.mxu0 %v4087
    %4154 = vmatpush.msra.mxu0 %v4084
    %4155 = vmatmul.f32.gmra.mxu0 %v4082
    %v4156 = vpop.f32.mrf.mxu0
    %v4157 = vadd.f32 %v4133, %v4156
    %4158 = vmatmul.f32.gmra.mxu0 %v4083
    %v4159 = vpop.f32.mrf.mxu0
    %v4160 = vadd.f32 %v4133, %v4159
    %4161 = vdwg.mxu0
    %4162 = vmatpush.msra.mxu0 %v4130
    %4163 = vmatpush.msra.mxu0 %v4127
    %4164 = vmatpush.msra.mxu0 %v4124
    %4165 = vmatpush.msra.mxu0 %v4121
    %4166 = vmatpush.msra.mxu0 %v4118
    %4167 = vmatpush.msra.mxu0 %v4115
    %4168 = vmatpush.msra.mxu0 %v4112
    %4169 = vmatpush.msra.mxu0 %v4109
    %4170 = vmatpush.msra.mxu0 %v4106
    %4171 = vmatpush.msra.mxu0 %v4103
    %4172 = vmatpush.msra.mxu0 %v4100
    %4173 = vmatpush.msra.mxu0 %v4097
    %4174 = vmatpush.msra.mxu0 %v4094
    %4175 = vmatpush.msra.mxu0 %v4091
    %4176 = vmatpush.msra.mxu0 %v4088
    %4177 = vmatpush.msra.mxu0 %v4085
    %4178 = vmatmul.f32.gmra.mxu0 %v4082
    %v4179 = vpop.f32.mrf.mxu0
    %v4180 = vadd.f32 %v4134, %v4179
    %4181 = vmatmul.f32.gmra.mxu0 %v4083
    %v4182 = vpop.f32.mrf.mxu0
    %v4183 = vadd.f32 %v4134, %v4182
    %4184 = vdwg.mxu0
    %4185 = vmatpush.msra.mxu0 %v4131
    %4186 = vmatpush.msra.mxu0 %v4128
    %4187 = vmatpush.msra.mxu0 %v4125
    %4188 = vmatpush.msra.mxu0 %v4122
    %4189 = vmatpush.msra.mxu0 %v4119
    %4190 = vmatpush.msra.mxu0 %v4116
    %4191 = vmatpush.msra.mxu0 %v4113
    %4192 = vmatpush.msra.mxu0 %v4110
    %4193 = vmatpush.msra.mxu0 %v4107
    %4194 = vmatpush.msra.mxu0 %v4104
    %4195 = vmatpush.msra.mxu0 %v4101
    %4196 = vmatpush.msra.mxu0 %v4098
    %4197 = vmatpush.msra.mxu0 %v4095
    %4198 = vmatpush.msra.mxu0 %v4092
    %4199 = vmatpush.msra.mxu0 %v4089
    %4200 = vmatpush.msra.mxu0 %v4086
    %4201 = vmatmul.f32.gmra.mxu0 %v4082
    %v4202 = vpop.f32.mrf.mxu0
    %v4203 = vadd.f32 %v4135, %v4202
    %4204 = vmatmul.f32.gmra.mxu0 %v4083
    %v4205 = vpop.f32.mrf.mxu0
    %v4206 = vadd.f32 %v4135, %v4205
    %4207 = vdwg.mxu0
    %v4208 = vadd.f32 %v3858, %v4157
    %v4209 = vadd.f32 %v3859, %v4180
    %v4210 = vadd.f32 %v3860, %v4203
    %v4211 = vadd.f32 %v3861, %v4160
    %v4212 = vadd.f32 %v3862, %v4183
    %v4213 = vadd.f32 %v3863, %v4206
    %4214 = vst [vmem:[#allocation22] sm:$0xff] %v4208
    %4215 = vst [vmem:[#allocation22 + $0x8] sm:$0xff] %v4209
    %4216 = vst [vmem:[#allocation22 + $0x10] sm:$0xff] %v4210
    %4217 = vst [vmem:[#allocation22 + $0x18] sm:$0xff] %v4211
    %4218 = vst [vmem:[#allocation22 + $0x20] sm:$0xff] %v4212
    %4219 = vst [vmem:[#allocation22 + $0x28] sm:$0xff] %v4213
    // Predicated region
    $region102: #{encoder_layer.1} parent=1 // pred_check
      _
    $region103: #{encoder_layer.1} parent=1 // pred_check_branch
      %4221 = sbr.rel (0) target = $region105
    $region104: #{encoder_layer.1} parent=1 // pred_region
      %4223 = vsyncadd [#allocation4], 0
      %s4224 = sshll.u32 [#allocation22], 4
      %s4225 = int_to_ptr.vmem [resolvable:$true] %s4224
      %s4226 = sshll.u32 %s13, 4
      %s4227 = int_to_ptr.hbm [resolvable:$true] %s4226
      %4232 = dma.vmem_to_hbm [thread:$0]  %s4225, 768, %s4227, [#allocation4], 384, 384, 24
    $region105: #{encoder_layer.1} parent=1 // pred_fallthru
      _
    // Predicated region
    $region106: #{encoder_layer.1} parent=1 // pred_check
      _
    $region107: #{encoder_layer.1} parent=1 // pred_check_branch
      %4234 = sbr.rel (0) target = $region109
    $region108: #{encoder_layer.1} parent=1 // pred_region
      %4236 = dma.done [#allocation4], 768
    $region109: #{encoder_layer.1} parent=1 // pred_fallthru
      _
    %4237 = vsyncpa [#allocation3], 1
    %4238 = vsyncpa [#allocation6], 1
    %4239 = vsyncpa [#allocation9], 1
    %4240 = vsyncpa [#allocation12], 1
    %4241 = vsyncpa [#allocation15], 1
    %4242 = vsyncpa [#allocation18], 1
    %4243 = vsyncpa [#allocation21], 1
    %4244 = vsyncpa [#allocation4], 1

</llo_original>
